<compile_context>
chip_gen: v7x
topology: tpu7x:2x2x1
jax: 0.10.0
libtpu: 0.0.40
codegen_flags: <defaults>
</compile_context>

<pallas_src>
import math

import jax
import jax.numpy as jnp
from jax.experimental import pallas as pl
from jax.experimental.pallas import tpu as pltpu

# ---- scaled-down model config (roberta-base analogue) ----
HIDDEN = 32          # stands in for EMBED_SIZE['roberta-base'] = 768
N_HEADS = 4
HEAD_DIM = HIDDEN // N_HEADS
N_LAYERS = 2
FFN_DIM = 64
VOCAB = 64
MAX_POS = 16
SEQ = 8
BATCH = 2
LN_EPS = 1e-5
M_TOKENS = BATCH * SEQ


def _layernorm(x, g, b):
    mu = jnp.mean(x, axis=-1, keepdims=True)
    var = jnp.mean(jnp.square(x - mu), axis=-1, keepdims=True)
    return (x - mu) * jax.lax.rsqrt(var + LN_EPS) * g + b


# ------------------ fused transformer-stack kernel ------------------
# grid = (N_LAYERS,), layer axis "arbitrary"; the residual stream lives in a
# VMEM scratch that persists across grid iterations. Per-layer weights are
# stacked with a leading layer dim and selected via index_map.

def _encoder_kernel(x_ref, bias_ref, emb_g_ref, emb_b_ref,
                    wqkv_ref, bqkv_ref, wo_ref, bo_ref,
                    ln1_g_ref, ln1_b_ref,
                    w1_ref, b1_ref, w2_ref, b2_ref,
                    ln2_g_ref, ln2_b_ref,
                    o_ref, x_sc):
    l = pl.program_id(0)

    # Layer 0 prologue: embedding LayerNorm, load residual stream into scratch.
    @pl.when(l == 0)
    def _():
        x_sc[...] = _layernorm(x_ref[...], emb_g_ref[...], emb_b_ref[...])

    x = x_sc[...]                                      # (M, H) f32 residual stream

    # ---- fused QKV projection: one MXU pass over x, lane-dense 3H output ----
    qkv = jnp.dot(x.astype(jnp.bfloat16), wqkv_ref[...],
                  preferred_element_type=jnp.float32) + bqkv_ref[...]   # (M, 3H)

    # ---- attention, fully in-kernel, unrolled over (batch, head) ----
    scale = 1.0 / math.sqrt(HEAD_DIM)
    batch_outs = []
    for b in range(BATCH):
        bias_row = bias_ref[pl.ds(b, 1), :]            # (1, S) additive key mask
        qkv_b = qkv[b * SEQ:(b + 1) * SEQ, :]          # (S, 3H)
        head_outs = []
        for h in range(N_HEADS):
            q = qkv_b[:, h * HEAD_DIM:(h + 1) * HEAD_DIM]
            k = qkv_b[:, HIDDEN + h * HEAD_DIM:HIDDEN + (h + 1) * HEAD_DIM]
            v = qkv_b[:, 2 * HIDDEN + h * HEAD_DIM:2 * HIDDEN + (h + 1) * HEAD_DIM]
            s = jax.lax.dot_general(q, k, (((1,), (1,)), ((), ())),
                                    preferred_element_type=jnp.float32) * scale
            s = s + bias_row                           # broadcast over query rows
            m = jnp.max(s, axis=-1, keepdims=True)
            p = jnp.exp(s - m)
            den = jnp.sum(p, axis=-1, keepdims=True)
            p = p * pl.reciprocal(den, approx=True)    # EUP, not a VALU divide
            head_outs.append(jnp.dot(p, v, preferred_element_type=jnp.float32))
        batch_outs.append(jnp.concatenate(head_outs, axis=-1))   # (S, H)
    attn = jnp.concatenate(batch_outs, axis=0)                    # (M, H)

    # ---- output projection fused with bias + residual + LayerNorm1 ----
    attn = jnp.dot(attn.astype(jnp.bfloat16), wo_ref[...],
                   preferred_element_type=jnp.float32) + bo_ref[...]
    x = _layernorm(x + attn, ln1_g_ref[...], ln1_b_ref[...])

    # ---- FFN: (w1 + gelu) then (w2 + bias + residual + LayerNorm2) ----
    # TODO(synk): HF roberta uses exact (erf) gelu; tanh approximation used here.
    h = jnp.dot(x.astype(jnp.bfloat16), w1_ref[...],
                preferred_element_type=jnp.float32) + b1_ref[...]
    h = jax.nn.gelu(h, approximate=True)
    h = jnp.dot(h.astype(jnp.bfloat16), w2_ref[...],
                preferred_element_type=jnp.float32) + b2_ref[...]
    x = _layernorm(x + h, ln2_g_ref[...], ln2_b_ref[...])

    x_sc[...] = x

    @pl.when(l == pl.num_programs(0) - 1)
    def _():
        o_ref[...] = x


def encoder_pallas(x_emb, mask_bias, params):
    H, F, Mt = HIDDEN, FFN_DIM, M_TOKENS

    def const(shape):
        return pl.BlockSpec(shape, lambda l: (0, 0))

    def per_layer(shape):
        return pl.BlockSpec((None,) + shape, lambda l: (l, 0, 0))

    return pl.pallas_call(
        _encoder_kernel,
        out_shape=jax.ShapeDtypeStruct((Mt, H), jnp.float32),
        grid=(N_LAYERS,),
        in_specs=[
            const((Mt, H)),                      # x_emb (pre-LN embeddings)
            const((BATCH, SEQ)),                 # additive mask bias
            const((1, H)), const((1, H)),        # embedding LN gamma/beta
            per_layer((H, 3 * H)), per_layer((1, 3 * H)),   # wqkv, bqkv
            per_layer((H, H)), per_layer((1, H)),           # wo, bo
            per_layer((1, H)), per_layer((1, H)),           # ln1 g/b
            per_layer((H, F)), per_layer((1, F)),           # w1, b1
            per_layer((F, H)), per_layer((1, H)),           # w2, b2
            per_layer((1, H)), per_layer((1, H)),           # ln2 g/b
        ],
        out_specs=pl.BlockSpec((Mt, H), lambda l: (0, 0)),
        scratch_shapes=[pltpu.VMEM((Mt, H), jnp.float32)],
        compiler_params=pltpu.CompilerParams(
            dimension_semantics=("arbitrary",)),
    )(x_emb, mask_bias,
      params["emb_ln_g"], params["emb_ln_b"],
      params["wqkv"], params["bqkv"], params["wo"], params["bo"],
      params["ln1_g"], params["ln1_b"],
      params["w1"], params["b1"], params["w2"], params["b2"],
      params["ln2_g"], params["ln2_b"])


# ------------------ fused pooler + classifier kernel ------------------

def _head_kernel(x_ref, wp_ref, bp_ref, wc_ref, bc_ref, o_ref):
    # Gather token 0 of each sequence in-kernel (no JAX-level slice/reshape glue).
    x0 = jnp.concatenate([x_ref[pl.ds(b * SEQ, 1), :] for b in range(BATCH)],
                         axis=0)                                  # (B, H)
    pooled = jnp.tanh(jnp.dot(x0, wp_ref[...],
                              preferred_element_type=jnp.float32) + bp_ref[...])
    # TODO(synk): nn.Dropout(0.1) is identity at inference; omitted.
    o_ref[...] = jnp.dot(pooled, wc_ref[...],
                         preferred_element_type=jnp.float32) + bc_ref[...]


def head_pallas(x, params):
    H = HIDDEN
    return pl.pallas_call(
        _head_kernel,
        out_shape=jax.ShapeDtypeStruct((BATCH, 1), jnp.float32),
        grid=(1,),
        in_specs=[pl.BlockSpec((M_TOKENS, H), lambda i: (0, 0)),
                  pl.BlockSpec((H, H), lambda i: (0, 0)),
                  pl.BlockSpec((1, H), lambda i: (0, 0)),
                  pl.BlockSpec((H, 1), lambda i: (0, 0)),
                  pl.BlockSpec((1, 1), lambda i: (0, 0))],
        out_specs=pl.BlockSpec((BATCH, 1), lambda i: (0, 0)),
        compiler_params=pltpu.CompilerParams(
            dimension_semantics=("arbitrary",)),
    )(x, params["wp"], params["bp"], params["wc"], params["bc"])


# ------------------------- parameter setup -------------------------

def init_params(key):
    def dense(key, d_in, d_out):
        return jax.random.normal(key, (d_in, d_out), jnp.float32) * 0.02

    keys = jax.random.split(key, 2 + 6 * N_LAYERS + 2)
    ki = iter(keys)
    params = {
        "word_emb": jax.random.normal(next(ki), (VOCAB, HIDDEN), jnp.float32) * 0.02,
        "pos_emb": jax.random.normal(next(ki), (MAX_POS, HIDDEN), jnp.float32) * 0.02,
        "emb_ln_g": jnp.ones((1, HIDDEN), jnp.float32),
        "emb_ln_b": jnp.zeros((1, HIDDEN), jnp.float32),
    }
    wqkv, wo, w1, w2 = [], [], [], []
    for _ in range(N_LAYERS):
        wq = dense(next(ki), HIDDEN, HIDDEN)
        wk = dense(next(ki), HIDDEN, HIDDEN)
        wv = dense(next(ki), HIDDEN, HIDDEN)
        wqkv.append(jnp.concatenate([wq, wk, wv], axis=1))   # (H, 3H)
        wo.append(dense(next(ki), HIDDEN, HIDDEN))
        w1.append(dense(next(ki), HIDDEN, FFN_DIM))
        w2.append(dense(next(ki), FFN_DIM, HIDDEN))
    # Matmul weights stacked over layers and stored in bf16 (MXU-native; halves DMA).
    params["wqkv"] = jnp.stack(wqkv).astype(jnp.bfloat16)    # (L, H, 3H)
    params["wo"] = jnp.stack(wo).astype(jnp.bfloat16)        # (L, H, H)
    params["w1"] = jnp.stack(w1).astype(jnp.bfloat16)        # (L, H, F)
    params["w2"] = jnp.stack(w2).astype(jnp.bfloat16)        # (L, F, H)
    params["bqkv"] = jnp.zeros((N_LAYERS, 1, 3 * HIDDEN), jnp.float32)
    params["bo"] = jnp.zeros((N_LAYERS, 1, HIDDEN), jnp.float32)
    params["b1"] = jnp.zeros((N_LAYERS, 1, FFN_DIM), jnp.float32)
    params["b2"] = jnp.zeros((N_LAYERS, 1, HIDDEN), jnp.float32)
    params["ln1_g"] = jnp.ones((N_LAYERS, 1, HIDDEN), jnp.float32)
    params["ln1_b"] = jnp.zeros((N_LAYERS, 1, HIDDEN), jnp.float32)
    params["ln2_g"] = jnp.ones((N_LAYERS, 1, HIDDEN), jnp.float32)
    params["ln2_b"] = jnp.zeros((N_LAYERS, 1, HIDDEN), jnp.float32)
    params["wp"] = dense(next(ki), HIDDEN, HIDDEN)           # pooler dense
    params["bp"] = jnp.zeros((1, HIDDEN), jnp.float32)
    params["wc"] = dense(next(ki), HIDDEN, 1)                # nn.Linear(EMBED_SIZE, 1)
    params["bc"] = jnp.zeros((1, 1), jnp.float32)
    return params


# ------------------------- forward pass -------------------------

def bert_classifier_forward(params, input_ids, mask):
    """input_ids: (B, S) int32 ; mask: (B, S) {0,1} -> logits (B, 1)"""
    B, S = input_ids.shape
    # Embedding table gathers are plain-JAX glue; all heavy work is 2 pallas_calls.
    x = params["word_emb"][input_ids] + params["pos_emb"][jnp.arange(S)][None, :, :]
    x = x.reshape(B * S, HIDDEN)
    mask_bias = (1.0 - mask.astype(jnp.float32)) * -1e9     # (B, S) additive key bias
    x = encoder_pallas(x, mask_bias, params)                # (B*S, H)
    return head_pallas(x, params)                           # (B, 1)


if __name__ == "__main__":
    key = jax.random.PRNGKey(0)
    pkey, ikey = jax.random.split(key)
    params = init_params(pkey)

    input_ids = jax.random.randint(ikey, (BATCH, SEQ), 0, VOCAB, dtype=jnp.int32)
    mask = jnp.ones((BATCH, SEQ), dtype=jnp.int32).at[1, 6:].set(0)  # pad tail of seq 1

    logits = jax.jit(bert_classifier_forward)(params, input_ids, mask)
    logits = jax.block_until_ready(logits)
    assert logits.shape == (BATCH, 1) and logits.dtype == jnp.float32
    print("KERNEL_OK")
</pallas_src>

<mosaic_0001>
module attributes {stable_mosaic.version = 11 : i64} {
  func.func @_head_kernel(%arg0: i32, %arg1: memref<16x32xf32, #tpu.memory_space<vmem>>, %arg2: memref<32x32xf32, #tpu.memory_space<vmem>>, %arg3: memref<1x32xf32, #tpu.memory_space<vmem>>, %arg4: memref<32x1xf32, #tpu.memory_space<vmem>>, %arg5: memref<1x1xf32, #tpu.memory_space<vmem>>, %arg6: memref<2x1xf32, #tpu.memory_space<vmem>>) attributes {dimension_semantics = [#tpu.dimension_semantics<arbitrary>], iteration_bounds = array<i64: 1>, scalar_prefetch = 0 : i64, scratch_operands = 0 : i64, tpu.core_type = #tpu.core_type<tc>, window_params = [{pipeline_mode = #tpu.pipeline_mode<synchronous>, transform_indices = @transform_0, window_bounds = array<i64: 16, 32>}, {pipeline_mode = #tpu.pipeline_mode<synchronous>, transform_indices = @transform_1, window_bounds = array<i64: 32, 32>}, {pipeline_mode = #tpu.pipeline_mode<synchronous>, transform_indices = @transform_2, window_bounds = array<i64: 1, 32>}, {pipeline_mode = #tpu.pipeline_mode<synchronous>, transform_indices = @transform_3, window_bounds = array<i64: 32, 1>}, {pipeline_mode = #tpu.pipeline_mode<synchronous>, transform_indices = @transform_4, window_bounds = array<i64: 1, 1>}, {pipeline_mode = #tpu.pipeline_mode<synchronous>, transform_indices = @transform_5, window_bounds = array<i64: 2, 1>}]} {
    %c0 = arith.constant 0 : index
    %c0_0 = arith.constant 0 : index
    %0 = vector.load %arg1[%c0, %c0_0] : memref<16x32xf32, #tpu.memory_space<vmem>>, vector<1x32xf32>
    %c8 = arith.constant 8 : index
    %c0_1 = arith.constant 0 : index
    %1 = vector.load %arg1[%c8, %c0_1] : memref<16x32xf32, #tpu.memory_space<vmem>>, vector<1x32xf32>
    %2 = tpu.concatenate %0, %1 in 0 : vector<1x32xf32>, vector<1x32xf32> -> vector<2x32xf32>
    %c0_2 = arith.constant 0 : index
    %c0_3 = arith.constant 0 : index
    %3 = vector.load %arg2[%c0_2, %c0_3] : memref<32x32xf32, #tpu.memory_space<vmem>>, vector<32x32xf32>
    %cst = arith.constant dense<0.000000e+00> : vector<2x32xf32>
    %4 = tpu.matmul %2, %3, %cst {dimension_numbers = #tpu.dot_dimension_numbers<[1], [0], [0], [1], [0, 0, 1, 1], [], []>} : vector<2x32xf32>, vector<32x32xf32>, vector<2x32xf32> -> vector<2x32xf32>
    %c0_4 = arith.constant 0 : index
    %c0_5 = arith.constant 0 : index
    %5 = vector.load %arg3[%c0_4, %c0_5] : memref<1x32xf32, #tpu.memory_space<vmem>>, vector<1x32xf32>
    %6 = vector.broadcast %5 : vector<1x32xf32> to vector<2x32xf32>
    %7 = arith.addf %4, %6 : vector<2x32xf32>
    %8 = math.tanh %7 : vector<2x32xf32>
    %c0_6 = arith.constant 0 : index
    %c0_7 = arith.constant 0 : index
    %9 = vector.load %arg4[%c0_6, %c0_7] : memref<32x1xf32, #tpu.memory_space<vmem>>, vector<32x1xf32>
    %cst_8 = arith.constant dense<0.000000e+00> : vector<2x1xf32>
    %10 = tpu.matmul %8, %9, %cst_8 {dimension_numbers = #tpu.dot_dimension_numbers<[1], [0], [0], [1], [0, 0, 1, 1], [], []>} : vector<2x32xf32>, vector<32x1xf32>, vector<2x1xf32> -> vector<2x1xf32>
    %c0_9 = arith.constant 0 : index
    %c0_10 = arith.constant 0 : index
    %11 = vector.load %arg5[%c0_9, %c0_10] : memref<1x1xf32, #tpu.memory_space<vmem>>, vector<1x1xf32>
    %12 = vector.broadcast %11 : vector<1x1xf32> to vector<2x1xf32>
    %13 = arith.addf %10, %12 : vector<2x1xf32>
    %c0_11 = arith.constant 0 : index
    %c0_12 = arith.constant 0 : index
    %14 = vector.load %arg6[%c0_11, %c0_12] : memref<2x1xf32, #tpu.memory_space<vmem>>, vector<2x1xf32>
    tpu.vector_store %arg6[%c0_11, %c0_12], %13 {strides = array<i32>} : memref<2x1xf32, #tpu.memory_space<vmem>>, vector<2x1xf32>,
    return
  }
  func.func @transform_0(%arg0: i32) -> (i32, i32) {
    %c0_i32 = arith.constant 0 : i32
    %c0_i32_0 = arith.constant 0 : i32
    %c0_i32_1 = arith.constant 0 : i32
    return %c0_i32, %c0_i32_0 : i32, i32
  }
  func.func @transform_1(%arg0: i32) -> (i32, i32) {
    %c0_i32 = arith.constant 0 : i32
    %c0_i32_0 = arith.constant 0 : i32
    %c0_i32_1 = arith.constant 0 : i32
    return %c0_i32, %c0_i32_0 : i32, i32
  }
  func.func @transform_2(%arg0: i32) -> (i32, i32) {
    %c0_i32 = arith.constant 0 : i32
    %c0_i32_0 = arith.constant 0 : i32
    %c0_i32_1 = arith.constant 0 : i32
    return %c0_i32, %c0_i32_0 : i32, i32
  }
  func.func @transform_3(%arg0: i32) -> (i32, i32) {
    %c0_i32 = arith.constant 0 : i32
    %c0_i32_0 = arith.constant 0 : i32
    %c0_i32_1 = arith.constant 0 : i32
    return %c0_i32, %c0_i32_0 : i32, i32
  }
  func.func @transform_4(%arg0: i32) -> (i32, i32) {
    %c0_i32 = arith.constant 0 : i32
    %c0_i32_0 = arith.constant 0 : i32
    %c0_i32_1 = arith.constant 0 : i32
    return %c0_i32, %c0_i32_0 : i32, i32
  }
  func.func @transform_5(%arg0: i32) -> (i32, i32) {
    %c0_i32 = arith.constant 0 : i32
    %c0_i32_0 = arith.constant 0 : i32
    %c0_i32_1 = arith.constant 0 : i32
    return %c0_i32, %c0_i32_0 : i32, i32
  }
}

module attributes {stable_mosaic.version = 11 : i64} {
  func.func @_encoder_kernel(%arg0: i32, %arg1: memref<16x32xf32, #tpu.memory_space<vmem>>, %arg2: memref<2x8xf32, #tpu.memory_space<vmem>>, %arg3: memref<1x32xf32, #tpu.memory_space<vmem>>, %arg4: memref<1x32xf32, #tpu.memory_space<vmem>>, %arg5: memref<1x32x96xbf16, #tpu.memory_space<vmem>>, %arg6: memref<1x1x96xf32, #tpu.memory_space<vmem>>, %arg7: memref<1x32x32xbf16, #tpu.memory_space<vmem>>, %arg8: memref<1x1x32xf32, #tpu.memory_space<vmem>>, %arg9: memref<1x1x32xf32, #tpu.memory_space<vmem>>, %arg10: memref<1x1x32xf32, #tpu.memory_space<vmem>>, %arg11: memref<1x32x64xbf16, #tpu.memory_space<vmem>>, %arg12: memref<1x1x64xf32, #tpu.memory_space<vmem>>, %arg13: memref<1x64x32xbf16, #tpu.memory_space<vmem>>, %arg14: memref<1x1x32xf32, #tpu.memory_space<vmem>>, %arg15: memref<1x1x32xf32, #tpu.memory_space<vmem>>, %arg16: memref<1x1x32xf32, #tpu.memory_space<vmem>>, %arg17: memref<16x32xf32, #tpu.memory_space<vmem>>, %arg18: memref<16x32xf32, #tpu.memory_space<vmem>>) attributes {dimension_semantics = [#tpu.dimension_semantics<arbitrary>], iteration_bounds = array<i64: 2>, scalar_prefetch = 0 : i64, scratch_operands = 1 : i64, tpu.core_type = #tpu.core_type<tc>, window_params = [{pipeline_mode = #tpu.pipeline_mode<synchronous>, transform_indices = @transform_0, window_bounds = array<i64: 16, 32>}, {pipeline_mode = #tpu.pipeline_mode<synchronous>, transform_indices = @transform_1, window_bounds = array<i64: 2, 8>}, {pipeline_mode = #tpu.pipeline_mode<synchronous>, transform_indices = @transform_2, window_bounds = array<i64: 1, 32>}, {pipeline_mode = #tpu.pipeline_mode<synchronous>, transform_indices = @transform_3, window_bounds = array<i64: 1, 32>}, {transform_indices = @transform_4, window_bounds = array<i64: 1, 32, 96>}, {transform_indices = @transform_5, window_bounds = array<i64: 1, 1, 96>}, {transform_indices = @transform_6, window_bounds = array<i64: 1, 32, 32>}, {transform_indices = @transform_7, window_bounds = array<i64: 1, 1, 32>}, {transform_indices = @transform_8, window_bounds = array<i64: 1, 1, 32>}, {transform_indices = @transform_9, window_bounds = array<i64: 1, 1, 32>}, {transform_indices = @transform_10, window_bounds = array<i64: 1, 32, 64>}, {transform_indices = @transform_11, window_bounds = array<i64: 1, 1, 64>}, {transform_indices = @transform_12, window_bounds = array<i64: 1, 64, 32>}, {transform_indices = @transform_13, window_bounds = array<i64: 1, 1, 32>}, {transform_indices = @transform_14, window_bounds = array<i64: 1, 1, 32>}, {transform_indices = @transform_15, window_bounds = array<i64: 1, 1, 32>}, {pipeline_mode = #tpu.pipeline_mode<synchronous>, transform_indices = @transform_16, window_bounds = array<i64: 16, 32>}]} {
    %c0_i32 = arith.constant 0 : i32
    %0 = arith.cmpi eq, %arg0, %c0_i32 : i32
    %1 = arith.extui %0 : i1 to i32
    %c0_i32_0 = arith.constant 0 : i32
    %2 = arith.cmpi ne, %1, %c0_i32_0 : i32
    scf.if %2 {
      %c0_101 = arith.constant 0 : index
      %c0_102 = arith.constant 0 : index
      %266 = vector.load %arg1[%c0_101, %c0_102] : memref<16x32xf32, #tpu.memory_space<vmem>>, vector<16x32xf32>
      %c0_103 = arith.constant 0 : index
      %c0_104 = arith.constant 0 : index
      %267 = vector.load %arg3[%c0_103, %c0_104] : memref<1x32xf32, #tpu.memory_space<vmem>>, vector<1x32xf32>
      %c0_105 = arith.constant 0 : index
      %c0_106 = arith.constant 0 : index
      %268 = vector.load %arg4[%c0_105, %c0_106] : memref<1x32xf32, #tpu.memory_space<vmem>>, vector<1x32xf32>
      %cst_107 = arith.constant dense<0.000000e+00> : vector<16xf32>
      %269 = vector.multi_reduction <add>, %266, %cst_107 [1] : vector<16x32xf32> to vector<16xf32>
      %270 = vector.shape_cast %269 : vector<16xf32> to vector<16x1xf32>
      %cst_108 = arith.constant 3.200000e+01 : f32
      %271 = vector.broadcast %cst_108 : f32 to vector<16x1xf32>
      %272 = arith.divf %270, %271 : vector<16x1xf32>
      %273 = vector.broadcast %272 : vector<16x1xf32> to vector<16x32xf32>
      %274 = arith.subf %266, %273 : vector<16x32xf32>
      %275 = arith.mulf %274, %274 : vector<16x32xf32>
      %cst_109 = arith.constant dense<0.000000e+00> : vector<16xf32>
      %276 = vector.multi_reduction <add>, %275, %cst_109 [1] : vector<16x32xf32> to vector<16xf32>
      %277 = vector.shape_cast %276 : vector<16xf32> to vector<16x1xf32>
      %cst_110 = arith.constant 3.200000e+01 : f32
      %278 = vector.broadcast %cst_110 : f32 to vector<16x1xf32>
      %279 = arith.divf %277, %278 : vector<16x1xf32>
      %280 = vector.broadcast %272 : vector<16x1xf32> to vector<16x32xf32>
      %281 = arith.subf %266, %280 : vector<16x32xf32>
      %cst_111 = arith.constant 9.99999974E-6 : f32
      %282 = vector.broadcast %cst_111 : f32 to vector<16x1xf32>
      %283 = arith.addf %279, %282 : vector<16x1xf32>
      %284 = math.rsqrt %283 : vector<16x1xf32>
      %285 = vector.broadcast %284 : vector<16x1xf32> to vector<16x32xf32>
      %286 = arith.mulf %281, %285 : vector<16x32xf32>
      %287 = vector.broadcast %267 : vector<1x32xf32> to vector<16x32xf32>
      %288 = arith.mulf %286, %287 : vector<16x32xf32>
      %289 = vector.broadcast %268 : vector<1x32xf32> to vector<16x32xf32>
      %290 = arith.addf %288, %289 : vector<16x32xf32>
      %c0_112 = arith.constant 0 : index
      %c0_113 = arith.constant 0 : index
      %291 = vector.load %arg18[%c0_112, %c0_113] : memref<16x32xf32, #tpu.memory_space<vmem>>, vector<16x32xf32>
      tpu.vector_store %arg18[%c0_112, %c0_113], %290 {strides = array<i32>} : memref<16x32xf32, #tpu.memory_space<vmem>>, vector<16x32xf32>,
    } else {
    }
    %c0 = arith.constant 0 : index
    %c0_1 = arith.constant 0 : index
    %3 = vector.load %arg18[%c0, %c0_1] : memref<16x32xf32, #tpu.memory_space<vmem>>, vector<16x32xf32>
    %4 = arith.truncf %3 : vector<16x32xf32> to vector<16x32xbf16>
    %c0_2 = arith.constant 0 : index
    %c0_3 = arith.constant 0 : index
    %c0_4 = arith.constant 0 : index
    %5 = vector.load %arg5[%c0_2, %c0_3, %c0_4] : memref<1x32x96xbf16, #tpu.memory_space<vmem>>, vector<1x32x96xbf16>
    %6 = vector.shape_cast %5 : vector<1x32x96xbf16> to vector<32x96xbf16>
    %cst = arith.constant dense<0.000000e+00> : vector<16x96xf32>
    %7 = tpu.matmul %4, %6, %cst {dimension_numbers = #tpu.dot_dimension_numbers<[1], [0], [0], [1], [0, 0, 1, 1], [], []>} : vector<16x32xbf16>, vector<32x96xbf16>, vector<16x96xf32> -> vector<16x96xf32>
    %c0_5 = arith.constant 0 : index
    %c0_6 = arith.constant 0 : index
    %c0_7 = arith.constant 0 : index
    %8 = vector.load %arg6[%c0_5, %c0_6, %c0_7] : memref<1x1x96xf32, #tpu.memory_space<vmem>>, vector<1x1x96xf32>
    %9 = vector.shape_cast %8 : vector<1x1x96xf32> to vector<1x96xf32>
    %10 = vector.broadcast %9 : vector<1x96xf32> to vector<16x96xf32>
    %11 = arith.addf %7, %10 : vector<16x96xf32>
    %c0_8 = arith.constant 0 : index
    %c0_9 = arith.constant 0 : index
    %12 = vector.load %arg2[%c0_8, %c0_9] : memref<2x8xf32, #tpu.memory_space<vmem>>, vector<1x8xf32>
    %13 = vector.extract_strided_slice %11 {offsets = [0, 0], sizes = [8, 96], strides = [1, 1]} : vector<16x96xf32> to vector<8x96xf32>
    %14 = vector.extract_strided_slice %13 {offsets = [0, 0], sizes = [8, 8], strides = [1, 1]} : vector<8x96xf32> to vector<8x8xf32>
    %15 = vector.extract_strided_slice %13 {offsets = [0, 32], sizes = [8, 8], strides = [1, 1]} : vector<8x96xf32> to vector<8x8xf32>
    %16 = vector.extract_strided_slice %13 {offsets = [0, 64], sizes = [8, 8], strides = [1, 1]} : vector<8x96xf32> to vector<8x8xf32>
    %cst_10 = arith.constant dense<0.000000e+00> : vector<8x8xf32>
    %17 = tpu.matmul %14, %15, %cst_10 {dimension_numbers = #tpu.dot_dimension_numbers<[1], [1], [0], [0], [0, 0, 1, 0], [], []>} : vector<8x8xf32>, vector<8x8xf32>, vector<8x8xf32> -> vector<8x8xf32>
    %cst_11 = arith.constant 0.353553385 : f32
    %18 = vector.broadcast %cst_11 : f32 to vector<8x8xf32>
    %19 = arith.mulf %17, %18 : vector<8x8xf32>
    %20 = vector.broadcast %12 : vector<1x8xf32> to vector<8x8xf32>
    %21 = arith.addf %19, %20 : vector<8x8xf32>
    %cst_12 = arith.constant dense<0xFF800000> : vector<8xf32>
    %22 = vector.multi_reduction <maximumf>, %21, %cst_12 [1] : vector<8x8xf32> to vector<8xf32>
    %23 = vector.shape_cast %22 : vector<8xf32> to vector<8x1xf32>
    %24 = vector.broadcast %23 : vector<8x1xf32> to vector<8x8xf32>
    %25 = arith.subf %21, %24 : vector<8x8xf32>
    %26 = math.exp %25 : vector<8x8xf32>
    %cst_13 = arith.constant dense<0.000000e+00> : vector<8xf32>
    %27 = vector.multi_reduction <add>, %26, %cst_13 [1] : vector<8x8xf32> to vector<8xf32>
    %28 = vector.shape_cast %27 : vector<8xf32> to vector<8x1xf32>
    %29 = tpu.reciprocal %28 {approx = true} : vector<8x1xf32> -> vector<8x1xf32>
    %30 = vector.broadcast %29 : vector<8x1xf32> to vector<8x8xf32>
    %31 = arith.mulf %26, %30 : vector<8x8xf32>
    %cst_14 = arith.constant dense<0.000000e+00> : vector<8x8xf32>
    %32 = tpu.matmul %31, %16, %cst_14 {dimension_numbers = #tpu.dot_dimension_numbers<[1], [0], [0], [1], [0, 0, 1, 1], [], []>} : vector<8x8xf32>, vector<8x8xf32>, vector<8x8xf32> -> vector<8x8xf32>
    %33 = vector.extract_strided_slice %13 {offsets = [0, 8], sizes = [8, 8], strides = [1, 1]} : vector<8x96xf32> to vector<8x8xf32>
    %34 = vector.extract_strided_slice %13 {offsets = [0, 40], sizes = [8, 8], strides = [1, 1]} : vector<8x96xf32> to vector<8x8xf32>
    %35 = vector.extract_strided_slice %13 {offsets = [0, 72], sizes = [8, 8], strides = [1, 1]} : vector<8x96xf32> to vector<8x8xf32>
    %cst_15 = arith.constant dense<0.000000e+00> : vector<8x8xf32>
    %36 = tpu.matmul %33, %34, %cst_15 {dimension_numbers = #tpu.dot_dimension_numbers<[1], [1], [0], [0], [0, 0, 1, 0], [], []>} : vector<8x8xf32>, vector<8x8xf32>, vector<8x8xf32> -> vector<8x8xf32>
    %cst_16 = arith.constant 0.353553385 : f32
    %37 = vector.broadcast %cst_16 : f32 to vector<8x8xf32>
    %38 = arith.mulf %36, %37 : vector<8x8xf32>
    %39 = vector.broadcast %12 : vector<1x8xf32> to vector<8x8xf32>
    %40 = arith.addf %38, %39 : vector<8x8xf32>
    %cst_17 = arith.constant dense<0xFF800000> : vector<8xf32>
    %41 = vector.multi_reduction <maximumf>, %40, %cst_17 [1] : vector<8x8xf32> to vector<8xf32>
    %42 = vector.shape_cast %41 : vector<8xf32> to vector<8x1xf32>
    %43 = vector.broadcast %42 : vector<8x1xf32> to vector<8x8xf32>
    %44 = arith.subf %40, %43 : vector<8x8xf32>
    %45 = math.exp %44 : vector<8x8xf32>
    %cst_18 = arith.constant dense<0.000000e+00> : vector<8xf32>
    %46 = vector.multi_reduction <add>, %45, %cst_18 [1] : vector<8x8xf32> to vector<8xf32>
    %47 = vector.shape_cast %46 : vector<8xf32> to vector<8x1xf32>
    %48 = tpu.reciprocal %47 {approx = true} : vector<8x1xf32> -> vector<8x1xf32>
    %49 = vector.broadcast %48 : vector<8x1xf32> to vector<8x8xf32>
    %50 = arith.mulf %45, %49 : vector<8x8xf32>
    %cst_19 = arith.constant dense<0.000000e+00> : vector<8x8xf32>
    %51 = tpu.matmul %50, %35, %cst_19 {dimension_numbers = #tpu.dot_dimension_numbers<[1], [0], [0], [1], [0, 0, 1, 1], [], []>} : vector<8x8xf32>, vector<8x8xf32>, vector<8x8xf32> -> vector<8x8xf32>
    %52 = vector.extract_strided_slice %13 {offsets = [0, 16], sizes = [8, 8], strides = [1, 1]} : vector<8x96xf32> to vector<8x8xf32>
    %53 = vector.extract_strided_slice %13 {offsets = [0, 48], sizes = [8, 8], strides = [1, 1]} : vector<8x96xf32> to vector<8x8xf32>
    %54 = vector.extract_strided_slice %13 {offsets = [0, 80], sizes = [8, 8], strides = [1, 1]} : vector<8x96xf32> to vector<8x8xf32>
    %cst_20 = arith.constant dense<0.000000e+00> : vector<8x8xf32>
    %55 = tpu.matmul %52, %53, %cst_20 {dimension_numbers = #tpu.dot_dimension_numbers<[1], [1], [0], [0], [0, 0, 1, 0], [], []>} : vector<8x8xf32>, vector<8x8xf32>, vector<8x8xf32> -> vector<8x8xf32>
    %cst_21 = arith.constant 0.353553385 : f32
    %56 = vector.broadcast %cst_21 : f32 to vector<8x8xf32>
    %57 = arith.mulf %55, %56 : vector<8x8xf32>
    %58 = vector.broadcast %12 : vector<1x8xf32> to vector<8x8xf32>
    %59 = arith.addf %57, %58 : vector<8x8xf32>
    %cst_22 = arith.constant dense<0xFF800000> : vector<8xf32>
    %60 = vector.multi_reduction <maximumf>, %59, %cst_22 [1] : vector<8x8xf32> to vector<8xf32>
    %61 = vector.shape_cast %60 : vector<8xf32> to vector<8x1xf32>
    %62 = vector.broadcast %61 : vector<8x1xf32> to vector<8x8xf32>
    %63 = arith.subf %59, %62 : vector<8x8xf32>
    %64 = math.exp %63 : vector<8x8xf32>
    %cst_23 = arith.constant dense<0.000000e+00> : vector<8xf32>
    %65 = vector.multi_reduction <add>, %64, %cst_23 [1] : vector<8x8xf32> to vector<8xf32>
    %66 = vector.shape_cast %65 : vector<8xf32> to vector<8x1xf32>
    %67 = tpu.reciprocal %66 {approx = true} : vector<8x1xf32> -> vector<8x1xf32>
    %68 = vector.broadcast %67 : vector<8x1xf32> to vector<8x8xf32>
    %69 = arith.mulf %64, %68 : vector<8x8xf32>
    %cst_24 = arith.constant dense<0.000000e+00> : vector<8x8xf32>
    %70 = tpu.matmul %69, %54, %cst_24 {dimension_numbers = #tpu.dot_dimension_numbers<[1], [0], [0], [1], [0, 0, 1, 1], [], []>} : vector<8x8xf32>, vector<8x8xf32>, vector<8x8xf32> -> vector<8x8xf32>
    %71 = vector.extract_strided_slice %13 {offsets = [0, 24], sizes = [8, 8], strides = [1, 1]} : vector<8x96xf32> to vector<8x8xf32>
    %72 = vector.extract_strided_slice %13 {offsets = [0, 56], sizes = [8, 8], strides = [1, 1]} : vector<8x96xf32> to vector<8x8xf32>
    %73 = vector.extract_strided_slice %13 {offsets = [0, 88], sizes = [8, 8], strides = [1, 1]} : vector<8x96xf32> to vector<8x8xf32>
    %cst_25 = arith.constant dense<0.000000e+00> : vector<8x8xf32>
    %74 = tpu.matmul %71, %72, %cst_25 {dimension_numbers = #tpu.dot_dimension_numbers<[1], [1], [0], [0], [0, 0, 1, 0], [], []>} : vector<8x8xf32>, vector<8x8xf32>, vector<8x8xf32> -> vector<8x8xf32>
    %cst_26 = arith.constant 0.353553385 : f32
    %75 = vector.broadcast %cst_26 : f32 to vector<8x8xf32>
    %76 = arith.mulf %74, %75 : vector<8x8xf32>
    %77 = vector.broadcast %12 : vector<1x8xf32> to vector<8x8xf32>
    %78 = arith.addf %76, %77 : vector<8x8xf32>
    %cst_27 = arith.constant dense<0xFF800000> : vector<8xf32>
    %79 = vector.multi_reduction <maximumf>, %78, %cst_27 [1] : vector<8x8xf32> to vector<8xf32>
    %80 = vector.shape_cast %79 : vector<8xf32> to vector<8x1xf32>
    %81 = vector.broadcast %80 : vector<8x1xf32> to vector<8x8xf32>
    %82 = arith.subf %78, %81 : vector<8x8xf32>
    %83 = math.exp %82 : vector<8x8xf32>
    %cst_28 = arith.constant dense<0.000000e+00> : vector<8xf32>
    %84 = vector.multi_reduction <add>, %83, %cst_28 [1] : vector<8x8xf32> to vector<8xf32>
    %85 = vector.shape_cast %84 : vector<8xf32> to vector<8x1xf32>
    %86 = tpu.reciprocal %85 {approx = true} : vector<8x1xf32> -> vector<8x1xf32>
    %87 = vector.broadcast %86 : vector<8x1xf32> to vector<8x8xf32>
    %88 = arith.mulf %83, %87 : vector<8x8xf32>
    %cst_29 = arith.constant dense<0.000000e+00> : vector<8x8xf32>
    %89 = tpu.matmul %88, %73, %cst_29 {dimension_numbers = #tpu.dot_dimension_numbers<[1], [0], [0], [1], [0, 0, 1, 1], [], []>} : vector<8x8xf32>, vector<8x8xf32>, vector<8x8xf32> -> vector<8x8xf32>
    %90 = tpu.concatenate %32, %51, %70, %89 in 1 : vector<8x8xf32>, vector<8x8xf32>, vector<8x8xf32>, vector<8x8xf32> -> vector<8x32xf32>
    %c1 = arith.constant 1 : index
    %c0_30 = arith.constant 0 : index
    %91 = vector.load %arg2[%c1, %c0_30] : memref<2x8xf32, #tpu.memory_space<vmem>>, vector<1x8xf32>
    %92 = vector.extract_strided_slice %11 {offsets = [8, 0], sizes = [8, 96], strides = [1, 1]} : vector<16x96xf32> to vector<8x96xf32>
    %93 = vector.extract_strided_slice %92 {offsets = [0, 0], sizes = [8, 8], strides = [1, 1]} : vector<8x96xf32> to vector<8x8xf32>
    %94 = vector.extract_strided_slice %92 {offsets = [0, 32], sizes = [8, 8], strides = [1, 1]} : vector<8x96xf32> to vector<8x8xf32>
    %95 = vector.extract_strided_slice %92 {offsets = [0, 64], sizes = [8, 8], strides = [1, 1]} : vector<8x96xf32> to vector<8x8xf32>
    %cst_31 = arith.constant dense<0.000000e+00> : vector<8x8xf32>
    %96 = tpu.matmul %93, %94, %cst_31 {dimension_numbers = #tpu.dot_dimension_numbers<[1], [1], [0], [0], [0, 0, 1, 0], [], []>} : vector<8x8xf32>, vector<8x8xf32>, vector<8x8xf32> -> vector<8x8xf32>
    %cst_32 = arith.constant 0.353553385 : f32
    %97 = vector.broadcast %cst_32 : f32 to vector<8x8xf32>
    %98 = arith.mulf %96, %97 : vector<8x8xf32>
    %99 = vector.broadcast %91 : vector<1x8xf32> to vector<8x8xf32>
    %100 = arith.addf %98, %99 : vector<8x8xf32>
    %cst_33 = arith.constant dense<0xFF800000> : vector<8xf32>
    %101 = vector.multi_reduction <maximumf>, %100, %cst_33 [1] : vector<8x8xf32> to vector<8xf32>
    %102 = vector.shape_cast %101 : vector<8xf32> to vector<8x1xf32>
    %103 = vector.broadcast %102 : vector<8x1xf32> to vector<8x8xf32>
    %104 = arith.subf %100, %103 : vector<8x8xf32>
    %105 = math.exp %104 : vector<8x8xf32>
    %cst_34 = arith.constant dense<0.000000e+00> : vector<8xf32>
    %106 = vector.multi_reduction <add>, %105, %cst_34 [1] : vector<8x8xf32> to vector<8xf32>
    %107 = vector.shape_cast %106 : vector<8xf32> to vector<8x1xf32>
    %108 = tpu.reciprocal %107 {approx = true} : vector<8x1xf32> -> vector<8x1xf32>
    %109 = vector.broadcast %108 : vector<8x1xf32> to vector<8x8xf32>
    %110 = arith.mulf %105, %109 : vector<8x8xf32>
    %cst_35 = arith.constant dense<0.000000e+00> : vector<8x8xf32>
    %111 = tpu.matmul %110, %95, %cst_35 {dimension_numbers = #tpu.dot_dimension_numbers<[1], [0], [0], [1], [0, 0, 1, 1], [], []>} : vector<8x8xf32>, vector<8x8xf32>, vector<8x8xf32> -> vector<8x8xf32>
    %112 = vector.extract_strided_slice %92 {offsets = [0, 8], sizes = [8, 8], strides = [1, 1]} : vector<8x96xf32> to vector<8x8xf32>
    %113 = vector.extract_strided_slice %92 {offsets = [0, 40], sizes = [8, 8], strides = [1, 1]} : vector<8x96xf32> to vector<8x8xf32>
    %114 = vector.extract_strided_slice %92 {offsets = [0, 72], sizes = [8, 8], strides = [1, 1]} : vector<8x96xf32> to vector<8x8xf32>
    %cst_36 = arith.constant dense<0.000000e+00> : vector<8x8xf32>
    %115 = tpu.matmul %112, %113, %cst_36 {dimension_numbers = #tpu.dot_dimension_numbers<[1], [1], [0], [0], [0, 0, 1, 0], [], []>} : vector<8x8xf32>, vector<8x8xf32>, vector<8x8xf32> -> vector<8x8xf32>
    %cst_37 = arith.constant 0.353553385 : f32
    %116 = vector.broadcast %cst_37 : f32 to vector<8x8xf32>
    %117 = arith.mulf %115, %116 : vector<8x8xf32>
    %118 = vector.broadcast %91 : vector<1x8xf32> to vector<8x8xf32>
    %119 = arith.addf %117, %118 : vector<8x8xf32>
    %cst_38 = arith.constant dense<0xFF800000> : vector<8xf32>
    %120 = vector.multi_reduction <maximumf>, %119, %cst_38 [1] : vector<8x8xf32> to vector<8xf32>
    %121 = vector.shape_cast %120 : vector<8xf32> to vector<8x1xf32>
    %122 = vector.broadcast %121 : vector<8x1xf32> to vector<8x8xf32>
    %123 = arith.subf %119, %122 : vector<8x8xf32>
    %124 = math.exp %123 : vector<8x8xf32>
    %cst_39 = arith.constant dense<0.000000e+00> : vector<8xf32>
    %125 = vector.multi_reduction <add>, %124, %cst_39 [1] : vector<8x8xf32> to vector<8xf32>
    %126 = vector.shape_cast %125 : vector<8xf32> to vector<8x1xf32>
    %127 = tpu.reciprocal %126 {approx = true} : vector<8x1xf32> -> vector<8x1xf32>
    %128 = vector.broadcast %127 : vector<8x1xf32> to vector<8x8xf32>
    %129 = arith.mulf %124, %128 : vector<8x8xf32>
    %cst_40 = arith.constant dense<0.000000e+00> : vector<8x8xf32>
    %130 = tpu.matmul %129, %114, %cst_40 {dimension_numbers = #tpu.dot_dimension_numbers<[1], [0], [0], [1], [0, 0, 1, 1], [], []>} : vector<8x8xf32>, vector<8x8xf32>, vector<8x8xf32> -> vector<8x8xf32>
    %131 = vector.extract_strided_slice %92 {offsets = [0, 16], sizes = [8, 8], strides = [1, 1]} : vector<8x96xf32> to vector<8x8xf32>
    %132 = vector.extract_strided_slice %92 {offsets = [0, 48], sizes = [8, 8], strides = [1, 1]} : vector<8x96xf32> to vector<8x8xf32>
    %133 = vector.extract_strided_slice %92 {offsets = [0, 80], sizes = [8, 8], strides = [1, 1]} : vector<8x96xf32> to vector<8x8xf32>
    %cst_41 = arith.constant dense<0.000000e+00> : vector<8x8xf32>
    %134 = tpu.matmul %131, %132, %cst_41 {dimension_numbers = #tpu.dot_dimension_numbers<[1], [1], [0], [0], [0, 0, 1, 0], [], []>} : vector<8x8xf32>, vector<8x8xf32>, vector<8x8xf32> -> vector<8x8xf32>
    %cst_42 = arith.constant 0.353553385 : f32
    %135 = vector.broadcast %cst_42 : f32 to vector<8x8xf32>
    %136 = arith.mulf %134, %135 : vector<8x8xf32>
    %137 = vector.broadcast %91 : vector<1x8xf32> to vector<8x8xf32>
    %138 = arith.addf %136, %137 : vector<8x8xf32>
    %cst_43 = arith.constant dense<0xFF800000> : vector<8xf32>
    %139 = vector.multi_reduction <maximumf>, %138, %cst_43 [1] : vector<8x8xf32> to vector<8xf32>
    %140 = vector.shape_cast %139 : vector<8xf32> to vector<8x1xf32>
    %141 = vector.broadcast %140 : vector<8x1xf32> to vector<8x8xf32>
    %142 = arith.subf %138, %141 : vector<8x8xf32>
    %143 = math.exp %142 : vector<8x8xf32>
    %cst_44 = arith.constant dense<0.000000e+00> : vector<8xf32>
    %144 = vector.multi_reduction <add>, %143, %cst_44 [1] : vector<8x8xf32> to vector<8xf32>
    %145 = vector.shape_cast %144 : vector<8xf32> to vector<8x1xf32>
    %146 = tpu.reciprocal %145 {approx = true} : vector<8x1xf32> -> vector<8x1xf32>
    %147 = vector.broadcast %146 : vector<8x1xf32> to vector<8x8xf32>
    %148 = arith.mulf %143, %147 : vector<8x8xf32>
    %cst_45 = arith.constant dense<0.000000e+00> : vector<8x8xf32>
    %149 = tpu.matmul %148, %133, %cst_45 {dimension_numbers = #tpu.dot_dimension_numbers<[1], [0], [0], [1], [0, 0, 1, 1], [], []>} : vector<8x8xf32>, vector<8x8xf32>, vector<8x8xf32> -> vector<8x8xf32>
    %150 = vector.extract_strided_slice %92 {offsets = [0, 24], sizes = [8, 8], strides = [1, 1]} : vector<8x96xf32> to vector<8x8xf32>
    %151 = vector.extract_strided_slice %92 {offsets = [0, 56], sizes = [8, 8], strides = [1, 1]} : vector<8x96xf32> to vector<8x8xf32>
    %152 = vector.extract_strided_slice %92 {offsets = [0, 88], sizes = [8, 8], strides = [1, 1]} : vector<8x96xf32> to vector<8x8xf32>
    %cst_46 = arith.constant dense<0.000000e+00> : vector<8x8xf32>
    %153 = tpu.matmul %150, %151, %cst_46 {dimension_numbers = #tpu.dot_dimension_numbers<[1], [1], [0], [0], [0, 0, 1, 0], [], []>} : vector<8x8xf32>, vector<8x8xf32>, vector<8x8xf32> -> vector<8x8xf32>
    %cst_47 = arith.constant 0.353553385 : f32
    %154 = vector.broadcast %cst_47 : f32 to vector<8x8xf32>
    %155 = arith.mulf %153, %154 : vector<8x8xf32>
    %156 = vector.broadcast %91 : vector<1x8xf32> to vector<8x8xf32>
    %157 = arith.addf %155, %156 : vector<8x8xf32>
    %cst_48 = arith.constant dense<0xFF800000> : vector<8xf32>
    %158 = vector.multi_reduction <maximumf>, %157, %cst_48 [1] : vector<8x8xf32> to vector<8xf32>
    %159 = vector.shape_cast %158 : vector<8xf32> to vector<8x1xf32>
    %160 = vector.broadcast %159 : vector<8x1xf32> to vector<8x8xf32>
    %161 = arith.subf %157, %160 : vector<8x8xf32>
    %162 = math.exp %161 : vector<8x8xf32>
    %cst_49 = arith.constant dense<0.000000e+00> : vector<8xf32>
    %163 = vector.multi_reduction <add>, %162, %cst_49 [1] : vector<8x8xf32> to vector<8xf32>
    %164 = vector.shape_cast %163 : vector<8xf32> to vector<8x1xf32>
    %165 = tpu.reciprocal %164 {approx = true} : vector<8x1xf32> -> vector<8x1xf32>
    %166 = vector.broadcast %165 : vector<8x1xf32> to vector<8x8xf32>
    %167 = arith.mulf %162, %166 : vector<8x8xf32>
    %cst_50 = arith.constant dense<0.000000e+00> : vector<8x8xf32>
    %168 = tpu.matmul %167, %152, %cst_50 {dimension_numbers = #tpu.dot_dimension_numbers<[1], [0], [0], [1], [0, 0, 1, 1], [], []>} : vector<8x8xf32>, vector<8x8xf32>, vector<8x8xf32> -> vector<8x8xf32>
    %169 = tpu.concatenate %111, %130, %149, %168 in 1 : vector<8x8xf32>, vector<8x8xf32>, vector<8x8xf32>, vector<8x8xf32> -> vector<8x32xf32>
    %170 = tpu.concatenate %90, %169 in 0 : vector<8x32xf32>, vector<8x32xf32> -> vector<16x32xf32>
    %171 = arith.truncf %170 : vector<16x32xf32> to vector<16x32xbf16>
    %c0_51 = arith.constant 0 : index
    %c0_52 = arith.constant 0 : index
    %c0_53 = arith.constant 0 : index
    %172 = vector.load %arg7[%c0_51, %c0_52, %c0_53] : memref<1x32x32xbf16, #tpu.memory_space<vmem>>, vector<1x32x32xbf16>
    %173 = vector.shape_cast %172 : vector<1x32x32xbf16> to vector<32x32xbf16>
    %cst_54 = arith.constant dense<0.000000e+00> : vector<16x32xf32>
    %174 = tpu.matmul %171, %173, %cst_54 {dimension_numbers = #tpu.dot_dimension_numbers<[1], [0], [0], [1], [0, 0, 1, 1], [], []>} : vector<16x32xbf16>, vector<32x32xbf16>, vector<16x32xf32> -> vector<16x32xf32>
    %c0_55 = arith.constant 0 : index
    %c0_56 = arith.constant 0 : index
    %c0_57 = arith.constant 0 : index
    %175 = vector.load %arg8[%c0_55, %c0_56, %c0_57] : memref<1x1x32xf32, #tpu.memory_space<vmem>>, vector<1x1x32xf32>
    %176 = vector.shape_cast %175 : vector<1x1x32xf32> to vector<1x32xf32>
    %177 = vector.broadcast %176 : vector<1x32xf32> to vector<16x32xf32>
    %178 = arith.addf %174, %177 : vector<16x32xf32>
    %179 = arith.addf %3, %178 : vector<16x32xf32>
    %c0_58 = arith.constant 0 : index
    %c0_59 = arith.constant 0 : index
    %c0_60 = arith.constant 0 : index
    %180 = vector.load %arg9[%c0_58, %c0_59, %c0_60] : memref<1x1x32xf32, #tpu.memory_space<vmem>>, vector<1x1x32xf32>
    %181 = vector.shape_cast %180 : vector<1x1x32xf32> to vector<1x32xf32>
    %c0_61 = arith.constant 0 : index
    %c0_62 = arith.constant 0 : index
    %c0_63 = arith.constant 0 : index
    %182 = vector.load %arg10[%c0_61, %c0_62, %c0_63] : memref<1x1x32xf32, #tpu.memory_space<vmem>>, vector<1x1x32xf32>
    %183 = vector.shape_cast %182 : vector<1x1x32xf32> to vector<1x32xf32>
    %cst_64 = arith.constant dense<0.000000e+00> : vector<16xf32>
    %184 = vector.multi_reduction <add>, %179, %cst_64 [1] : vector<16x32xf32> to vector<16xf32>
    %185 = vector.shape_cast %184 : vector<16xf32> to vector<16x1xf32>
    %cst_65 = arith.constant 3.200000e+01 : f32
    %186 = vector.broadcast %cst_65 : f32 to vector<16x1xf32>
    %187 = arith.divf %185, %186 : vector<16x1xf32>
    %188 = vector.broadcast %187 : vector<16x1xf32> to vector<16x32xf32>
    %189 = arith.subf %179, %188 : vector<16x32xf32>
    %190 = arith.mulf %189, %189 : vector<16x32xf32>
    %cst_66 = arith.constant dense<0.000000e+00> : vector<16xf32>
    %191 = vector.multi_reduction <add>, %190, %cst_66 [1] : vector<16x32xf32> to vector<16xf32>
    %192 = vector.shape_cast %191 : vector<16xf32> to vector<16x1xf32>
    %cst_67 = arith.constant 3.200000e+01 : f32
    %193 = vector.broadcast %cst_67 : f32 to vector<16x1xf32>
    %194 = arith.divf %192, %193 : vector<16x1xf32>
    %195 = vector.broadcast %187 : vector<16x1xf32> to vector<16x32xf32>
    %196 = arith.subf %179, %195 : vector<16x32xf32>
    %cst_68 = arith.constant 9.99999974E-6 : f32
    %197 = vector.broadcast %cst_68 : f32 to vector<16x1xf32>
    %198 = arith.addf %194, %197 : vector<16x1xf32>
    %199 = math.rsqrt %198 : vector<16x1xf32>
    %200 = vector.broadcast %199 : vector<16x1xf32> to vector<16x32xf32>
    %201 = arith.mulf %196, %200 : vector<16x32xf32>
    %202 = vector.broadcast %181 : vector<1x32xf32> to vector<16x32xf32>
    %203 = arith.mulf %201, %202 : vector<16x32xf32>
    %204 = vector.broadcast %183 : vector<1x32xf32> to vector<16x32xf32>
    %205 = arith.addf %203, %204 : vector<16x32xf32>
    %206 = arith.truncf %205 : vector<16x32xf32> to vector<16x32xbf16>
    %c0_69 = arith.constant 0 : index
    %c0_70 = arith.constant 0 : index
    %c0_71 = arith.constant 0 : index
    %207 = vector.load %arg11[%c0_69, %c0_70, %c0_71] : memref<1x32x64xbf16, #tpu.memory_space<vmem>>, vector<1x32x64xbf16>
    %208 = vector.shape_cast %207 : vector<1x32x64xbf16> to vector<32x64xbf16>
    %cst_72 = arith.constant dense<0.000000e+00> : vector<16x64xf32>
    %209 = tpu.matmul %206, %208, %cst_72 {dimension_numbers = #tpu.dot_dimension_numbers<[1], [0], [0], [1], [0, 0, 1, 1], [], []>} : vector<16x32xbf16>, vector<32x64xbf16>, vector<16x64xf32> -> vector<16x64xf32>
    %c0_73 = arith.constant 0 : index
    %c0_74 = arith.constant 0 : index
    %c0_75 = arith.constant 0 : index
    %210 = vector.load %arg12[%c0_73, %c0_74, %c0_75] : memref<1x1x64xf32, #tpu.memory_space<vmem>>, vector<1x1x64xf32>
    %211 = vector.shape_cast %210 : vector<1x1x64xf32> to vector<1x64xf32>
    %212 = vector.broadcast %211 : vector<1x64xf32> to vector<16x64xf32>
    %213 = arith.addf %209, %212 : vector<16x64xf32>
    %214 = arith.mulf %213, %213 : vector<16x64xf32>
    %215 = arith.mulf %213, %214 : vector<16x64xf32>
    %cst_76 = arith.constant 4.471500e-02 : f32
    %216 = vector.broadcast %cst_76 : f32 to vector<16x64xf32>
    %217 = arith.mulf %216, %215 : vector<16x64xf32>
    %218 = arith.addf %213, %217 : vector<16x64xf32>
    %cst_77 = arith.constant 0.797884583 : f32
    %219 = vector.broadcast %cst_77 : f32 to vector<16x64xf32>
    %220 = arith.mulf %219, %218 : vector<16x64xf32>
    %221 = math.tanh %220 : vector<16x64xf32>
    %cst_78 = arith.constant 1.000000e+00 : f32
    %222 = vector.broadcast %cst_78 : f32 to vector<16x64xf32>
    %223 = arith.addf %222, %221 : vector<16x64xf32>
    %cst_79 = arith.constant 5.000000e-01 : f32
    %224 = vector.broadcast %cst_79 : f32 to vector<16x64xf32>
    %225 = arith.mulf %224, %223 : vector<16x64xf32>
    %226 = arith.mulf %213, %225 : vector<16x64xf32>
    %227 = arith.truncf %226 : vector<16x64xf32> to vector<16x64xbf16>
    %c0_80 = arith.constant 0 : index
    %c0_81 = arith.constant 0 : index
    %c0_82 = arith.constant 0 : index
    %228 = vector.load %arg13[%c0_80, %c0_81, %c0_82] : memref<1x64x32xbf16, #tpu.memory_space<vmem>>, vector<1x64x32xbf16>
    %229 = vector.shape_cast %228 : vector<1x64x32xbf16> to vector<64x32xbf16>
    %cst_83 = arith.constant dense<0.000000e+00> : vector<16x32xf32>
    %230 = tpu.matmul %227, %229, %cst_83 {dimension_numbers = #tpu.dot_dimension_numbers<[1], [0], [0], [1], [0, 0, 1, 1], [], []>} : vector<16x64xbf16>, vector<64x32xbf16>, vector<16x32xf32> -> vector<16x32xf32>
    %c0_84 = arith.constant 0 : index
    %c0_85 = arith.constant 0 : index
    %c0_86 = arith.constant 0 : index
    %231 = vector.load %arg14[%c0_84, %c0_85, %c0_86] : memref<1x1x32xf32, #tpu.memory_space<vmem>>, vector<1x1x32xf32>
    %232 = vector.shape_cast %231 : vector<1x1x32xf32> to vector<1x32xf32>
    %233 = vector.broadcast %232 : vector<1x32xf32> to vector<16x32xf32>
    %234 = arith.addf %230, %233 : vector<16x32xf32>
    %235 = arith.addf %205, %234 : vector<16x32xf32>
    %c0_87 = arith.constant 0 : index
    %c0_88 = arith.constant 0 : index
    %c0_89 = arith.constant 0 : index
    %236 = vector.load %arg15[%c0_87, %c0_88, %c0_89] : memref<1x1x32xf32, #tpu.memory_space<vmem>>, vector<1x1x32xf32>
    %237 = vector.shape_cast %236 : vector<1x1x32xf32> to vector<1x32xf32>
    %c0_90 = arith.constant 0 : index
    %c0_91 = arith.constant 0 : index
    %c0_92 = arith.constant 0 : index
    %238 = vector.load %arg16[%c0_90, %c0_91, %c0_92] : memref<1x1x32xf32, #tpu.memory_space<vmem>>, vector<1x1x32xf32>
    %239 = vector.shape_cast %238 : vector<1x1x32xf32> to vector<1x32xf32>
    %cst_93 = arith.constant dense<0.000000e+00> : vector<16xf32>
    %240 = vector.multi_reduction <add>, %235, %cst_93 [1] : vector<16x32xf32> to vector<16xf32>
    %241 = vector.shape_cast %240 : vector<16xf32> to vector<16x1xf32>
    %cst_94 = arith.constant 3.200000e+01 : f32
    %242 = vector.broadcast %cst_94 : f32 to vector<16x1xf32>
    %243 = arith.divf %241, %242 : vector<16x1xf32>
    %244 = vector.broadcast %243 : vector<16x1xf32> to vector<16x32xf32>
    %245 = arith.subf %235, %244 : vector<16x32xf32>
    %246 = arith.mulf %245, %245 : vector<16x32xf32>
    %cst_95 = arith.constant dense<0.000000e+00> : vector<16xf32>
    %247 = vector.multi_reduction <add>, %246, %cst_95 [1] : vector<16x32xf32> to vector<16xf32>
    %248 = vector.shape_cast %247 : vector<16xf32> to vector<16x1xf32>
    %cst_96 = arith.constant 3.200000e+01 : f32
    %249 = vector.broadcast %cst_96 : f32 to vector<16x1xf32>
    %250 = arith.divf %248, %249 : vector<16x1xf32>
    %251 = vector.broadcast %243 : vector<16x1xf32> to vector<16x32xf32>
    %252 = arith.subf %235, %251 : vector<16x32xf32>
    %cst_97 = arith.constant 9.99999974E-6 : f32
    %253 = vector.broadcast %cst_97 : f32 to vector<16x1xf32>
    %254 = arith.addf %250, %253 : vector<16x1xf32>
    %255 = math.rsqrt %254 : vector<16x1xf32>
    %256 = vector.broadcast %255 : vector<16x1xf32> to vector<16x32xf32>
    %257 = arith.mulf %252, %256 : vector<16x32xf32>
    %258 = vector.broadcast %237 : vector<1x32xf32> to vector<16x32xf32>
    %259 = arith.mulf %257, %258 : vector<16x32xf32>
    %260 = vector.broadcast %239 : vector<1x32xf32> to vector<16x32xf32>
    %261 = arith.addf %259, %260 : vector<16x32xf32>
    %c0_98 = arith.constant 0 : index
    %c0_99 = arith.constant 0 : index
    %262 = vector.load %arg18[%c0_98, %c0_99] : memref<16x32xf32, #tpu.memory_space<vmem>>, vector<16x32xf32>
    tpu.vector_store %arg18[%c0_98, %c0_99], %261 {strides = array<i32>} : memref<16x32xf32, #tpu.memory_space<vmem>>, vector<16x32xf32>,
    %c1_i32 = arith.constant 1 : i32
    %263 = arith.cmpi eq, %arg0, %c1_i32 : i32
    %264 = arith.extui %263 : i1 to i32
    %c0_i32_100 = arith.constant 0 : i32
    %265 = arith.cmpi ne, %264, %c0_i32_100 : i32
    scf.if %265 {
      %c0_101 = arith.constant 0 : index
      %c0_102 = arith.constant 0 : index
      %266 = vector.load %arg17[%c0_101, %c0_102] : memref<16x32xf32, #tpu.memory_space<vmem>>, vector<16x32xf32>
      tpu.vector_store %arg17[%c0_101, %c0_102], %261 {strides = array<i32>} : memref<16x32xf32, #tpu.memory_space<vmem>>, vector<16x32xf32>,
    } else {
    }
    return
  }
  func.func @transform_0(%arg0: i32) -> (i32, i32) {
    %c0_i32 = arith.constant 0 : i32
    %c0_i32_0 = arith.constant 0 : i32
    %c0_i32_1 = arith.constant 0 : i32
    return %c0_i32, %c0_i32_0 : i32, i32
  }
  func.func @transform_1(%arg0: i32) -> (i32, i32) {
    %c0_i32 = arith.constant 0 : i32
    %c0_i32_0 = arith.constant 0 : i32
    %c0_i32_1 = arith.constant 0 : i32
    return %c0_i32, %c0_i32_0 : i32, i32
  }
  func.func @transform_2(%arg0: i32) -> (i32, i32) {
    %c0_i32 = arith.constant 0 : i32
    %c0_i32_0 = arith.constant 0 : i32
    %c0_i32_1 = arith.constant 0 : i32
    return %c0_i32, %c0_i32_0 : i32, i32
  }
  func.func @transform_3(%arg0: i32) -> (i32, i32) {
    %c0_i32 = arith.constant 0 : i32
    %c0_i32_0 = arith.constant 0 : i32
    %c0_i32_1 = arith.constant 0 : i32
    return %c0_i32, %c0_i32_0 : i32, i32
  }
  func.func @transform_4(%arg0: i32) -> (i32, i32, i32) {
    %c0_i32 = arith.constant 0 : i32
    %c0_i32_0 = arith.constant 0 : i32
    %c0_i32_1 = arith.constant 0 : i32
    return %arg0, %c0_i32, %c0_i32_0 : i32, i32, i32
  }
  func.func @transform_5(%arg0: i32) -> (i32, i32, i32) {
    %c0_i32 = arith.constant 0 : i32
    %c0_i32_0 = arith.constant 0 : i32
    %c0_i32_1 = arith.constant 0 : i32
    return %arg0, %c0_i32, %c0_i32_0 : i32, i32, i32
  }
  func.func @transform_6(%arg0: i32) -> (i32, i32, i32) {
    %c0_i32 = arith.constant 0 : i32
    %c0_i32_0 = arith.constant 0 : i32
    %c0_i32_1 = arith.constant 0 : i32
    return %arg0, %c0_i32, %c0_i32_0 : i32, i32, i32
  }
  func.func @transform_7(%arg0: i32) -> (i32, i32, i32) {
    %c0_i32 = arith.constant 0 : i32
    %c0_i32_0 = arith.constant 0 : i32
    %c0_i32_1 = arith.constant 0 : i32
    return %arg0, %c0_i32, %c0_i32_0 : i32, i32, i32
  }
  func.func @transform_8(%arg0: i32) -> (i32, i32, i32) {
    %c0_i32 = arith.constant 0 : i32
    %c0_i32_0 = arith.constant 0 : i32
    %c0_i32_1 = arith.constant 0 : i32
    return %arg0, %c0_i32, %c0_i32_0 : i32, i32, i32
  }
  func.func @transform_9(%arg0: i32) -> (i32, i32, i32) {
    %c0_i32 = arith.constant 0 : i32
    %c0_i32_0 = arith.constant 0 : i32
    %c0_i32_1 = arith.constant 0 : i32
    return %arg0, %c0_i32, %c0_i32_0 : i32, i32, i32
  }
  func.func @transform_10(%arg0: i32) -> (i32, i32, i32) {
    %c0_i32 = arith.constant 0 : i32
    %c0_i32_0 = arith.constant 0 : i32
    %c0_i32_1 = arith.constant 0 : i32
    return %arg0, %c0_i32, %c0_i32_0 : i32, i32, i32
  }
  func.func @transform_11(%arg0: i32) -> (i32, i32, i32) {
    %c0_i32 = arith.constant 0 : i32
    %c0_i32_0 = arith.constant 0 : i32
    %c0_i32_1 = arith.constant 0 : i32
    return %arg0, %c0_i32, %c0_i32_0 : i32, i32, i32
  }
  func.func @transform_12(%arg0: i32) -> (i32, i32, i32) {
    %c0_i32 = arith.constant 0 : i32
    %c0_i32_0 = arith.constant 0 : i32
    %c0_i32_1 = arith.constant 0 : i32
    return %arg0, %c0_i32, %c0_i32_0 : i32, i32, i32
  }
  func.func @transform_13(%arg0: i32) -> (i32, i32, i32) {
    %c0_i32 = arith.constant 0 : i32
    %c0_i32_0 = arith.constant 0 : i32
    %c0_i32_1 = arith.constant 0 : i32
    return %arg0, %c0_i32, %c0_i32_0 : i32, i32, i32
  }
  func.func @transform_14(%arg0: i32) -> (i32, i32, i32) {
    %c0_i32 = arith.constant 0 : i32
    %c0_i32_0 = arith.constant 0 : i32
    %c0_i32_1 = arith.constant 0 : i32
    return %arg0, %c0_i32, %c0_i32_0 : i32, i32, i32
  }
  func.func @transform_15(%arg0: i32) -> (i32, i32, i32) {
    %c0_i32 = arith.constant 0 : i32
    %c0_i32_0 = arith.constant 0 : i32
    %c0_i32_1 = arith.constant 0 : i32
    return %arg0, %c0_i32, %c0_i32_0 : i32, i32, i32
  }
  func.func @transform_16(%arg0: i32) -> (i32, i32) {
    %c0_i32 = arith.constant 0 : i32
    %c0_i32_0 = arith.constant 0 : i32
    %c0_i32_1 = arith.constant 0 : i32
    return %c0_i32, %c0_i32_0 : i32, i32
  }
}

</mosaic_0001>

<llo_original>
// kernel: bert_classifier_forward.3
$region0: #{bert_classifier_forward.3}
  #allocation0 [shape = 'u32[]', space=smem, size = 0x4, offset = 0x4, fixed_abs, tag = 'smem constant byte address 0x4 - core index']
  #allocation1 [shape = 'u32[144,128]{1,0:T(1,128)}', space=vmem, size = 0x12000, scoped, tag = 'internal scratch']
  #allocation2 [shape = 'f32[1,1]{1,0:T(1,128)S(1)}', space=vmem, size = 0x200, scoped, tag = 'scoped memory for bert_classifier_forward.3']
  %s0 = inlined_call_operand.vmem [shape: f32[16,32], index: 0, kind: input, shape index: {}]
  %s1 = inlined_call_operand.vmem [shape: f32[32,32], index: 1, kind: input, shape index: {}]
  %s2 = inlined_call_operand.vmem [shape: f32[1,32], index: 2, kind: input, shape index: {}]
  %s3 = inlined_call_operand.vmem [shape: f32[32,1], index: 3, kind: input, shape index: {}]
  %s4 = inlined_call_operand.<no memory space> [shape: f32[1,1], index: 4, kind: input, shape index: {}]
  %s5 = inlined_call_operand.vmem [shape: f32[2,1], index: 5, kind: output, shape index: {}]
  %s6 = sld [smem:[#allocation0]]
  $region30: #{bert_classifier_forward.3} parent=0
    _
  %s8 = ssub.s32 1, %s6
  %s9 = scalar_select 0, %s8, %s6
  %v10 = vstv %s4
  %11 = vst [vmem:[#allocation2] sm:$0x1] %v10
  // Predicated region
  $region2: #{bert_classifier_forward.3} parent=0 // pred_check
    _
  $region3: #{bert_classifier_forward.3} parent=0 // pred_check_branch
    %13 = sbr.rel (0) target = $region5
  $region4: #{bert_classifier_forward.3} parent=0 // pred_region
    _
  $region5: #{bert_classifier_forward.3} parent=0 // pred_fallthru
    _
  // Predicated region
  $region6: #{bert_classifier_forward.3} parent=0 // pred_check
    _
  $region7: #{bert_classifier_forward.3} parent=0 // pred_check_branch
    %15 = sbr.rel (0) target = $region9
  $region8: #{bert_classifier_forward.3} parent=0 // pred_region
    _
  $region9: #{bert_classifier_forward.3} parent=0 // pred_fallthru
    _
  // Predicated region
  $region10: #{bert_classifier_forward.3} parent=0 // pred_check
    _
  $region11: #{bert_classifier_forward.3} parent=0 // pred_check_branch
    %17 = sbr.rel (0) target = $region13
  $region12: #{bert_classifier_forward.3} parent=0 // pred_region
    _
  $region13: #{bert_classifier_forward.3} parent=0 // pred_fallthru
    _
  // Predicated region
  $region14: #{bert_classifier_forward.3} parent=0 // pred_check
    _
  $region15: #{bert_classifier_forward.3} parent=0 // pred_check_branch
    %19 = sbr.rel (0) target = $region17
  $region16: #{bert_classifier_forward.3} parent=0 // pred_region
    _
  $region17: #{bert_classifier_forward.3} parent=0 // pred_fallthru
    _
  // Predicated region
  $region18: #{bert_classifier_forward.3} parent=0 // pred_check
    _
  $region19: #{bert_classifier_forward.3} parent=0 // pred_check_branch
    %21 = sbr.rel (0) target = $region21
  $region20: #{bert_classifier_forward.3} parent=0 // pred_region
    _
  $region21: #{bert_classifier_forward.3} parent=0 // pred_fallthru
    _
  %v22 = vld [vmem:[%s0] sm:$0x1]
  %v23 = vld [vmem:[%s0 + $0x8] sm:$0x1]
  %v25 = vrot.slane %v23, 7
  %vm27 = vcmask 1040384
  %v28 = vsel %vm27, %v22, %v25
  %v29 = vld [vmem:[%s1] sm:$0xff]
  %v30 = vld [vmem:[%s1 + $0x8] sm:$0xff]
  %v31 = vld [vmem:[%s1 + $0x10] sm:$0xff]
  %v32 = vld [vmem:[%s1 + $0x18] sm:$0xff]
  %v33 = vld [vmem:[%s2] sm:$0x1]
  %v35 = vlaneseq
  %v36 = vshrl.u32 %v35, 7
  %v37 = vsub.s32 0, %v36
  %v38 = vrot.slane %v33, %v37
  %vm40 = vcmask 261120
  %v42 = vsel %vm40, %v28, 0
  %44 = vmatprep.subr.mxu0 0.0
  %45 = vmatpush1.msra.mxu0 %v29
  %46 = vmatprep.subr.mxu0 0.0
  %47 = vmatpush1.msra.mxu0 %v30
  %48 = vmatprep.subr.mxu0 0.0
  %49 = vmatpush1.msra.mxu0 %v31
  %50 = vmatprep.subr.mxu0 0.0
  %51 = vmatpush1.msra.mxu0 %v32
  %52 = vmatprep.subr.mxu0 0.0
  %53 = vmatpush1.msra.mxu0 0.0
  %54 = vmatprep.subr.mxu0 0.0
  %55 = vmatpush1.msra.mxu0 0.0
  %56 = vmatprep.subr.mxu0 0.0
  %57 = vmatpush1.msra.mxu0 0.0
  %58 = vmatprep.subr.mxu0 0.0
  %59 = vmatpush1.msra.mxu0 0.0
  %60 = vmatprep.subr.mxu0 0.0
  %61 = vmatpush1.msra.mxu0 0.0
  %62 = vmatprep.subr.mxu0 0.0
  %63 = vmatpush1.msra.mxu0 0.0
  %64 = vmatprep.subr.mxu0 0.0
  %65 = vmatpush1.msra.mxu0 0.0
  %66 = vmatprep.subr.mxu0 0.0
  %67 = vmatpush1.msra.mxu0 0.0
  %68 = vmatprep.subr.mxu0 0.0
  %69 = vmatpush1.msra.mxu0 0.0
  %70 = vmatprep.subr.mxu0 0.0
  %71 = vmatpush1.msra.mxu0 0.0
  %72 = vmatprep.subr.mxu0 0.0
  %73 = vmatpush1.msra.mxu0 0.0
  %74 = vmatprep.subr.mxu0 0.0
  %75 = vmatpush1.msra.mxu0 0.0
  %76 = vmatprep.subr.mxu0 0.0
  %77 = vmatpush1.msra.mxu0 0.0
  %78 = vmatprep.subr.mxu0 0.0
  %79 = vmatpush1.msra.mxu0 0.0
  %80 = vmatprep.subr.mxu0 0.0
  %81 = vmatpush1.msra.mxu0 0.0
  %82 = vmatprep.subr.mxu0 0.0
  %83 = vmatpush1.msra.mxu0 0.0
  %84 = vmatprep.subr.mxu0 0.0
  %85 = vmatpush1.msra.mxu0 0.0
  %86 = vmatprep.subr.mxu0 0.0
  %87 = vmatpush1.msra.mxu0 0.0
  %88 = vmatprep.subr.mxu0 0.0
  %89 = vmatpush1.msra.mxu0 0.0
  %90 = vmatprep.subr.mxu0 0.0
  %91 = vmatpush1.msra.mxu0 0.0
  %92 = vmatprep.subr.mxu0 0.0
  %93 = vmatpush1.msra.mxu0 0.0
  %94 = vmatprep.subr.mxu0 0.0
  %95 = vmatpush1.msra.mxu0 0.0
  %96 = vmatprep.subr.mxu0 0.0
  %97 = vmatpush1.msra.mxu0 0.0
  %98 = vmatprep.subr.mxu0 0.0
  %99 = vmatpush1.msra.mxu0 0.0
  %100 = vmatprep.subr.mxu0 0.0
  %101 = vmatpush1.msra.mxu0 0.0
  %102 = vmatprep.subr.mxu0 0.0
  %103 = vmatpush1.msra.mxu0 0.0
  %104 = vmatprep.subr.mxu0 0.0
  %105 = vmatpush1.msra.mxu0 0.0
  %106 = vmatprep.subr.mxu0 0.0
  %107 = vmatpush1.msra.mxu0 0.0
  %108 = vmatprep.mubr.f32.mxu0 0.0
  %109 = vmatmul.mubr.f32.gmra.mrb[0].mxu0 %v42
  %v110 = vpop.f32.mrb[0].mxu0
  %v111 = vadd.f32 %v38, %v110
  %v112 = vpop.f32.mrb[0].mxu0
  %113 = vdwg.mxu0
  %v114 = vtanh.pop %v111
  %v115 = vld [vmem:[%s3] sm:$0xff]
  %v116 = vld [vmem:[%s3 + $0x8] sm:$0xff]
  %v117 = vld [vmem:[%s3 + $0x10] sm:$0xff]
  %v118 = vld [vmem:[%s3 + $0x18] sm:$0xff]
  %v119 = vld [vmem:[#allocation2] sm:$0x1]
  %v121 = vlaneseq
  %v122 = vshrl.u32 %v121, 7
  %v123 = vsub.s32 0, %v122
  %v124 = vrot.slane %v119, %v123
  %v127 = vsel %vm40, %v114, 0
  %129 = vmatprep.subr.mxu0 0.0
  %130 = vmatpush1.msra.mxu0 %v115
  %131 = vmatprep.subr.mxu0 0.0
  %132 = vmatpush1.msra.mxu0 %v116
  %133 = vmatprep.subr.mxu0 0.0
  %134 = vmatpush1.msra.mxu0 %v117
  %135 = vmatprep.subr.mxu0 0.0
  %136 = vmatpush1.msra.mxu0 %v118
  %137 = vmatprep.subr.mxu0 0.0
  %138 = vmatpush1.msra.mxu0 0.0
  %139 = vmatprep.subr.mxu0 0.0
  %140 = vmatpush1.msra.mxu0 0.0
  %141 = vmatprep.subr.mxu0 0.0
  %142 = vmatpush1.msra.mxu0 0.0
  %143 = vmatprep.subr.mxu0 0.0
  %144 = vmatpush1.msra.mxu0 0.0
  %145 = vmatprep.subr.mxu0 0.0
  %146 = vmatpush1.msra.mxu0 0.0
  %147 = vmatprep.subr.mxu0 0.0
  %148 = vmatpush1.msra.mxu0 0.0
  %149 = vmatprep.subr.mxu0 0.0
  %150 = vmatpush1.msra.mxu0 0.0
  %151 = vmatprep.subr.mxu0 0.0
  %152 = vmatpush1.msra.mxu0 0.0
  %153 = vmatprep.subr.mxu0 0.0
  %154 = vmatpush1.msra.mxu0 0.0
  %155 = vmatprep.subr.mxu0 0.0
  %156 = vmatpush1.msra.mxu0 0.0
  %157 = vmatprep.subr.mxu0 0.0
  %158 = vmatpush1.msra.mxu0 0.0
  %159 = vmatprep.subr.mxu0 0.0
  %160 = vmatpush1.msra.mxu0 0.0
  %161 = vmatprep.subr.mxu0 0.0
  %162 = vmatpush1.msra.mxu0 0.0
  %163 = vmatprep.subr.mxu0 0.0
  %164 = vmatpush1.msra.mxu0 0.0
  %165 = vmatprep.subr.mxu0 0.0
  %166 = vmatpush1.msra.mxu0 0.0
  %167 = vmatprep.subr.mxu0 0.0
  %168 = vmatpush1.msra.mxu0 0.0
  %169 = vmatprep.subr.mxu0 0.0
  %170 = vmatpush1.msra.mxu0 0.0
  %171 = vmatprep.subr.mxu0 0.0
  %172 = vmatpush1.msra.mxu0 0.0
  %173 = vmatprep.subr.mxu0 0.0
  %174 = vmatpush1.msra.mxu0 0.0
  %175 = vmatprep.subr.mxu0 0.0
  %176 = vmatpush1.msra.mxu0 0.0
  %177 = vmatprep.subr.mxu0 0.0
  %178 = vmatpush1.msra.mxu0 0.0
  %179 = vmatprep.subr.mxu0 0.0
  %180 = vmatpush1.msra.mxu0 0.0
  %181 = vmatprep.subr.mxu0 0.0
  %182 = vmatpush1.msra.mxu0 0.0
  %183 = vmatprep.subr.mxu0 0.0
  %184 = vmatpush1.msra.mxu0 0.0
  %185 = vmatprep.subr.mxu0 0.0
  %186 = vmatpush1.msra.mxu0 0.0
  %187 = vmatprep.subr.mxu0 0.0
  %188 = vmatpush1.msra.mxu0 0.0
  %189 = vmatprep.subr.mxu0 0.0
  %190 = vmatpush1.msra.mxu0 0.0
  %191 = vmatprep.subr.mxu0 0.0
  %192 = vmatpush1.msra.mxu0 0.0
  %193 = vmatprep.mubr.f32.mxu0 0.0
  %194 = vmatmul.mubr.f32.gmra.mrb[0].mxu0 %v127
  %v195 = vpop.f32.mrb[0].mxu0
  %v196 = vadd.f32 %v124, %v195
  %v197 = vpop.f32.mrb[0].mxu0
  %198 = vdwg.mxu0
  %vm199 = vcmask 1024
  %200 = vst.msk [vmem:[%s5] sm:$0x3] %vm199, %v196
  // Predicated region
  $region22: #{bert_classifier_forward.3} parent=0 // pred_check
    _
  $region23: #{bert_classifier_forward.3} parent=0 // pred_check_branch
    %202 = sbr.rel (0) target = $region25
  $region24: #{bert_classifier_forward.3} parent=0 // pred_region
    _
  $region25: #{bert_classifier_forward.3} parent=0 // pred_fallthru
    _
  // Predicated region
  $region26: #{bert_classifier_forward.3} parent=0 // pred_check
    _
  $region27: #{bert_classifier_forward.3} parent=0 // pred_check_branch
    %204 = sbr.rel (0) target = $region29
  $region28: #{bert_classifier_forward.3} parent=0 // pred_region
    _
  $region29: #{bert_classifier_forward.3} parent=0 // pred_fallthru
    _

// kernel: bert_classifier_forward.2
$region0: #{bert_classifier_forward.2}
  #allocation0 [shape = 'u32[]', space=smem, size = 0x4, offset = 0x4, fixed_abs, tag = 'smem constant byte address 0x4 - core index']
  #allocation1 [shape = 'u32[144,128]{1,0:T(1,128)}', space=vmem, size = 0x12000, scoped, tag = 'internal scratch']
  #allocation2 [shape = 'f32[16,32]{1,0:T(8,128)}', space=vmem, size = 0x2000, scoped, tag = 'scratch operand']
  %s0 = inlined_call_operand.vmem [shape: f32[16,32], index: 0, kind: input, shape index: {}]
  %s1 = inlined_call_operand.vmem [shape: f32[2,8], index: 1, kind: input, shape index: {}]
  %s2 = inlined_call_operand.vmem [shape: f32[1,32], index: 2, kind: input, shape index: {}]
  %s3 = inlined_call_operand.vmem [shape: f32[1,32], index: 3, kind: input, shape index: {}]
  %s4 = inlined_call_operand.vmem [shape: bf16[2,32,96], index: 4, kind: input, shape index: {}]
  %s5 = inlined_call_operand.vmem [shape: f32[2,1,96], index: 5, kind: input, shape index: {}]
  %s6 = inlined_call_operand.vmem [shape: bf16[2,32,32], index: 6, kind: input, shape index: {}]
  %s7 = inlined_call_operand.vmem [shape: f32[2,1,32], index: 7, kind: input, shape index: {}]
  %s8 = inlined_call_operand.vmem [shape: f32[2,1,32], index: 8, kind: input, shape index: {}]
  %s9 = inlined_call_operand.vmem [shape: f32[2,1,32], index: 9, kind: input, shape index: {}]
  %s10 = inlined_call_operand.vmem [shape: bf16[2,32,64], index: 10, kind: input, shape index: {}]
  %s11 = inlined_call_operand.vmem [shape: f32[2,1,64], index: 11, kind: input, shape index: {}]
  %s12 = inlined_call_operand.vmem [shape: bf16[2,64,32], index: 12, kind: input, shape index: {}]
  %s13 = inlined_call_operand.vmem [shape: f32[2,1,32], index: 13, kind: input, shape index: {}]
  %s14 = inlined_call_operand.vmem [shape: f32[2,1,32], index: 14, kind: input, shape index: {}]
  %s15 = inlined_call_operand.vmem [shape: f32[2,1,32], index: 15, kind: input, shape index: {}]
  %s16 = inlined_call_operand.vmem [shape: f32[16,32], index: 16, kind: output, shape index: {}]
  %s17 = sld [smem:[#allocation0]]
  $region105: #{bert_classifier_forward.2} parent=0
    _
  %s19 = ssub.s32 1, %s17
  %s20 = scalar_select 0, %s19, %s17
  loop: start=0, step=1, limit=4
  $region2: #{bert_classifier_forward.2} parent=0 // loop_pre_header
    _
  $region3: #{bert_classifier_forward.2} parent=0 // loop_header
    %s22 = sphi 0, %s26
    %p23 = scmp.ge.s32.totalorder %s22, 4
    %s30 = sphi 0, %s30
    %s32 = sphi 0, %s30
    %s33 = sphi 0, %s32
    %s47 = sphi 0, %s33
    %s51 = sphi 0, %s51
    %s53 = sphi 0, %s51
    %s54 = sphi 0, %s53
    %s68 = sphi 0, %s54
    %s72 = sphi 0, %s72
    %s74 = sphi 0, %s72
    %s75 = sphi 0, %s74
    %s89 = sphi 0, %s75
    %s93 = sphi 0, %s93
    %s95 = sphi 0, %s93
    %s96 = sphi 0, %s95
    %s110 = sphi 0, %s96
    %s116 = sphi 0, %s118
    %s119 = sphi 0, %s116
    %s120 = sphi 0, %s119
    %s136 = sphi 0, %s120
    %s142 = sphi 0, %s144
    %s145 = sphi 0, %s142
    %s146 = sphi 0, %s145
    %s162 = sphi 0, %s146
    %s168 = sphi 0, %s170
    %s171 = sphi 0, %s168
    %s172 = sphi 0, %s171
    %s188 = sphi 0, %s172
    %s194 = sphi 0, %s196
    %s197 = sphi 0, %s194
    %s198 = sphi 0, %s197
    %s214 = sphi 0, %s198
    %s220 = sphi 0, %s222
    %s223 = sphi 0, %s220
    %s224 = sphi 0, %s223
    %s240 = sphi 0, %s224
    %s246 = sphi 0, %s248
    %s249 = sphi 0, %s246
    %s250 = sphi 0, %s249
    %s266 = sphi 0, %s250
    %s272 = sphi 0, %s274
    %s275 = sphi 0, %s272
    %s276 = sphi 0, %s275
    %s292 = sphi 0, %s276
    %s298 = sphi 0, %s300
    %s301 = sphi 0, %s298
    %s302 = sphi 0, %s301
    %s318 = sphi 0, %s302
    %s324 = sphi 0, %s326
    %s327 = sphi 0, %s324
    %s328 = sphi 0, %s327
    %s344 = sphi 0, %s328
    %s350 = sphi 0, %s352
    %s353 = sphi 0, %s350
    %s354 = sphi 0, %s353
    %s370 = sphi 0, %s354
    %s376 = sphi 0, %s378
    %s379 = sphi 0, %s376
    %s380 = sphi 0, %s379
    %s396 = sphi 0, %s380
    %s402 = sphi 0, %s404
    %s405 = sphi 0, %s402
    %s406 = sphi 0, %s405
    %s422 = sphi 0, %s406
    %s426 = sphi 0, %s426
    %s428 = sphi 0, %s426
    %s429 = sphi 0, %s428
    %s443 = sphi 0, %s429
  $region4: #{bert_classifier_forward.2} parent=0 // loop_header_branch
    %25 = sbr.rel (%p23) target = $region8
  $region5: #{bert_classifier_forward.2} parent=0 // loop_body
    %s27 = ssub.s32 %s22, 1
    %s28 = ssub.s32 %s22, 2
    %s29 = sadd.s32 %s22, 1
    %s31 = sadd.s32 %s30, 1
    %p34 = scmp.eq.s32.totalorder %s22, 1
    %p35 = scmp.ne.s32.totalorder %s30, %s32
    %p36 = scmp.eq.s32.totalorder %s22, 0
    %p37 = por %p35, %p36
    %p38 = scmp.ne.s32.totalorder %s30, %s32
    %p39 = scmp.eq.s32.totalorder %s27, 1
    %p40 = por %p38, %p39
    %p41 = scmp.ne.s32.totalorder %s32, %s33
    %p42 = scmp.eq.s32.totalorder %s27, 0
    %p43 = por %p41, %p42
    %p44 = scmp.ne.s32.totalorder %s32, %s33
    %p45 = scmp.eq.s32.totalorder %s28, 1
    %p46 = por %p44, %p45
    %p48 = scmp.ne.s32.totalorder %s33, %s47
    %p49 = scmp.eq.s32.totalorder %s28, 0
    %p50 = por %p48, %p49
    %s52 = sadd.s32 %s51, 1
    %p55 = scmp.eq.s32.totalorder %s22, 1
    %p56 = scmp.ne.s32.totalorder %s51, %s53
    %p57 = scmp.eq.s32.totalorder %s22, 0
    %p58 = por %p56, %p57
    %p59 = scmp.ne.s32.totalorder %s51, %s53
    %p60 = scmp.eq.s32.totalorder %s27, 1
    %p61 = por %p59, %p60
    %p62 = scmp.ne.s32.totalorder %s53, %s54
    %p63 = scmp.eq.s32.totalorder %s27, 0
    %p64 = por %p62, %p63
    %p65 = scmp.ne.s32.totalorder %s53, %s54
    %p66 = scmp.eq.s32.totalorder %s28, 1
    %p67 = por %p65, %p66
    %p69 = scmp.ne.s32.totalorder %s54, %s68
    %p70 = scmp.eq.s32.totalorder %s28, 0
    %p71 = por %p69, %p70
    %s73 = sadd.s32 %s72, 1
    %p76 = scmp.eq.s32.totalorder %s22, 1
    %p77 = scmp.ne.s32.totalorder %s72, %s74
    %p78 = scmp.eq.s32.totalorder %s22, 0
    %p79 = por %p77, %p78
    %p80 = scmp.ne.s32.totalorder %s72, %s74
    %p81 = scmp.eq.s32.totalorder %s27, 1
    %p82 = por %p80, %p81
    %p83 = scmp.ne.s32.totalorder %s74, %s75
    %p84 = scmp.eq.s32.totalorder %s27, 0
    %p85 = por %p83, %p84
    %p86 = scmp.ne.s32.totalorder %s74, %s75
    %p87 = scmp.eq.s32.totalorder %s28, 1
    %p88 = por %p86, %p87
    %p90 = scmp.ne.s32.totalorder %s75, %s89
    %p91 = scmp.eq.s32.totalorder %s28, 0
    %p92 = por %p90, %p91
    %s94 = sadd.s32 %s93, 1
    %p97 = scmp.eq.s32.totalorder %s22, 1
    %p98 = scmp.ne.s32.totalorder %s93, %s95
    %p99 = scmp.eq.s32.totalorder %s22, 0
    %p100 = por %p98, %p99
    %p101 = scmp.ne.s32.totalorder %s93, %s95
    %p102 = scmp.eq.s32.totalorder %s27, 1
    %p103 = por %p101, %p102
    %p104 = scmp.ne.s32.totalorder %s95, %s96
    %p105 = scmp.eq.s32.totalorder %s27, 0
    %p106 = por %p104, %p105
    %p107 = scmp.ne.s32.totalorder %s95, %s96
    %p108 = scmp.eq.s32.totalorder %s28, 1
    %p109 = por %p107, %p108
    %p111 = scmp.ne.s32.totalorder %s96, %s110
    %p112 = scmp.eq.s32.totalorder %s28, 0
    %p113 = por %p111, %p112
    %s114 = ssub.s32 %s22, %s29
    %p115 = scmp.eq.s32.totalorder %s114, 0
    %s117 = sadd.s32 %s116, 1
    %s118 = scalar_select %p115, %s116, %s117
    %p121 = pneg %p115
    %p122 = scmp.eq.s32.totalorder %s22, 1
    %p123 = por %p121, %p122
    %p124 = scmp.ne.s32.totalorder %s116, %s119
    %p125 = scmp.eq.s32.totalorder %s22, 0
    %p126 = por %p124, %p125
    %p127 = scmp.ne.s32.totalorder %s116, %s119
    %p128 = scmp.eq.s32.totalorder %s27, 1
    %p129 = por %p127, %p128
    %p130 = scmp.ne.s32.totalorder %s119, %s120
    %p131 = scmp.eq.s32.totalorder %s27, 0
    %p132 = por %p130, %p131
    %p133 = scmp.ne.s32.totalorder %s119, %s120
    %p134 = scmp.eq.s32.totalorder %s28, 1
    %p135 = por %p133, %p134
    %p137 = scmp.ne.s32.totalorder %s120, %s136
    %p138 = scmp.eq.s32.totalorder %s28, 0
    %p139 = por %p137, %p138
    %s140 = ssub.s32 %s22, %s29
    %p141 = scmp.eq.s32.totalorder %s140, 0
    %s143 = sadd.s32 %s142, 1
    %s144 = scalar_select %p141, %s142, %s143
    %p147 = pneg %p141
    %p148 = scmp.eq.s32.totalorder %s22, 1
    %p149 = por %p147, %p148
    %p150 = scmp.ne.s32.totalorder %s142, %s145
    %p151 = scmp.eq.s32.totalorder %s22, 0
    %p152 = por %p150, %p151
    %p153 = scmp.ne.s32.totalorder %s142, %s145
    %p154 = scmp.eq.s32.totalorder %s27, 1
    %p155 = por %p153, %p154
    %p156 = scmp.ne.s32.totalorder %s145, %s146
    %p157 = scmp.eq.s32.totalorder %s27, 0
    %p158 = por %p156, %p157
    %p159 = scmp.ne.s32.totalorder %s145, %s146
    %p160 = scmp.eq.s32.totalorder %s28, 1
    %p161 = por %p159, %p160
    %p163 = scmp.ne.s32.totalorder %s146, %s162
    %p164 = scmp.eq.s32.totalorder %s28, 0
    %p165 = por %p163, %p164
    %s166 = ssub.s32 %s22, %s29
    %p167 = scmp.eq.s32.totalorder %s166, 0
    %s169 = sadd.s32 %s168, 1
    %s170 = scalar_select %p167, %s168, %s169
    %p173 = pneg %p167
    %p174 = scmp.eq.s32.totalorder %s22, 1
    %p175 = por %p173, %p174
    %p176 = scmp.ne.s32.totalorder %s168, %s171
    %p177 = scmp.eq.s32.totalorder %s22, 0
    %p178 = por %p176, %p177
    %p179 = scmp.ne.s32.totalorder %s168, %s171
    %p180 = scmp.eq.s32.totalorder %s27, 1
    %p181 = por %p179, %p180
    %p182 = scmp.ne.s32.totalorder %s171, %s172
    %p183 = scmp.eq.s32.totalorder %s27, 0
    %p184 = por %p182, %p183
    %p185 = scmp.ne.s32.totalorder %s171, %s172
    %p186 = scmp.eq.s32.totalorder %s28, 1
    %p187 = por %p185, %p186
    %p189 = scmp.ne.s32.totalorder %s172, %s188
    %p190 = scmp.eq.s32.totalorder %s28, 0
    %p191 = por %p189, %p190
    %s192 = ssub.s32 %s22, %s29
    %p193 = scmp.eq.s32.totalorder %s192, 0
    %s195 = sadd.s32 %s194, 1
    %s196 = scalar_select %p193, %s194, %s195
    %p199 = pneg %p193
    %p200 = scmp.eq.s32.totalorder %s22, 1
    %p201 = por %p199, %p200
    %p202 = scmp.ne.s32.totalorder %s194, %s197
    %p203 = scmp.eq.s32.totalorder %s22, 0
    %p204 = por %p202, %p203
    %p205 = scmp.ne.s32.totalorder %s194, %s197
    %p206 = scmp.eq.s32.totalorder %s27, 1
    %p207 = por %p205, %p206
    %p208 = scmp.ne.s32.totalorder %s197, %s198
    %p209 = scmp.eq.s32.totalorder %s27, 0
    %p210 = por %p208, %p209
    %p211 = scmp.ne.s32.totalorder %s197, %s198
    %p212 = scmp.eq.s32.totalorder %s28, 1
    %p213 = por %p211, %p212
    %p215 = scmp.ne.s32.totalorder %s198, %s214
    %p216 = scmp.eq.s32.totalorder %s28, 0
    %p217 = por %p215, %p216
    %s218 = ssub.s32 %s22, %s29
    %p219 = scmp.eq.s32.totalorder %s218, 0
    %s221 = sadd.s32 %s220, 1
    %s222 = scalar_select %p219, %s220, %s221
    %p225 = pneg %p219
    %p226 = scmp.eq.s32.totalorder %s22, 1
    %p227 = por %p225, %p226
    %p228 = scmp.ne.s32.totalorder %s220, %s223
    %p229 = scmp.eq.s32.totalorder %s22, 0
    %p230 = por %p228, %p229
    %p231 = scmp.ne.s32.totalorder %s220, %s223
    %p232 = scmp.eq.s32.totalorder %s27, 1
    %p233 = por %p231, %p232
    %p234 = scmp.ne.s32.totalorder %s223, %s224
    %p235 = scmp.eq.s32.totalorder %s27, 0
    %p236 = por %p234, %p235
    %p237 = scmp.ne.s32.totalorder %s223, %s224
    %p238 = scmp.eq.s32.totalorder %s28, 1
    %p239 = por %p237, %p238
    %p241 = scmp.ne.s32.totalorder %s224, %s240
    %p242 = scmp.eq.s32.totalorder %s28, 0
    %p243 = por %p241, %p242
    %s244 = ssub.s32 %s22, %s29
    %p245 = scmp.eq.s32.totalorder %s244, 0
    %s247 = sadd.s32 %s246, 1
    %s248 = scalar_select %p245, %s246, %s247
    %p251 = pneg %p245
    %p252 = scmp.eq.s32.totalorder %s22, 1
    %p253 = por %p251, %p252
    %p254 = scmp.ne.s32.totalorder %s246, %s249
    %p255 = scmp.eq.s32.totalorder %s22, 0
    %p256 = por %p254, %p255
    %p257 = scmp.ne.s32.totalorder %s246, %s249
    %p258 = scmp.eq.s32.totalorder %s27, 1
    %p259 = por %p257, %p258
    %p260 = scmp.ne.s32.totalorder %s249, %s250
    %p261 = scmp.eq.s32.totalorder %s27, 0
    %p262 = por %p260, %p261
    %p263 = scmp.ne.s32.totalorder %s249, %s250
    %p264 = scmp.eq.s32.totalorder %s28, 1
    %p265 = por %p263, %p264
    %p267 = scmp.ne.s32.totalorder %s250, %s266
    %p268 = scmp.eq.s32.totalorder %s28, 0
    %p269 = por %p267, %p268
    %s270 = ssub.s32 %s22, %s29
    %p271 = scmp.eq.s32.totalorder %s270, 0
    %s273 = sadd.s32 %s272, 1
    %s274 = scalar_select %p271, %s272, %s273
    %p277 = pneg %p271
    %p278 = scmp.eq.s32.totalorder %s22, 1
    %p279 = por %p277, %p278
    %p280 = scmp.ne.s32.totalorder %s272, %s275
    %p281 = scmp.eq.s32.totalorder %s22, 0
    %p282 = por %p280, %p281
    %p283 = scmp.ne.s32.totalorder %s272, %s275
    %p284 = scmp.eq.s32.totalorder %s27, 1
    %p285 = por %p283, %p284
    %p286 = scmp.ne.s32.totalorder %s275, %s276
    %p287 = scmp.eq.s32.totalorder %s27, 0
    %p288 = por %p286, %p287
    %p289 = scmp.ne.s32.totalorder %s275, %s276
    %p290 = scmp.eq.s32.totalorder %s28, 1
    %p291 = por %p289, %p290
    %p293 = scmp.ne.s32.totalorder %s276, %s292
    %p294 = scmp.eq.s32.totalorder %s28, 0
    %p295 = por %p293, %p294
    %s296 = ssub.s32 %s22, %s29
    %p297 = scmp.eq.s32.totalorder %s296, 0
    %s299 = sadd.s32 %s298, 1
    %s300 = scalar_select %p297, %s298, %s299
    %p303 = pneg %p297
    %p304 = scmp.eq.s32.totalorder %s22, 1
    %p305 = por %p303, %p304
    %p306 = scmp.ne.s32.totalorder %s298, %s301
    %p307 = scmp.eq.s32.totalorder %s22, 0
    %p308 = por %p306, %p307
    %p309 = scmp.ne.s32.totalorder %s298, %s301
    %p310 = scmp.eq.s32.totalorder %s27, 1
    %p311 = por %p309, %p310
    %p312 = scmp.ne.s32.totalorder %s301, %s302
    %p313 = scmp.eq.s32.totalorder %s27, 0
    %p314 = por %p312, %p313
    %p315 = scmp.ne.s32.totalorder %s301, %s302
    %p316 = scmp.eq.s32.totalorder %s28, 1
    %p317 = por %p315, %p316
    %p319 = scmp.ne.s32.totalorder %s302, %s318
    %p320 = scmp.eq.s32.totalorder %s28, 0
    %p321 = por %p319, %p320
    %s322 = ssub.s32 %s22, %s29
    %p323 = scmp.eq.s32.totalorder %s322, 0
    %s325 = sadd.s32 %s324, 1
    %s326 = scalar_select %p323, %s324, %s325
    %p329 = pneg %p323
    %p330 = scmp.eq.s32.totalorder %s22, 1
    %p331 = por %p329, %p330
    %p332 = scmp.ne.s32.totalorder %s324, %s327
    %p333 = scmp.eq.s32.totalorder %s22, 0
    %p334 = por %p332, %p333
    %p335 = scmp.ne.s32.totalorder %s324, %s327
    %p336 = scmp.eq.s32.totalorder %s27, 1
    %p337 = por %p335, %p336
    %p338 = scmp.ne.s32.totalorder %s327, %s328
    %p339 = scmp.eq.s32.totalorder %s27, 0
    %p340 = por %p338, %p339
    %p341 = scmp.ne.s32.totalorder %s327, %s328
    %p342 = scmp.eq.s32.totalorder %s28, 1
    %p343 = por %p341, %p342
    %p345 = scmp.ne.s32.totalorder %s328, %s344
    %p346 = scmp.eq.s32.totalorder %s28, 0
    %p347 = por %p345, %p346
    %s348 = ssub.s32 %s22, %s29
    %p349 = scmp.eq.s32.totalorder %s348, 0
    %s351 = sadd.s32 %s350, 1
    %s352 = scalar_select %p349, %s350, %s351
    %p355 = pneg %p349
    %p356 = scmp.eq.s32.totalorder %s22, 1
    %p357 = por %p355, %p356
    %p358 = scmp.ne.s32.totalorder %s350, %s353
    %p359 = scmp.eq.s32.totalorder %s22, 0
    %p360 = por %p358, %p359
    %p361 = scmp.ne.s32.totalorder %s350, %s353
    %p362 = scmp.eq.s32.totalorder %s27, 1
    %p363 = por %p361, %p362
    %p364 = scmp.ne.s32.totalorder %s353, %s354
    %p365 = scmp.eq.s32.totalorder %s27, 0
    %p366 = por %p364, %p365
    %p367 = scmp.ne.s32.totalorder %s353, %s354
    %p368 = scmp.eq.s32.totalorder %s28, 1
    %p369 = por %p367, %p368
    %p371 = scmp.ne.s32.totalorder %s354, %s370
    %p372 = scmp.eq.s32.totalorder %s28, 0
    %p373 = por %p371, %p372
    %s374 = ssub.s32 %s22, %s29
    %p375 = scmp.eq.s32.totalorder %s374, 0
    %s377 = sadd.s32 %s376, 1
    %s378 = scalar_select %p375, %s376, %s377
    %p381 = pneg %p375
    %p382 = scmp.eq.s32.totalorder %s22, 1
    %p383 = por %p381, %p382
    %p384 = scmp.ne.s32.totalorder %s376, %s379
    %p385 = scmp.eq.s32.totalorder %s22, 0
    %p386 = por %p384, %p385
    %p387 = scmp.ne.s32.totalorder %s376, %s379
    %p388 = scmp.eq.s32.totalorder %s27, 1
    %p389 = por %p387, %p388
    %p390 = scmp.ne.s32.totalorder %s379, %s380
    %p391 = scmp.eq.s32.totalorder %s27, 0
    %p392 = por %p390, %p391
    %p393 = scmp.ne.s32.totalorder %s379, %s380
    %p394 = scmp.eq.s32.totalorder %s28, 1
    %p395 = por %p393, %p394
    %p397 = scmp.ne.s32.totalorder %s380, %s396
    %p398 = scmp.eq.s32.totalorder %s28, 0
    %p399 = por %p397, %p398
    %s400 = ssub.s32 %s22, %s29
    %p401 = scmp.eq.s32.totalorder %s400, 0
    %s403 = sadd.s32 %s402, 1
    %s404 = scalar_select %p401, %s402, %s403
    %p407 = pneg %p401
    %p408 = scmp.eq.s32.totalorder %s22, 1
    %p409 = por %p407, %p408
    %p410 = scmp.ne.s32.totalorder %s402, %s405
    %p411 = scmp.eq.s32.totalorder %s22, 0
    %p412 = por %p410, %p411
    %p413 = scmp.ne.s32.totalorder %s402, %s405
    %p414 = scmp.eq.s32.totalorder %s27, 1
    %p415 = por %p413, %p414
    %p416 = scmp.ne.s32.totalorder %s405, %s406
    %p417 = scmp.eq.s32.totalorder %s27, 0
    %p418 = por %p416, %p417
    %p419 = scmp.ne.s32.totalorder %s405, %s406
    %p420 = scmp.eq.s32.totalorder %s28, 1
    %p421 = por %p419, %p420
    %p423 = scmp.ne.s32.totalorder %s406, %s422
    %p424 = scmp.eq.s32.totalorder %s28, 0
    %p425 = por %p423, %p424
    %s427 = sadd.s32 %s426, 1
    %p430 = scmp.eq.s32.totalorder %s22, 1
    %p431 = scmp.ne.s32.totalorder %s426, %s428
    %p432 = scmp.eq.s32.totalorder %s22, 0
    %p433 = por %p431, %p432
    %p434 = scmp.ne.s32.totalorder %s426, %s428
    %p435 = scmp.eq.s32.totalorder %s27, 1
    %p436 = por %p434, %p435
    %p437 = scmp.ne.s32.totalorder %s428, %s429
    %p438 = scmp.eq.s32.totalorder %s27, 0
    %p439 = por %p437, %p438
    %p440 = scmp.ne.s32.totalorder %s428, %s429
    %p441 = scmp.eq.s32.totalorder %s28, 1
    %p442 = por %p440, %p441
    %p444 = scmp.ne.s32.totalorder %s429, %s443
    %p445 = scmp.eq.s32.totalorder %s28, 0
    %p446 = por %p444, %p445
    %p447 = scmp.le.s32.totalorder 1, %s22
    %p448 = scmp.lt.s32.totalorder %s22, 3
    %p449 = pnand %p447, %p448
    %p450 = pneg %p449
    // Predicated region
    $region9: #{bert_classifier_forward.2} parent=5 // pred_check
      _
    $region10: #{bert_classifier_forward.2} parent=5 // pred_check_branch
      %452 = sbr.rel (%p449) target = $region12
    $region11: #{bert_classifier_forward.2} parent=5 // pred_region
      %s453 = ssub.s32 %s22, 1
      // Predicated region
      $region13: #{bert_classifier_forward.2} parent=11 // pred_check
        %p454 = pneg %p43
      $region14: #{bert_classifier_forward.2} parent=11 // pred_check_branch
        %456 = sbr.rel (%p454) target = $region16
      $region15: #{bert_classifier_forward.2} parent=11 // pred_region
        _
      $region16: #{bert_classifier_forward.2} parent=11 // pred_fallthru
        _
      // Predicated region
      $region17: #{bert_classifier_forward.2} parent=11 // pred_check
        %p457 = pneg %p64
      $region18: #{bert_classifier_forward.2} parent=11 // pred_check_branch
        %459 = sbr.rel (%p457) target = $region20
      $region19: #{bert_classifier_forward.2} parent=11 // pred_region
        _
      $region20: #{bert_classifier_forward.2} parent=11 // pred_fallthru
        _
      // Predicated region
      $region21: #{bert_classifier_forward.2} parent=11 // pred_check
        %p460 = pneg %p85
      $region22: #{bert_classifier_forward.2} parent=11 // pred_check_branch
        %462 = sbr.rel (%p460) target = $region24
      $region23: #{bert_classifier_forward.2} parent=11 // pred_region
        _
      $region24: #{bert_classifier_forward.2} parent=11 // pred_fallthru
        _
      // Predicated region
      $region25: #{bert_classifier_forward.2} parent=11 // pred_check
        %p463 = pneg %p106
      $region26: #{bert_classifier_forward.2} parent=11 // pred_check_branch
        %465 = sbr.rel (%p463) target = $region28
      $region27: #{bert_classifier_forward.2} parent=11 // pred_region
        _
      $region28: #{bert_classifier_forward.2} parent=11 // pred_fallthru
        _
    $region12: #{bert_classifier_forward.2} parent=5 // pred_fallthru
      _
    %p466 = scmp.lt.s32.totalorder %s22, 2
    // Predicated region
    $region29: #{bert_classifier_forward.2} parent=5 // pred_check
      %p467 = pneg %p466
    $region30: #{bert_classifier_forward.2} parent=5 // pred_check_branch
      %469 = sbr.rel (%p467) target = $region32
    $region31: #{bert_classifier_forward.2} parent=5 // pred_region
      // Predicated region
      $region33: #{bert_classifier_forward.2} parent=31 // pred_check
        %p470 = pneg %p126
      $region34: #{bert_classifier_forward.2} parent=31 // pred_check_branch
        %472 = sbr.rel (%p470) target = $region36
      $region35: #{bert_classifier_forward.2} parent=31 // pred_region
        %p473 = scmp.lt.s32.totalorder %s22, 1
        %s474 = scalar_select %p473, %s22, 1
        %s475 = smul.addr %s474, 4
        %s476 = smul.addr %s475, 4
        %s477 = scalar_lea.vmem %s4, %s476
      $region36: #{bert_classifier_forward.2} parent=31 // pred_fallthru
        _
      // Predicated region
      $region37: #{bert_classifier_forward.2} parent=31 // pred_check
        %p478 = pneg %p152
      $region38: #{bert_classifier_forward.2} parent=31 // pred_check_branch
        %480 = sbr.rel (%p478) target = $region40
      $region39: #{bert_classifier_forward.2} parent=31 // pred_region
        %p481 = scmp.lt.s32.totalorder %s22, 1
        %s482 = scalar_select %p481, %s22, 1
        %s483 = scalar_lea.vmem %s5, %s482
      $region40: #{bert_classifier_forward.2} parent=31 // pred_fallthru
        _
      // Predicated region
      $region41: #{bert_classifier_forward.2} parent=31 // pred_check
        %p484 = pneg %p178
      $region42: #{bert_classifier_forward.2} parent=31 // pred_check_branch
        %486 = sbr.rel (%p484) target = $region44
      $region43: #{bert_classifier_forward.2} parent=31 // pred_region
        %p487 = scmp.lt.s32.totalorder %s22, 1
        %s488 = scalar_select %p487, %s22, 1
        %s489 = smul.addr %s488, 4
        %s490 = smul.addr %s489, 4
        %s491 = scalar_lea.vmem %s6, %s490
      $region44: #{bert_classifier_forward.2} parent=31 // pred_fallthru
        _
      // Predicated region
      $region45: #{bert_classifier_forward.2} parent=31 // pred_check
        %p492 = pneg %p204
      $region46: #{bert_classifier_forward.2} parent=31 // pred_check_branch
        %494 = sbr.rel (%p492) target = $region48
      $region47: #{bert_classifier_forward.2} parent=31 // pred_region
        %p495 = scmp.lt.s32.totalorder %s22, 1
        %s496 = scalar_select %p495, %s22, 1
        %s497 = scalar_lea.vmem %s7, %s496
      $region48: #{bert_classifier_forward.2} parent=31 // pred_fallthru
        _
      // Predicated region
      $region49: #{bert_classifier_forward.2} parent=31 // pred_check
        %p498 = pneg %p230
      $region50: #{bert_classifier_forward.2} parent=31 // pred_check_branch
        %500 = sbr.rel (%p498) target = $region52
      $region51: #{bert_classifier_forward.2} parent=31 // pred_region
        %p501 = scmp.lt.s32.totalorder %s22, 1
        %s502 = scalar_select %p501, %s22, 1
        %s503 = scalar_lea.vmem %s8, %s502
      $region52: #{bert_classifier_forward.2} parent=31 // pred_fallthru
        _
      // Predicated region
      $region53: #{bert_classifier_forward.2} parent=31 // pred_check
        %p504 = pneg %p256
      $region54: #{bert_classifier_forward.2} parent=31 // pred_check_branch
        %506 = sbr.rel (%p504) target = $region56
      $region55: #{bert_classifier_forward.2} parent=31 // pred_region
        %p507 = scmp.lt.s32.totalorder %s22, 1
        %s508 = scalar_select %p507, %s22, 1
        %s509 = scalar_lea.vmem %s9, %s508
      $region56: #{bert_classifier_forward.2} parent=31 // pred_fallthru
        _
      // Predicated region
      $region57: #{bert_classifier_forward.2} parent=31 // pred_check
        %p510 = pneg %p282
      $region58: #{bert_classifier_forward.2} parent=31 // pred_check_branch
        %512 = sbr.rel (%p510) target = $region60
      $region59: #{bert_classifier_forward.2} parent=31 // pred_region
        %p513 = scmp.lt.s32.totalorder %s22, 1
        %s514 = scalar_select %p513, %s22, 1
        %s515 = smul.addr %s514, 4
        %s516 = smul.addr %s515, 4
        %s517 = scalar_lea.vmem %s10, %s516
      $region60: #{bert_classifier_forward.2} parent=31 // pred_fallthru
        _
      // Predicated region
      $region61: #{bert_classifier_forward.2} parent=31 // pred_check
        %p518 = pneg %p308
      $region62: #{bert_classifier_forward.2} parent=31 // pred_check_branch
        %520 = sbr.rel (%p518) target = $region64
      $region63: #{bert_classifier_forward.2} parent=31 // pred_region
        %p521 = scmp.lt.s32.totalorder %s22, 1
        %s522 = scalar_select %p521, %s22, 1
        %s523 = scalar_lea.vmem %s11, %s522
      $region64: #{bert_classifier_forward.2} parent=31 // pred_fallthru
        _
      // Predicated region
      $region65: #{bert_classifier_forward.2} parent=31 // pred_check
        %p524 = pneg %p334
      $region66: #{bert_classifier_forward.2} parent=31 // pred_check_branch
        %526 = sbr.rel (%p524) target = $region68
      $region67: #{bert_classifier_forward.2} parent=31 // pred_region
        %p527 = scmp.lt.s32.totalorder %s22, 1
        %s528 = scalar_select %p527, %s22, 1
        %s529 = smul.addr %s528, 8
        %s530 = smul.addr %s529, 4
        %s531 = scalar_lea.vmem %s12, %s530
      $region68: #{bert_classifier_forward.2} parent=31 // pred_fallthru
        _
      // Predicated region
      $region69: #{bert_classifier_forward.2} parent=31 // pred_check
        %p532 = pneg %p360
      $region70: #{bert_classifier_forward.2} parent=31 // pred_check_branch
        %534 = sbr.rel (%p532) target = $region72
      $region71: #{bert_classifier_forward.2} parent=31 // pred_region
        %p535 = scmp.lt.s32.totalorder %s22, 1
        %s536 = scalar_select %p535, %s22, 1
        %s537 = scalar_lea.vmem %s13, %s536
      $region72: #{bert_classifier_forward.2} parent=31 // pred_fallthru
        _
      // Predicated region
      $region73: #{bert_classifier_forward.2} parent=31 // pred_check
        %p538 = pneg %p386
      $region74: #{bert_classifier_forward.2} parent=31 // pred_check_branch
        %540 = sbr.rel (%p538) target = $region76
      $region75: #{bert_classifier_forward.2} parent=31 // pred_region
        %p541 = scmp.lt.s32.totalorder %s22, 1
        %s542 = scalar_select %p541, %s22, 1
        %s543 = scalar_lea.vmem %s14, %s542
      $region76: #{bert_classifier_forward.2} parent=31 // pred_fallthru
        _
      // Predicated region
      $region77: #{bert_classifier_forward.2} parent=31 // pred_check
        %p544 = pneg %p412
      $region78: #{bert_classifier_forward.2} parent=31 // pred_check_branch
        %546 = sbr.rel (%p544) target = $region80
      $region79: #{bert_classifier_forward.2} parent=31 // pred_region
        %p547 = scmp.lt.s32.totalorder %s22, 1
        %s548 = scalar_select %p547, %s22, 1
        %s549 = scalar_lea.vmem %s15, %s548
      $region80: #{bert_classifier_forward.2} parent=31 // pred_fallthru
        _
    $region32: #{bert_classifier_forward.2} parent=5 // pred_fallthru
      _
    %p550 = scmp.le.s32.totalorder 1, %s22
    %p551 = scmp.lt.s32.totalorder %s22, 3
    %p552 = pnand %p550, %p551
    %p553 = pneg %p552
    // Predicated region
    $region81: #{bert_classifier_forward.2} parent=5 // pred_check
      _
    $region82: #{bert_classifier_forward.2} parent=5 // pred_check_branch
      %555 = sbr.rel (%p552) target = $region84
    $region83: #{bert_classifier_forward.2} parent=5 // pred_region
      %s556 = ssub.s32 %s22, 1
      %p557 = pneg %p43
      %p558 = pneg %p40
      %p559 = pneg %p64
      %p560 = pneg %p61
      %p561 = pneg %p85
      %p562 = pneg %p82
      %p563 = pneg %p106
      %p564 = pneg %p103
      %p565 = scmp.lt.s32.totalorder %s27, 1
      %s566 = scalar_select %p565, %s27, 1
      %s567 = smul.addr %s566, 4
      %s568 = smul.addr %s567, 4
      %s569 = scalar_lea.vmem %s4, %s568
      %p570 = pneg %p132
      %p571 = pneg %p129
      %p572 = scmp.lt.s32.totalorder %s27, 1
      %s573 = scalar_select %p572, %s27, 1
      %s574 = scalar_lea.vmem %s5, %s573
      %p575 = pneg %p158
      %p576 = pneg %p155
      %p577 = scmp.lt.s32.totalorder %s27, 1
      %s578 = scalar_select %p577, %s27, 1
      %s579 = smul.addr %s578, 4
      %s580 = smul.addr %s579, 4
      %s581 = scalar_lea.vmem %s6, %s580
      %p582 = pneg %p184
      %p583 = pneg %p181
      %p584 = scmp.lt.s32.totalorder %s27, 1
      %s585 = scalar_select %p584, %s27, 1
      %s586 = scalar_lea.vmem %s7, %s585
      %p587 = pneg %p210
      %p588 = pneg %p207
      %p589 = scmp.lt.s32.totalorder %s27, 1
      %s590 = scalar_select %p589, %s27, 1
      %s591 = scalar_lea.vmem %s8, %s590
      %p592 = pneg %p236
      %p593 = pneg %p233
      %p594 = scmp.lt.s32.totalorder %s27, 1
      %s595 = scalar_select %p594, %s27, 1
      %s596 = scalar_lea.vmem %s9, %s595
      %p597 = pneg %p262
      %p598 = pneg %p259
      %p599 = scmp.lt.s32.totalorder %s27, 1
      %s600 = scalar_select %p599, %s27, 1
      %s601 = smul.addr %s600, 4
      %s602 = smul.addr %s601, 4
      %s603 = scalar_lea.vmem %s10, %s602
      %p604 = pneg %p288
      %p605 = pneg %p285
      %p606 = scmp.lt.s32.totalorder %s27, 1
      %s607 = scalar_select %p606, %s27, 1
      %s608 = scalar_lea.vmem %s11, %s607
      %p609 = pneg %p314
      %p610 = pneg %p311
      %p611 = scmp.lt.s32.totalorder %s27, 1
      %s612 = scalar_select %p611, %s27, 1
      %s613 = smul.addr %s612, 8
      %s614 = smul.addr %s613, 4
      %s615 = scalar_lea.vmem %s12, %s614
      %p616 = pneg %p340
      %p617 = pneg %p337
      %p618 = scmp.lt.s32.totalorder %s27, 1
      %s619 = scalar_select %p618, %s27, 1
      %s620 = scalar_lea.vmem %s13, %s619
      %p621 = pneg %p366
      %p622 = pneg %p363
      %p623 = scmp.lt.s32.totalorder %s27, 1
      %s624 = scalar_select %p623, %s27, 1
      %s625 = scalar_lea.vmem %s14, %s624
      %p626 = pneg %p392
      %p627 = pneg %p389
      %p628 = scmp.lt.s32.totalorder %s27, 1
      %s629 = scalar_select %p628, %s27, 1
      %s630 = scalar_lea.vmem %s15, %s629
      %p631 = pneg %p418
      %p632 = pneg %p415
      %p633 = pneg %p439
      %p634 = pneg %p436
      %p635 = scmp.lt.s32.totalorder %s27, 1
      %s636 = scalar_select %p635, %s27, 1
      %s637 = smul.addr %s636, 4
      %s638 = smul.addr %s637, 4
      %s639 = scalar_lea.vmem %s4, %s638
      %p640 = scmp.lt.s32.totalorder %s27, 1
      %s641 = scalar_select %p640, %s27, 1
      %s642 = scalar_lea.vmem %s5, %s641
      %p643 = scmp.lt.s32.totalorder %s27, 1
      %s644 = scalar_select %p643, %s27, 1
      %s645 = smul.addr %s644, 4
      %s646 = smul.addr %s645, 4
      %s647 = scalar_lea.vmem %s6, %s646
      %p648 = scmp.lt.s32.totalorder %s27, 1
      %s649 = scalar_select %p648, %s27, 1
      %s650 = scalar_lea.vmem %s7, %s649
      %p651 = scmp.lt.s32.totalorder %s27, 1
      %s652 = scalar_select %p651, %s27, 1
      %s653 = scalar_lea.vmem %s8, %s652
      %p654 = scmp.lt.s32.totalorder %s27, 1
      %s655 = scalar_select %p654, %s27, 1
      %s656 = scalar_lea.vmem %s9, %s655
      %p657 = scmp.lt.s32.totalorder %s27, 1
      %s658 = scalar_select %p657, %s27, 1
      %s659 = smul.addr %s658, 4
      %s660 = smul.addr %s659, 4
      %s661 = scalar_lea.vmem %s10, %s660
      %p662 = scmp.lt.s32.totalorder %s27, 1
      %s663 = scalar_select %p662, %s27, 1
      %s664 = scalar_lea.vmem %s11, %s663
      %p665 = scmp.lt.s32.totalorder %s27, 1
      %s666 = scalar_select %p665, %s27, 1
      %s667 = smul.addr %s666, 8
      %s668 = smul.addr %s667, 4
      %s669 = scalar_lea.vmem %s12, %s668
      %p670 = scmp.lt.s32.totalorder %s27, 1
      %s671 = scalar_select %p670, %s27, 1
      %s672 = scalar_lea.vmem %s13, %s671
      %p673 = scmp.lt.s32.totalorder %s27, 1
      %s674 = scalar_select %p673, %s27, 1
      %s675 = scalar_lea.vmem %s14, %s674
      %p676 = scmp.lt.s32.totalorder %s27, 1
      %s677 = scalar_select %p676, %s27, 1
      %s678 = scalar_lea.vmem %s15, %s677
      %p680 = scmp.eq.s32.totalorder %s27, 0
      // Predicated region
      $region85: #{bert_classifier_forward.2} parent=83 // pred_check
        %p681 = pneg %p680
      $region86: #{bert_classifier_forward.2} parent=83 // pred_check_branch
        %683 = sbr.rel (%p681) target = $region88
      $region87: #{bert_classifier_forward.2} parent=83 // pred_region
        %v684 = vld [vmem:[%s0] sm:$0xff]
        %v685 = vld [vmem:[%s0 + $0x8] sm:$0xff]
        %v686 = vld [vmem:[%s2] sm:$0x1]
        %v687 = vld [vmem:[%s3] sm:$0x1]
        %vm688 = vcmask 261120
        %v689 = vsel %vm688, %v684, 0.0
        %690 = vadd.xlane.f32.xlu0 %v689
        %v691 = vpop.xlane.xlu0 %690
        %v692 = vsel %vm688, %v685, 0.0
        %693 = vadd.xlane.f32.xlu0 %v692
        %v694 = vpop.xlane.xlu0 %693
        %v695 = vrcp.pop 32.0
        %v696 = vmul.f32 %v691, %v695
        %v697 = vmul.f32 %v694, %v695
        %v698 = vsub.f32 %v684, %v696
        %v699 = vsub.f32 %v685, %v697
        %v700 = vmul.f32 %v698, %v698
        %v701 = vmul.f32 %v699, %v699
        %v702 = vsel %vm688, %v700, 0.0
        %703 = vadd.xlane.f32.xlu0 %v702
        %v704 = vpop.xlane.xlu0 %703
        %v705 = vsel %vm688, %v701, 0.0
        %706 = vadd.xlane.f32.xlu0 %v705
        %v707 = vpop.xlane.xlu0 %706
        %v708 = vmul.f32 %v704, %v695
        %v709 = vmul.f32 %v707, %v695
        %v710 = vadd.f32 %v708, 1e-05
        %v711 = vadd.f32 %v709, 1e-05
        %v712 = vrsqrt.pop %v710
        %v713 = vrsqrt.pop %v711
        %v714 = vmul.f32 %v698, %v712
        %v715 = vmul.f32 %v699, %v713
        %v717 = vlaneseq
        %v718 = vshrl.u32 %v717, 7
        %v719 = vsub.s32 0, %v718
        %v720 = vrot.slane %v686, %v719
        %v722 = vmul.f32 %v714, %v720
        %v723 = vmul.f32 %v715, %v720
        %v725 = vlaneseq
        %v726 = vshrl.u32 %v725, 7
        %v727 = vsub.s32 0, %v726
        %v728 = vrot.slane %v687, %v727
        %v730 = vadd.f32 %v722, %v728
        %v731 = vadd.f32 %v723, %v728
        %732 = vst.msk [vmem:[#allocation2] sm:$0xff] %vm688, %v730
        %733 = vst.msk [vmem:[#allocation2 + $0x8] sm:$0xff] %vm688, %v731
      $region88: #{bert_classifier_forward.2} parent=83 // pred_fallthru
        _
      %v734 = vld [vmem:[#allocation2] sm:$0xff]
      %v735 = vld [vmem:[#allocation2 + $0x8] sm:$0xff]
      %v736 = vpack.c.bf16 %v735, %v734
      %v737 = vld [vmem:[%s639] sm:$0xf]
      %v738 = vld [vmem:[%s639 + $0x4] sm:$0xf]
      %v739 = vld [vmem:[%s639 + $0x8] sm:$0xf]
      %v740 = vld [vmem:[%s639 + $0xc] sm:$0xf]
      %v741 = vld [vmem:[%s642] sm:$0x1]
      %v743 = vlaneseq
      %v744 = vshrl.u32 %v743, 7
      %v745 = vsub.s32 0, %v744
      %v746 = vrot.slane %v741, %v745
      %v752 = vunpack.c.l.b16 %v737
      %v753 = vunpack.c.l.b16 %v738
      %v754 = vunpack.c.l.b16 %v739
      %v755 = vunpack.c.l.b16 %v740
      %v756 = vpack.c.b16 %v753, %v752
      %v757 = vpack.c.b16 %v755, %v754
      %vm760 = vcmask 261120
      %v762 = vsel %vm760, %v736, 0
      %764 = vmatprep.subr.bf16.mxu0 0
      %765 = vmatpush1.bf16.msra.mxu0 %v756
      %766 = vmatprep.subr.bf16.mxu0 0
      %767 = vmatpush1.bf16.msra.mxu0 %v757
      %768 = vmatprep.subr.bf16.mxu0 0
      %769 = vmatpush1.bf16.msra.mxu0 0
      %770 = vmatprep.subr.bf16.mxu0 0
      %771 = vmatpush1.bf16.msra.mxu0 0
      %772 = vmatprep.subr.bf16.mxu0 0
      %773 = vmatpush1.bf16.msra.mxu0 0
      %774 = vmatprep.subr.bf16.mxu0 0
      %775 = vmatpush1.bf16.msra.mxu0 0
      %776 = vmatprep.subr.bf16.mxu0 0
      %777 = vmatpush1.bf16.msra.mxu0 0
      %778 = vmatprep.subr.bf16.mxu0 0
      %779 = vmatpush1.bf16.msra.mxu0 0
      %780 = vmatprep.subr.bf16.mxu0 0
      %781 = vmatpush1.bf16.msra.mxu0 0
      %782 = vmatprep.subr.bf16.mxu0 0
      %783 = vmatpush1.bf16.msra.mxu0 0
      %784 = vmatprep.subr.bf16.mxu0 0
      %785 = vmatpush1.bf16.msra.mxu0 0
      %786 = vmatprep.subr.bf16.mxu0 0
      %787 = vmatpush1.bf16.msra.mxu0 0
      %788 = vmatprep.subr.bf16.mxu0 0
      %789 = vmatpush1.bf16.msra.mxu0 0
      %790 = vmatprep.subr.bf16.mxu0 0
      %791 = vmatpush1.bf16.msra.mxu0 0
      %792 = vmatprep.subr.bf16.mxu0 0
      %793 = vmatpush1.bf16.msra.mxu0 0
      %794 = vmatprep.subr.bf16.mxu0 0
      %795 = vmatpush1.bf16.msra.mxu0 0
      %796 = vmatprep.mubr.bf16.mxu0 0
      %797 = vmatmul.mubr.bf16.gmra.mrb[0].mxu0 %v762
      %v798 = vpop.f32.mrb[0].mxu0
      %v799 = vadd.f32 %v746, %v798
      %v800 = vpop.f32.mrb[0].mxu0
      %v801 = vpop.f32.mrb[0].mxu0
      %v802 = vadd.f32 %v746, %v801
      %v803 = vpop.f32.mrb[0].mxu0
      %804 = vdwg.mxu0
      %v805 = vld [vmem:[%s1] sm:$0x1]
      %807 = vrot.lane.b32.xlu0 %v799, 96
      %v808 = vpop.permute.xlu0 %807
      %vm809 = vcmask 64512
      %v810 = vsel %vm809, %v799, 0
      %v812 = vsel %vm809, %v808, 0
      %814 = vmatprep.subr.mxu0 0.0
      %815 = vmatpush1.xpose.msra.mxu0 %v812
      %816 = vmatprep.subr.mxu0 0.0
      %817 = vmatpush1.xpose.msra.mxu0 0.0
      %818 = vmatprep.subr.mxu0 0.0
      %819 = vmatpush1.xpose.msra.mxu0 0.0
      %820 = vmatprep.subr.mxu0 0.0
      %821 = vmatpush1.xpose.msra.mxu0 0.0
      %822 = vmatprep.subr.mxu0 0.0
      %823 = vmatpush1.xpose.msra.mxu0 0.0
      %824 = vmatprep.subr.mxu0 0.0
      %825 = vmatpush1.xpose.msra.mxu0 0.0
      %826 = vmatprep.subr.mxu0 0.0
      %827 = vmatpush1.xpose.msra.mxu0 0.0
      %828 = vmatprep.subr.mxu0 0.0
      %829 = vmatpush1.xpose.msra.mxu0 0.0
      %830 = vmatprep.subr.mxu0 0.0
      %831 = vmatpush1.xpose.msra.mxu0 0.0
      %832 = vmatprep.subr.mxu0 0.0
      %833 = vmatpush1.xpose.msra.mxu0 0.0
      %834 = vmatprep.subr.mxu0 0.0
      %835 = vmatpush1.xpose.msra.mxu0 0.0
      %836 = vmatprep.subr.mxu0 0.0
      %837 = vmatpush1.xpose.msra.mxu0 0.0
      %838 = vmatprep.subr.mxu0 0.0
      %839 = vmatpush1.xpose.msra.mxu0 0.0
      %840 = vmatprep.subr.mxu0 0.0
      %841 = vmatpush1.xpose.msra.mxu0 0.0
      %842 = vmatprep.subr.mxu0 0.0
      %843 = vmatpush1.xpose.msra.mxu0 0.0
      %844 = vmatprep.subr.mxu0 0.0
      %845 = vmatpush1.xpose.msra.mxu0 0.0
      %846 = vmatprep.subr.mxu0 0.0
      %847 = vmatpush1.xpose.msra.mxu0 0.0
      %848 = vmatprep.subr.mxu0 0.0
      %849 = vmatpush1.xpose.msra.mxu0 0.0
      %850 = vmatprep.subr.mxu0 0.0
      %851 = vmatpush1.xpose.msra.mxu0 0.0
      %852 = vmatprep.subr.mxu0 0.0
      %853 = vmatpush1.xpose.msra.mxu0 0.0
      %854 = vmatprep.subr.mxu0 0.0
      %855 = vmatpush1.xpose.msra.mxu0 0.0
      %856 = vmatprep.subr.mxu0 0.0
      %857 = vmatpush1.xpose.msra.mxu0 0.0
      %858 = vmatprep.subr.mxu0 0.0
      %859 = vmatpush1.xpose.msra.mxu0 0.0
      %860 = vmatprep.subr.mxu0 0.0
      %861 = vmatpush1.xpose.msra.mxu0 0.0
      %862 = vmatprep.subr.mxu0 0.0
      %863 = vmatpush1.xpose.msra.mxu0 0.0
      %864 = vmatprep.subr.mxu0 0.0
      %865 = vmatpush1.xpose.msra.mxu0 0.0
      %866 = vmatprep.subr.mxu0 0.0
      %867 = vmatpush1.xpose.msra.mxu0 0.0
      %868 = vmatprep.subr.mxu0 0.0
      %869 = vmatpush1.xpose.msra.mxu0 0.0
      %870 = vmatprep.subr.mxu0 0.0
      %871 = vmatpush1.xpose.msra.mxu0 0.0
      %872 = vmatprep.subr.mxu0 0.0
      %873 = vmatpush1.xpose.msra.mxu0 0.0
      %874 = vmatprep.subr.mxu0 0.0
      %875 = vmatpush1.xpose.msra.mxu0 0.0
      %876 = vmatprep.subr.mxu0 0.0
      %877 = vmatpush1.xpose.msra.mxu0 0.0
      %878 = vmatprep.mubr.f32.mxu0 0.0
      %879 = vmatmul.mubr.f32.gmra.mrb[0].mxu0 %v810
      %v880 = vpop.f32.mrb[0].mxu0
      %v881 = vadd.f32 0.0, %v880
      %v882 = vpop.f32.mrb[0].mxu0
      %883 = vdwg.mxu0
      %v884 = vmul.f32 %v881, 0.35355338
      %v885 = vlaneseq
      %v886 = vshrl.u32 %v885, 7
      %v887 = vsub.s32 0, %v886
      %v888 = vrot.slane %v805, %v887
      %v889 = vadd.f32 %v884, %v888
      %v890 = vsel %vm809, %v889, -inf
      %891 = vmax.xlane.f32.xlu0 %v890
      %v892 = vpop.xlane.xlu0 %891
      %v893 = vsub.f32 %v889, %v892
      %v894 = vmul.f32 %v893, 1.442695
      %v895 = vpow.pop %v894
      %v896 = vsel %vm809, %v895, 0.0
      %897 = vadd.xlane.f32.xlu0 %v896
      %v898 = vpop.xlane.xlu0 %897
      %v899 = vrcp.pop %v898
      %v900 = vmul.f32 %v895, %v899
      %901 = vrot.lane.b32.xlu0 %v799, 64
      %v902 = vpop.permute.xlu0 %901
      %v905 = vsel %vm809, %v900, 0
      %907 = vmatprep.subr.mxu0 0.0
      %908 = vmatpush1.msra.mxu0 %v902
      %909 = vmatprep.subr.mxu0 0.0
      %910 = vmatpush1.msra.mxu0 0.0
      %911 = vmatprep.subr.mxu0 0.0
      %912 = vmatpush1.msra.mxu0 0.0
      %913 = vmatprep.subr.mxu0 0.0
      %914 = vmatpush1.msra.mxu0 0.0
      %915 = vmatprep.subr.mxu0 0.0
      %916 = vmatpush1.msra.mxu0 0.0
      %917 = vmatprep.subr.mxu0 0.0
      %918 = vmatpush1.msra.mxu0 0.0
      %919 = vmatprep.subr.mxu0 0.0
      %920 = vmatpush1.msra.mxu0 0.0
      %921 = vmatprep.subr.mxu0 0.0
      %922 = vmatpush1.msra.mxu0 0.0
      %923 = vmatprep.subr.mxu0 0.0
      %924 = vmatpush1.msra.mxu0 0.0
      %925 = vmatprep.subr.mxu0 0.0
      %926 = vmatpush1.msra.mxu0 0.0
      %927 = vmatprep.subr.mxu0 0.0
      %928 = vmatpush1.msra.mxu0 0.0
      %929 = vmatprep.subr.mxu0 0.0
      %930 = vmatpush1.msra.mxu0 0.0
      %931 = vmatprep.subr.mxu0 0.0
      %932 = vmatpush1.msra.mxu0 0.0
      %933 = vmatprep.subr.mxu0 0.0
      %934 = vmatpush1.msra.mxu0 0.0
      %935 = vmatprep.subr.mxu0 0.0
      %936 = vmatpush1.msra.mxu0 0.0
      %937 = vmatprep.subr.mxu0 0.0
      %938 = vmatpush1.msra.mxu0 0.0
      %939 = vmatprep.subr.mxu0 0.0
      %940 = vmatpush1.msra.mxu0 0.0
      %941 = vmatprep.subr.mxu0 0.0
      %942 = vmatpush1.msra.mxu0 0.0
      %943 = vmatprep.subr.mxu0 0.0
      %944 = vmatpush1.msra.mxu0 0.0
      %945 = vmatprep.subr.mxu0 0.0
      %946 = vmatpush1.msra.mxu0 0.0
      %947 = vmatprep.subr.mxu0 0.0
      %948 = vmatpush1.msra.mxu0 0.0
      %949 = vmatprep.subr.mxu0 0.0
      %950 = vmatpush1.msra.mxu0 0.0
      %951 = vmatprep.subr.mxu0 0.0
      %952 = vmatpush1.msra.mxu0 0.0
      %953 = vmatprep.subr.mxu0 0.0
      %954 = vmatpush1.msra.mxu0 0.0
      %955 = vmatprep.subr.mxu0 0.0
      %956 = vmatpush1.msra.mxu0 0.0
      %957 = vmatprep.subr.mxu0 0.0
      %958 = vmatpush1.msra.mxu0 0.0
      %959 = vmatprep.subr.mxu0 0.0
      %960 = vmatpush1.msra.mxu0 0.0
      %961 = vmatprep.subr.mxu0 0.0
      %962 = vmatpush1.msra.mxu0 0.0
      %963 = vmatprep.subr.mxu0 0.0
      %964 = vmatpush1.msra.mxu0 0.0
      %965 = vmatprep.subr.mxu0 0.0
      %966 = vmatpush1.msra.mxu0 0.0
      %967 = vmatprep.subr.mxu0 0.0
      %968 = vmatpush1.msra.mxu0 0.0
      %969 = vmatprep.subr.mxu0 0.0
      %970 = vmatpush1.msra.mxu0 0.0
      %971 = vmatprep.mubr.f32.mxu0 0.0
      %972 = vmatmul.mubr.f32.gmra.mrb[0].mxu0 %v905
      %v973 = vpop.f32.mrb[0].mxu0
      %v974 = vadd.f32 0.0, %v973
      %v975 = vpop.f32.mrb[0].mxu0
      %976 = vdwg.mxu0
      %977 = vrot.lane.b32.xlu0 %v799, 120
      %v978 = vpop.permute.xlu0 %977
      %979 = vrot.lane.b32.xlu0 %v799, 88
      %v980 = vpop.permute.xlu0 %979
      %v981 = vsel %vm809, %v978, 0
      %v983 = vsel %vm809, %v980, 0
      %985 = vmatprep.subr.mxu0 0.0
      %986 = vmatpush1.xpose.msra.mxu0 %v983
      %987 = vmatprep.subr.mxu0 0.0
      %988 = vmatpush1.xpose.msra.mxu0 0.0
      %989 = vmatprep.subr.mxu0 0.0
      %990 = vmatpush1.xpose.msra.mxu0 0.0
      %991 = vmatprep.subr.mxu0 0.0
      %992 = vmatpush1.xpose.msra.mxu0 0.0
      %993 = vmatprep.subr.mxu0 0.0
      %994 = vmatpush1.xpose.msra.mxu0 0.0
      %995 = vmatprep.subr.mxu0 0.0
      %996 = vmatpush1.xpose.msra.mxu0 0.0
      %997 = vmatprep.subr.mxu0 0.0
      %998 = vmatpush1.xpose.msra.mxu0 0.0
      %999 = vmatprep.subr.mxu0 0.0
      %1000 = vmatpush1.xpose.msra.mxu0 0.0
      %1001 = vmatprep.subr.mxu0 0.0
      %1002 = vmatpush1.xpose.msra.mxu0 0.0
      %1003 = vmatprep.subr.mxu0 0.0
      %1004 = vmatpush1.xpose.msra.mxu0 0.0
      %1005 = vmatprep.subr.mxu0 0.0
      %1006 = vmatpush1.xpose.msra.mxu0 0.0
      %1007 = vmatprep.subr.mxu0 0.0
      %1008 = vmatpush1.xpose.msra.mxu0 0.0
      %1009 = vmatprep.subr.mxu0 0.0
      %1010 = vmatpush1.xpose.msra.mxu0 0.0
      %1011 = vmatprep.subr.mxu0 0.0
      %1012 = vmatpush1.xpose.msra.mxu0 0.0
      %1013 = vmatprep.subr.mxu0 0.0
      %1014 = vmatpush1.xpose.msra.mxu0 0.0
      %1015 = vmatprep.subr.mxu0 0.0
      %1016 = vmatpush1.xpose.msra.mxu0 0.0
      %1017 = vmatprep.subr.mxu0 0.0
      %1018 = vmatpush1.xpose.msra.mxu0 0.0
      %1019 = vmatprep.subr.mxu0 0.0
      %1020 = vmatpush1.xpose.msra.mxu0 0.0
      %1021 = vmatprep.subr.mxu0 0.0
      %1022 = vmatpush1.xpose.msra.mxu0 0.0
      %1023 = vmatprep.subr.mxu0 0.0
      %1024 = vmatpush1.xpose.msra.mxu0 0.0
      %1025 = vmatprep.subr.mxu0 0.0
      %1026 = vmatpush1.xpose.msra.mxu0 0.0
      %1027 = vmatprep.subr.mxu0 0.0
      %1028 = vmatpush1.xpose.msra.mxu0 0.0
      %1029 = vmatprep.subr.mxu0 0.0
      %1030 = vmatpush1.xpose.msra.mxu0 0.0
      %1031 = vmatprep.subr.mxu0 0.0
      %1032 = vmatpush1.xpose.msra.mxu0 0.0
      %1033 = vmatprep.subr.mxu0 0.0
      %1034 = vmatpush1.xpose.msra.mxu0 0.0
      %1035 = vmatprep.subr.mxu0 0.0
      %1036 = vmatpush1.xpose.msra.mxu0 0.0
      %1037 = vmatprep.subr.mxu0 0.0
      %1038 = vmatpush1.xpose.msra.mxu0 0.0
      %1039 = vmatprep.subr.mxu0 0.0
      %1040 = vmatpush1.xpose.msra.mxu0 0.0
      %1041 = vmatprep.subr.mxu0 0.0
      %1042 = vmatpush1.xpose.msra.mxu0 0.0
      %1043 = vmatprep.subr.mxu0 0.0
      %1044 = vmatpush1.xpose.msra.mxu0 0.0
      %1045 = vmatprep.subr.mxu0 0.0
      %1046 = vmatpush1.xpose.msra.mxu0 0.0
      %1047 = vmatprep.subr.mxu0 0.0
      %1048 = vmatpush1.xpose.msra.mxu0 0.0
      %1049 = vmatprep.mubr.f32.mxu0 0.0
      %1050 = vmatmul.mubr.f32.gmra.mrb[0].mxu0 %v981
      %v1051 = vpop.f32.mrb[0].mxu0
      %v1052 = vadd.f32 0.0, %v1051
      %v1053 = vpop.f32.mrb[0].mxu0
      %1054 = vdwg.mxu0
      %v1055 = vmul.f32 %v1052, 0.35355338
      %v1056 = vadd.f32 %v1055, %v888
      %v1057 = vsel %vm809, %v1056, -inf
      %1058 = vmax.xlane.f32.xlu0 %v1057
      %v1059 = vpop.xlane.xlu0 %1058
      %v1060 = vsub.f32 %v1056, %v1059
      %v1061 = vmul.f32 %v1060, 1.442695
      %v1062 = vpow.pop %v1061
      %v1063 = vsel %vm809, %v1062, 0.0
      %1064 = vadd.xlane.f32.xlu0 %v1063
      %v1065 = vpop.xlane.xlu0 %1064
      %v1066 = vrcp.pop %v1065
      %v1067 = vmul.f32 %v1062, %v1066
      %1068 = vrot.lane.b32.xlu0 %v799, 56
      %v1069 = vpop.permute.xlu0 %1068
      %v1072 = vsel %vm809, %v1067, 0
      %1074 = vmatprep.subr.mxu0 0.0
      %1075 = vmatpush1.msra.mxu0 %v1069
      %1076 = vmatprep.subr.mxu0 0.0
      %1077 = vmatpush1.msra.mxu0 0.0
      %1078 = vmatprep.subr.mxu0 0.0
      %1079 = vmatpush1.msra.mxu0 0.0
      %1080 = vmatprep.subr.mxu0 0.0
      %1081 = vmatpush1.msra.mxu0 0.0
      %1082 = vmatprep.subr.mxu0 0.0
      %1083 = vmatpush1.msra.mxu0 0.0
      %1084 = vmatprep.subr.mxu0 0.0
      %1085 = vmatpush1.msra.mxu0 0.0
      %1086 = vmatprep.subr.mxu0 0.0
      %1087 = vmatpush1.msra.mxu0 0.0
      %1088 = vmatprep.subr.mxu0 0.0
      %1089 = vmatpush1.msra.mxu0 0.0
      %1090 = vmatprep.subr.mxu0 0.0
      %1091 = vmatpush1.msra.mxu0 0.0
      %1092 = vmatprep.subr.mxu0 0.0
      %1093 = vmatpush1.msra.mxu0 0.0
      %1094 = vmatprep.subr.mxu0 0.0
      %1095 = vmatpush1.msra.mxu0 0.0
      %1096 = vmatprep.subr.mxu0 0.0
      %1097 = vmatpush1.msra.mxu0 0.0
      %1098 = vmatprep.subr.mxu0 0.0
      %1099 = vmatpush1.msra.mxu0 0.0
      %1100 = vmatprep.subr.mxu0 0.0
      %1101 = vmatpush1.msra.mxu0 0.0
      %1102 = vmatprep.subr.mxu0 0.0
      %1103 = vmatpush1.msra.mxu0 0.0
      %1104 = vmatprep.subr.mxu0 0.0
      %1105 = vmatpush1.msra.mxu0 0.0
      %1106 = vmatprep.subr.mxu0 0.0
      %1107 = vmatpush1.msra.mxu0 0.0
      %1108 = vmatprep.subr.mxu0 0.0
      %1109 = vmatpush1.msra.mxu0 0.0
      %1110 = vmatprep.subr.mxu0 0.0
      %1111 = vmatpush1.msra.mxu0 0.0
      %1112 = vmatprep.subr.mxu0 0.0
      %1113 = vmatpush1.msra.mxu0 0.0
      %1114 = vmatprep.subr.mxu0 0.0
      %1115 = vmatpush1.msra.mxu0 0.0
      %1116 = vmatprep.subr.mxu0 0.0
      %1117 = vmatpush1.msra.mxu0 0.0
      %1118 = vmatprep.subr.mxu0 0.0
      %1119 = vmatpush1.msra.mxu0 0.0
      %1120 = vmatprep.subr.mxu0 0.0
      %1121 = vmatpush1.msra.mxu0 0.0
      %1122 = vmatprep.subr.mxu0 0.0
      %1123 = vmatpush1.msra.mxu0 0.0
      %1124 = vmatprep.subr.mxu0 0.0
      %1125 = vmatpush1.msra.mxu0 0.0
      %1126 = vmatprep.subr.mxu0 0.0
      %1127 = vmatpush1.msra.mxu0 0.0
      %1128 = vmatprep.subr.mxu0 0.0
      %1129 = vmatpush1.msra.mxu0 0.0
      %1130 = vmatprep.subr.mxu0 0.0
      %1131 = vmatpush1.msra.mxu0 0.0
      %1132 = vmatprep.subr.mxu0 0.0
      %1133 = vmatpush1.msra.mxu0 0.0
      %1134 = vmatprep.subr.mxu0 0.0
      %1135 = vmatpush1.msra.mxu0 0.0
      %1136 = vmatprep.subr.mxu0 0.0
      %1137 = vmatpush1.msra.mxu0 0.0
      %1138 = vmatprep.mubr.f32.mxu0 0.0
      %1139 = vmatmul.mubr.f32.gmra.mrb[0].mxu0 %v1072
      %v1140 = vpop.f32.mrb[0].mxu0
      %v1141 = vadd.f32 0.0, %v1140
      %v1142 = vpop.f32.mrb[0].mxu0
      %1143 = vdwg.mxu0
      %1144 = vrot.lane.b32.xlu0 %v799, 112
      %v1145 = vpop.permute.xlu0 %1144
      %1146 = vrot.lane.b32.xlu0 %v799, 80
      %v1147 = vpop.permute.xlu0 %1146
      %v1148 = vsel %vm809, %v1145, 0
      %v1150 = vsel %vm809, %v1147, 0
      %1152 = vmatprep.subr.mxu0 0.0
      %1153 = vmatpush1.xpose.msra.mxu0 %v1150
      %1154 = vmatprep.subr.mxu0 0.0
      %1155 = vmatpush1.xpose.msra.mxu0 0.0
      %1156 = vmatprep.subr.mxu0 0.0
      %1157 = vmatpush1.xpose.msra.mxu0 0.0
      %1158 = vmatprep.subr.mxu0 0.0
      %1159 = vmatpush1.xpose.msra.mxu0 0.0
      %1160 = vmatprep.subr.mxu0 0.0
      %1161 = vmatpush1.xpose.msra.mxu0 0.0
      %1162 = vmatprep.subr.mxu0 0.0
      %1163 = vmatpush1.xpose.msra.mxu0 0.0
      %1164 = vmatprep.subr.mxu0 0.0
      %1165 = vmatpush1.xpose.msra.mxu0 0.0
      %1166 = vmatprep.subr.mxu0 0.0
      %1167 = vmatpush1.xpose.msra.mxu0 0.0
      %1168 = vmatprep.subr.mxu0 0.0
      %1169 = vmatpush1.xpose.msra.mxu0 0.0
      %1170 = vmatprep.subr.mxu0 0.0
      %1171 = vmatpush1.xpose.msra.mxu0 0.0
      %1172 = vmatprep.subr.mxu0 0.0
      %1173 = vmatpush1.xpose.msra.mxu0 0.0
      %1174 = vmatprep.subr.mxu0 0.0
      %1175 = vmatpush1.xpose.msra.mxu0 0.0
      %1176 = vmatprep.subr.mxu0 0.0
      %1177 = vmatpush1.xpose.msra.mxu0 0.0
      %1178 = vmatprep.subr.mxu0 0.0
      %1179 = vmatpush1.xpose.msra.mxu0 0.0
      %1180 = vmatprep.subr.mxu0 0.0
      %1181 = vmatpush1.xpose.msra.mxu0 0.0
      %1182 = vmatprep.subr.mxu0 0.0
      %1183 = vmatpush1.xpose.msra.mxu0 0.0
      %1184 = vmatprep.subr.mxu0 0.0
      %1185 = vmatpush1.xpose.msra.mxu0 0.0
      %1186 = vmatprep.subr.mxu0 0.0
      %1187 = vmatpush1.xpose.msra.mxu0 0.0
      %1188 = vmatprep.subr.mxu0 0.0
      %1189 = vmatpush1.xpose.msra.mxu0 0.0
      %1190 = vmatprep.subr.mxu0 0.0
      %1191 = vmatpush1.xpose.msra.mxu0 0.0
      %1192 = vmatprep.subr.mxu0 0.0
      %1193 = vmatpush1.xpose.msra.mxu0 0.0
      %1194 = vmatprep.subr.mxu0 0.0
      %1195 = vmatpush1.xpose.msra.mxu0 0.0
      %1196 = vmatprep.subr.mxu0 0.0
      %1197 = vmatpush1.xpose.msra.mxu0 0.0
      %1198 = vmatprep.subr.mxu0 0.0
      %1199 = vmatpush1.xpose.msra.mxu0 0.0
      %1200 = vmatprep.subr.mxu0 0.0
      %1201 = vmatpush1.xpose.msra.mxu0 0.0
      %1202 = vmatprep.subr.mxu0 0.0
      %1203 = vmatpush1.xpose.msra.mxu0 0.0
      %1204 = vmatprep.subr.mxu0 0.0
      %1205 = vmatpush1.xpose.msra.mxu0 0.0
      %1206 = vmatprep.subr.mxu0 0.0
      %1207 = vmatpush1.xpose.msra.mxu0 0.0
      %1208 = vmatprep.subr.mxu0 0.0
      %1209 = vmatpush1.xpose.msra.mxu0 0.0
      %1210 = vmatprep.subr.mxu0 0.0
      %1211 = vmatpush1.xpose.msra.mxu0 0.0
      %1212 = vmatprep.subr.mxu0 0.0
      %1213 = vmatpush1.xpose.msra.mxu0 0.0
      %1214 = vmatprep.subr.mxu0 0.0
      %1215 = vmatpush1.xpose.msra.mxu0 0.0
      %1216 = vmatprep.mubr.f32.mxu0 0.0
      %1217 = vmatmul.mubr.f32.gmra.mrb[0].mxu0 %v1148
      %v1218 = vpop.f32.mrb[0].mxu0
      %v1219 = vadd.f32 0.0, %v1218
      %v1220 = vpop.f32.mrb[0].mxu0
      %1221 = vdwg.mxu0
      %v1222 = vmul.f32 %v1219, 0.35355338
      %v1223 = vadd.f32 %v1222, %v888
      %v1224 = vsel %vm809, %v1223, -inf
      %1225 = vmax.xlane.f32.xlu0 %v1224
      %v1226 = vpop.xlane.xlu0 %1225
      %v1227 = vsub.f32 %v1223, %v1226
      %v1228 = vmul.f32 %v1227, 1.442695
      %v1229 = vpow.pop %v1228
      %v1230 = vsel %vm809, %v1229, 0.0
      %1231 = vadd.xlane.f32.xlu0 %v1230
      %v1232 = vpop.xlane.xlu0 %1231
      %v1233 = vrcp.pop %v1232
      %v1234 = vmul.f32 %v1229, %v1233
      %1235 = vrot.lane.b32.xlu0 %v799, 48
      %v1236 = vpop.permute.xlu0 %1235
      %v1239 = vsel %vm809, %v1234, 0
      %1241 = vmatprep.subr.mxu0 0.0
      %1242 = vmatpush1.msra.mxu0 %v1236
      %1243 = vmatprep.subr.mxu0 0.0
      %1244 = vmatpush1.msra.mxu0 0.0
      %1245 = vmatprep.subr.mxu0 0.0
      %1246 = vmatpush1.msra.mxu0 0.0
      %1247 = vmatprep.subr.mxu0 0.0
      %1248 = vmatpush1.msra.mxu0 0.0
      %1249 = vmatprep.subr.mxu0 0.0
      %1250 = vmatpush1.msra.mxu0 0.0
      %1251 = vmatprep.subr.mxu0 0.0
      %1252 = vmatpush1.msra.mxu0 0.0
      %1253 = vmatprep.subr.mxu0 0.0
      %1254 = vmatpush1.msra.mxu0 0.0
      %1255 = vmatprep.subr.mxu0 0.0
      %1256 = vmatpush1.msra.mxu0 0.0
      %1257 = vmatprep.subr.mxu0 0.0
      %1258 = vmatpush1.msra.mxu0 0.0
      %1259 = vmatprep.subr.mxu0 0.0
      %1260 = vmatpush1.msra.mxu0 0.0
      %1261 = vmatprep.subr.mxu0 0.0
      %1262 = vmatpush1.msra.mxu0 0.0
      %1263 = vmatprep.subr.mxu0 0.0
      %1264 = vmatpush1.msra.mxu0 0.0
      %1265 = vmatprep.subr.mxu0 0.0
      %1266 = vmatpush1.msra.mxu0 0.0
      %1267 = vmatprep.subr.mxu0 0.0
      %1268 = vmatpush1.msra.mxu0 0.0
      %1269 = vmatprep.subr.mxu0 0.0
      %1270 = vmatpush1.msra.mxu0 0.0
      %1271 = vmatprep.subr.mxu0 0.0
      %1272 = vmatpush1.msra.mxu0 0.0
      %1273 = vmatprep.subr.mxu0 0.0
      %1274 = vmatpush1.msra.mxu0 0.0
      %1275 = vmatprep.subr.mxu0 0.0
      %1276 = vmatpush1.msra.mxu0 0.0
      %1277 = vmatprep.subr.mxu0 0.0
      %1278 = vmatpush1.msra.mxu0 0.0
      %1279 = vmatprep.subr.mxu0 0.0
      %1280 = vmatpush1.msra.mxu0 0.0
      %1281 = vmatprep.subr.mxu0 0.0
      %1282 = vmatpush1.msra.mxu0 0.0
      %1283 = vmatprep.subr.mxu0 0.0
      %1284 = vmatpush1.msra.mxu0 0.0
      %1285 = vmatprep.subr.mxu0 0.0
      %1286 = vmatpush1.msra.mxu0 0.0
      %1287 = vmatprep.subr.mxu0 0.0
      %1288 = vmatpush1.msra.mxu0 0.0
      %1289 = vmatprep.subr.mxu0 0.0
      %1290 = vmatpush1.msra.mxu0 0.0
      %1291 = vmatprep.subr.mxu0 0.0
      %1292 = vmatpush1.msra.mxu0 0.0
      %1293 = vmatprep.subr.mxu0 0.0
      %1294 = vmatpush1.msra.mxu0 0.0
      %1295 = vmatprep.subr.mxu0 0.0
      %1296 = vmatpush1.msra.mxu0 0.0
      %1297 = vmatprep.subr.mxu0 0.0
      %1298 = vmatpush1.msra.mxu0 0.0
      %1299 = vmatprep.subr.mxu0 0.0
      %1300 = vmatpush1.msra.mxu0 0.0
      %1301 = vmatprep.subr.mxu0 0.0
      %1302 = vmatpush1.msra.mxu0 0.0
      %1303 = vmatprep.subr.mxu0 0.0
      %1304 = vmatpush1.msra.mxu0 0.0
      %1305 = vmatprep.mubr.f32.mxu0 0.0
      %1306 = vmatmul.mubr.f32.gmra.mrb[0].mxu0 %v1239
      %v1307 = vpop.f32.mrb[0].mxu0
      %v1308 = vadd.f32 0.0, %v1307
      %v1309 = vpop.f32.mrb[0].mxu0
      %1310 = vdwg.mxu0
      %1311 = vrot.lane.b32.xlu0 %v799, 104
      %v1312 = vpop.permute.xlu0 %1311
      %1313 = vrot.lane.b32.xlu0 %v799, 72
      %v1314 = vpop.permute.xlu0 %1313
      %v1315 = vsel %vm809, %v1312, 0
      %v1317 = vsel %vm809, %v1314, 0
      %1319 = vmatprep.subr.mxu0 0.0
      %1320 = vmatpush1.xpose.msra.mxu0 %v1317
      %1321 = vmatprep.subr.mxu0 0.0
      %1322 = vmatpush1.xpose.msra.mxu0 0.0
      %1323 = vmatprep.subr.mxu0 0.0
      %1324 = vmatpush1.xpose.msra.mxu0 0.0
      %1325 = vmatprep.subr.mxu0 0.0
      %1326 = vmatpush1.xpose.msra.mxu0 0.0
      %1327 = vmatprep.subr.mxu0 0.0
      %1328 = vmatpush1.xpose.msra.mxu0 0.0
      %1329 = vmatprep.subr.mxu0 0.0
      %1330 = vmatpush1.xpose.msra.mxu0 0.0
      %1331 = vmatprep.subr.mxu0 0.0
      %1332 = vmatpush1.xpose.msra.mxu0 0.0
      %1333 = vmatprep.subr.mxu0 0.0
      %1334 = vmatpush1.xpose.msra.mxu0 0.0
      %1335 = vmatprep.subr.mxu0 0.0
      %1336 = vmatpush1.xpose.msra.mxu0 0.0
      %1337 = vmatprep.subr.mxu0 0.0
      %1338 = vmatpush1.xpose.msra.mxu0 0.0
      %1339 = vmatprep.subr.mxu0 0.0
      %1340 = vmatpush1.xpose.msra.mxu0 0.0
      %1341 = vmatprep.subr.mxu0 0.0
      %1342 = vmatpush1.xpose.msra.mxu0 0.0
      %1343 = vmatprep.subr.mxu0 0.0
      %1344 = vmatpush1.xpose.msra.mxu0 0.0
      %1345 = vmatprep.subr.mxu0 0.0
      %1346 = vmatpush1.xpose.msra.mxu0 0.0
      %1347 = vmatprep.subr.mxu0 0.0
      %1348 = vmatpush1.xpose.msra.mxu0 0.0
      %1349 = vmatprep.subr.mxu0 0.0
      %1350 = vmatpush1.xpose.msra.mxu0 0.0
      %1351 = vmatprep.subr.mxu0 0.0
      %1352 = vmatpush1.xpose.msra.mxu0 0.0
      %1353 = vmatprep.subr.mxu0 0.0
      %1354 = vmatpush1.xpose.msra.mxu0 0.0
      %1355 = vmatprep.subr.mxu0 0.0
      %1356 = vmatpush1.xpose.msra.mxu0 0.0
      %1357 = vmatprep.subr.mxu0 0.0
      %1358 = vmatpush1.xpose.msra.mxu0 0.0
      %1359 = vmatprep.subr.mxu0 0.0
      %1360 = vmatpush1.xpose.msra.mxu0 0.0
      %1361 = vmatprep.subr.mxu0 0.0
      %1362 = vmatpush1.xpose.msra.mxu0 0.0
      %1363 = vmatprep.subr.mxu0 0.0
      %1364 = vmatpush1.xpose.msra.mxu0 0.0
      %1365 = vmatprep.subr.mxu0 0.0
      %1366 = vmatpush1.xpose.msra.mxu0 0.0
      %1367 = vmatprep.subr.mxu0 0.0
      %1368 = vmatpush1.xpose.msra.mxu0 0.0
      %1369 = vmatprep.subr.mxu0 0.0
      %1370 = vmatpush1.xpose.msra.mxu0 0.0
      %1371 = vmatprep.subr.mxu0 0.0
      %1372 = vmatpush1.xpose.msra.mxu0 0.0
      %1373 = vmatprep.subr.mxu0 0.0
      %1374 = vmatpush1.xpose.msra.mxu0 0.0
      %1375 = vmatprep.subr.mxu0 0.0
      %1376 = vmatpush1.xpose.msra.mxu0 0.0
      %1377 = vmatprep.subr.mxu0 0.0
      %1378 = vmatpush1.xpose.msra.mxu0 0.0
      %1379 = vmatprep.subr.mxu0 0.0
      %1380 = vmatpush1.xpose.msra.mxu0 0.0
      %1381 = vmatprep.subr.mxu0 0.0
      %1382 = vmatpush1.xpose.msra.mxu0 0.0
      %1383 = vmatprep.mubr.f32.mxu0 0.0
      %1384 = vmatmul.mubr.f32.gmra.mrb[0].mxu0 %v1315
      %v1385 = vpop.f32.mrb[0].mxu0
      %v1386 = vadd.f32 0.0, %v1385
      %v1387 = vpop.f32.mrb[0].mxu0
      %1388 = vdwg.mxu0
      %v1389 = vmul.f32 %v1386, 0.35355338
      %v1390 = vadd.f32 %v1389, %v888
      %v1391 = vsel %vm809, %v1390, -inf
      %1392 = vmax.xlane.f32.xlu0 %v1391
      %v1393 = vpop.xlane.xlu0 %1392
      %v1394 = vsub.f32 %v1390, %v1393
      %v1395 = vmul.f32 %v1394, 1.442695
      %v1396 = vpow.pop %v1395
      %v1397 = vsel %vm809, %v1396, 0.0
      %1398 = vadd.xlane.f32.xlu0 %v1397
      %v1399 = vpop.xlane.xlu0 %1398
      %v1400 = vrcp.pop %v1399
      %v1401 = vmul.f32 %v1396, %v1400
      %1402 = vrot.lane.b32.xlu0 %v799, 40
      %v1403 = vpop.permute.xlu0 %1402
      %v1406 = vsel %vm809, %v1401, 0
      %1408 = vmatprep.subr.mxu0 0.0
      %1409 = vmatpush1.msra.mxu0 %v1403
      %1410 = vmatprep.subr.mxu0 0.0
      %1411 = vmatpush1.msra.mxu0 0.0
      %1412 = vmatprep.subr.mxu0 0.0
      %1413 = vmatpush1.msra.mxu0 0.0
      %1414 = vmatprep.subr.mxu0 0.0
      %1415 = vmatpush1.msra.mxu0 0.0
      %1416 = vmatprep.subr.mxu0 0.0
      %1417 = vmatpush1.msra.mxu0 0.0
      %1418 = vmatprep.subr.mxu0 0.0
      %1419 = vmatpush1.msra.mxu0 0.0
      %1420 = vmatprep.subr.mxu0 0.0
      %1421 = vmatpush1.msra.mxu0 0.0
      %1422 = vmatprep.subr.mxu0 0.0
      %1423 = vmatpush1.msra.mxu0 0.0
      %1424 = vmatprep.subr.mxu0 0.0
      %1425 = vmatpush1.msra.mxu0 0.0
      %1426 = vmatprep.subr.mxu0 0.0
      %1427 = vmatpush1.msra.mxu0 0.0
      %1428 = vmatprep.subr.mxu0 0.0
      %1429 = vmatpush1.msra.mxu0 0.0
      %1430 = vmatprep.subr.mxu0 0.0
      %1431 = vmatpush1.msra.mxu0 0.0
      %1432 = vmatprep.subr.mxu0 0.0
      %1433 = vmatpush1.msra.mxu0 0.0
      %1434 = vmatprep.subr.mxu0 0.0
      %1435 = vmatpush1.msra.mxu0 0.0
      %1436 = vmatprep.subr.mxu0 0.0
      %1437 = vmatpush1.msra.mxu0 0.0
      %1438 = vmatprep.subr.mxu0 0.0
      %1439 = vmatpush1.msra.mxu0 0.0
      %1440 = vmatprep.subr.mxu0 0.0
      %1441 = vmatpush1.msra.mxu0 0.0
      %1442 = vmatprep.subr.mxu0 0.0
      %1443 = vmatpush1.msra.mxu0 0.0
      %1444 = vmatprep.subr.mxu0 0.0
      %1445 = vmatpush1.msra.mxu0 0.0
      %1446 = vmatprep.subr.mxu0 0.0
      %1447 = vmatpush1.msra.mxu0 0.0
      %1448 = vmatprep.subr.mxu0 0.0
      %1449 = vmatpush1.msra.mxu0 0.0
      %1450 = vmatprep.subr.mxu0 0.0
      %1451 = vmatpush1.msra.mxu0 0.0
      %1452 = vmatprep.subr.mxu0 0.0
      %1453 = vmatpush1.msra.mxu0 0.0
      %1454 = vmatprep.subr.mxu0 0.0
      %1455 = vmatpush1.msra.mxu0 0.0
      %1456 = vmatprep.subr.mxu0 0.0
      %1457 = vmatpush1.msra.mxu0 0.0
      %1458 = vmatprep.subr.mxu0 0.0
      %1459 = vmatpush1.msra.mxu0 0.0
      %1460 = vmatprep.subr.mxu0 0.0
      %1461 = vmatpush1.msra.mxu0 0.0
      %1462 = vmatprep.subr.mxu0 0.0
      %1463 = vmatpush1.msra.mxu0 0.0
      %1464 = vmatprep.subr.mxu0 0.0
      %1465 = vmatpush1.msra.mxu0 0.0
      %1466 = vmatprep.subr.mxu0 0.0
      %1467 = vmatpush1.msra.mxu0 0.0
      %1468 = vmatprep.subr.mxu0 0.0
      %1469 = vmatpush1.msra.mxu0 0.0
      %1470 = vmatprep.subr.mxu0 0.0
      %1471 = vmatpush1.msra.mxu0 0.0
      %1472 = vmatprep.mubr.f32.mxu0 0.0
      %1473 = vmatmul.mubr.f32.gmra.mrb[0].mxu0 %v1406
      %v1474 = vpop.f32.mrb[0].mxu0
      %v1475 = vadd.f32 0.0, %v1474
      %v1476 = vpop.f32.mrb[0].mxu0
      %1477 = vdwg.mxu0
      %1479 = vrot.lane.b32.xlu0 %v1141, 8
      %v1480 = vpop.permute.xlu0 %1479
      %1483 = vrot.lane.b32.xlu0 %v1308, 16
      %v1484 = vpop.permute.xlu0 %1483
      %1487 = vrot.lane.b32.xlu0 %v1475, 24
      %v1488 = vpop.permute.xlu0 %1487
      %v1490 = vsel %vm809, %v974, %v1480
      %vm1491 = vcmask 130048
      %v1492 = vsel %vm1491, %v1490, %v1484
      %vm1493 = vcmask 195584
      %v1494 = vsel %vm1493, %v1492, %v1488
      %v1495 = vld [vmem:[%s1 + $0x1] sm:$0x1]
      %1497 = vrot.lane.b32.xlu0 %v802, 96
      %v1498 = vpop.permute.xlu0 %1497
      %v1499 = vsel %vm809, %v802, 0
      %v1501 = vsel %vm809, %v1498, 0
      %1503 = vmatprep.subr.mxu0 0.0
      %1504 = vmatpush1.xpose.msra.mxu0 %v1501
      %1505 = vmatprep.subr.mxu0 0.0
      %1506 = vmatpush1.xpose.msra.mxu0 0.0
      %1507 = vmatprep.subr.mxu0 0.0
      %1508 = vmatpush1.xpose.msra.mxu0 0.0
      %1509 = vmatprep.subr.mxu0 0.0
      %1510 = vmatpush1.xpose.msra.mxu0 0.0
      %1511 = vmatprep.subr.mxu0 0.0
      %1512 = vmatpush1.xpose.msra.mxu0 0.0
      %1513 = vmatprep.subr.mxu0 0.0
      %1514 = vmatpush1.xpose.msra.mxu0 0.0
      %1515 = vmatprep.subr.mxu0 0.0
      %1516 = vmatpush1.xpose.msra.mxu0 0.0
      %1517 = vmatprep.subr.mxu0 0.0
      %1518 = vmatpush1.xpose.msra.mxu0 0.0
      %1519 = vmatprep.subr.mxu0 0.0
      %1520 = vmatpush1.xpose.msra.mxu0 0.0
      %1521 = vmatprep.subr.mxu0 0.0
      %1522 = vmatpush1.xpose.msra.mxu0 0.0
      %1523 = vmatprep.subr.mxu0 0.0
      %1524 = vmatpush1.xpose.msra.mxu0 0.0
      %1525 = vmatprep.subr.mxu0 0.0
      %1526 = vmatpush1.xpose.msra.mxu0 0.0
      %1527 = vmatprep.subr.mxu0 0.0
      %1528 = vmatpush1.xpose.msra.mxu0 0.0
      %1529 = vmatprep.subr.mxu0 0.0
      %1530 = vmatpush1.xpose.msra.mxu0 0.0
      %1531 = vmatprep.subr.mxu0 0.0
      %1532 = vmatpush1.xpose.msra.mxu0 0.0
      %1533 = vmatprep.subr.mxu0 0.0
      %1534 = vmatpush1.xpose.msra.mxu0 0.0
      %1535 = vmatprep.subr.mxu0 0.0
      %1536 = vmatpush1.xpose.msra.mxu0 0.0
      %1537 = vmatprep.subr.mxu0 0.0
      %1538 = vmatpush1.xpose.msra.mxu0 0.0
      %1539 = vmatprep.subr.mxu0 0.0
      %1540 = vmatpush1.xpose.msra.mxu0 0.0
      %1541 = vmatprep.subr.mxu0 0.0
      %1542 = vmatpush1.xpose.msra.mxu0 0.0
      %1543 = vmatprep.subr.mxu0 0.0
      %1544 = vmatpush1.xpose.msra.mxu0 0.0
      %1545 = vmatprep.subr.mxu0 0.0
      %1546 = vmatpush1.xpose.msra.mxu0 0.0
      %1547 = vmatprep.subr.mxu0 0.0
      %1548 = vmatpush1.xpose.msra.mxu0 0.0
      %1549 = vmatprep.subr.mxu0 0.0
      %1550 = vmatpush1.xpose.msra.mxu0 0.0
      %1551 = vmatprep.subr.mxu0 0.0
      %1552 = vmatpush1.xpose.msra.mxu0 0.0
      %1553 = vmatprep.subr.mxu0 0.0
      %1554 = vmatpush1.xpose.msra.mxu0 0.0
      %1555 = vmatprep.subr.mxu0 0.0
      %1556 = vmatpush1.xpose.msra.mxu0 0.0
      %1557 = vmatprep.subr.mxu0 0.0
      %1558 = vmatpush1.xpose.msra.mxu0 0.0
      %1559 = vmatprep.subr.mxu0 0.0
      %1560 = vmatpush1.xpose.msra.mxu0 0.0
      %1561 = vmatprep.subr.mxu0 0.0
      %1562 = vmatpush1.xpose.msra.mxu0 0.0
      %1563 = vmatprep.subr.mxu0 0.0
      %1564 = vmatpush1.xpose.msra.mxu0 0.0
      %1565 = vmatprep.subr.mxu0 0.0
      %1566 = vmatpush1.xpose.msra.mxu0 0.0
      %1567 = vmatprep.mubr.f32.mxu0 0.0
      %1568 = vmatmul.mubr.f32.gmra.mrb[0].mxu0 %v1499
      %v1569 = vpop.f32.mrb[0].mxu0
      %v1570 = vadd.f32 0.0, %v1569
      %v1571 = vpop.f32.mrb[0].mxu0
      %1572 = vdwg.mxu0
      %v1573 = vmul.f32 %v1570, 0.35355338
      %v1574 = vlaneseq
      %v1575 = vshrl.u32 %v1574, 7
      %v1576 = vsub.s32 0, %v1575
      %v1577 = vrot.slane %v1495, %v1576
      %v1578 = vadd.f32 %v1573, %v1577
      %v1579 = vsel %vm809, %v1578, -inf
      %1580 = vmax.xlane.f32.xlu0 %v1579
      %v1581 = vpop.xlane.xlu0 %1580
      %v1582 = vsub.f32 %v1578, %v1581
      %v1583 = vmul.f32 %v1582, 1.442695
      %v1584 = vpow.pop %v1583
      %v1585 = vsel %vm809, %v1584, 0.0
      %1586 = vadd.xlane.f32.xlu0 %v1585
      %v1587 = vpop.xlane.xlu0 %1586
      %v1588 = vrcp.pop %v1587
      %v1589 = vmul.f32 %v1584, %v1588
      %1590 = vrot.lane.b32.xlu0 %v802, 64
      %v1591 = vpop.permute.xlu0 %1590
      %v1594 = vsel %vm809, %v1589, 0
      %1596 = vmatprep.subr.mxu0 0.0
      %1597 = vmatpush1.msra.mxu0 %v1591
      %1598 = vmatprep.subr.mxu0 0.0
      %1599 = vmatpush1.msra.mxu0 0.0
      %1600 = vmatprep.subr.mxu0 0.0
      %1601 = vmatpush1.msra.mxu0 0.0
      %1602 = vmatprep.subr.mxu0 0.0
      %1603 = vmatpush1.msra.mxu0 0.0
      %1604 = vmatprep.subr.mxu0 0.0
      %1605 = vmatpush1.msra.mxu0 0.0
      %1606 = vmatprep.subr.mxu0 0.0
      %1607 = vmatpush1.msra.mxu0 0.0
      %1608 = vmatprep.subr.mxu0 0.0
      %1609 = vmatpush1.msra.mxu0 0.0
      %1610 = vmatprep.subr.mxu0 0.0
      %1611 = vmatpush1.msra.mxu0 0.0
      %1612 = vmatprep.subr.mxu0 0.0
      %1613 = vmatpush1.msra.mxu0 0.0
      %1614 = vmatprep.subr.mxu0 0.0
      %1615 = vmatpush1.msra.mxu0 0.0
      %1616 = vmatprep.subr.mxu0 0.0
      %1617 = vmatpush1.msra.mxu0 0.0
      %1618 = vmatprep.subr.mxu0 0.0
      %1619 = vmatpush1.msra.mxu0 0.0
      %1620 = vmatprep.subr.mxu0 0.0
      %1621 = vmatpush1.msra.mxu0 0.0
      %1622 = vmatprep.subr.mxu0 0.0
      %1623 = vmatpush1.msra.mxu0 0.0
      %1624 = vmatprep.subr.mxu0 0.0
      %1625 = vmatpush1.msra.mxu0 0.0
      %1626 = vmatprep.subr.mxu0 0.0
      %1627 = vmatpush1.msra.mxu0 0.0
      %1628 = vmatprep.subr.mxu0 0.0
      %1629 = vmatpush1.msra.mxu0 0.0
      %1630 = vmatprep.subr.mxu0 0.0
      %1631 = vmatpush1.msra.mxu0 0.0
      %1632 = vmatprep.subr.mxu0 0.0
      %1633 = vmatpush1.msra.mxu0 0.0
      %1634 = vmatprep.subr.mxu0 0.0
      %1635 = vmatpush1.msra.mxu0 0.0
      %1636 = vmatprep.subr.mxu0 0.0
      %1637 = vmatpush1.msra.mxu0 0.0
      %1638 = vmatprep.subr.mxu0 0.0
      %1639 = vmatpush1.msra.mxu0 0.0
      %1640 = vmatprep.subr.mxu0 0.0
      %1641 = vmatpush1.msra.mxu0 0.0
      %1642 = vmatprep.subr.mxu0 0.0
      %1643 = vmatpush1.msra.mxu0 0.0
      %1644 = vmatprep.subr.mxu0 0.0
      %1645 = vmatpush1.msra.mxu0 0.0
      %1646 = vmatprep.subr.mxu0 0.0
      %1647 = vmatpush1.msra.mxu0 0.0
      %1648 = vmatprep.subr.mxu0 0.0
      %1649 = vmatpush1.msra.mxu0 0.0
      %1650 = vmatprep.subr.mxu0 0.0
      %1651 = vmatpush1.msra.mxu0 0.0
      %1652 = vmatprep.subr.mxu0 0.0
      %1653 = vmatpush1.msra.mxu0 0.0
      %1654 = vmatprep.subr.mxu0 0.0
      %1655 = vmatpush1.msra.mxu0 0.0
      %1656 = vmatprep.subr.mxu0 0.0
      %1657 = vmatpush1.msra.mxu0 0.0
      %1658 = vmatprep.subr.mxu0 0.0
      %1659 = vmatpush1.msra.mxu0 0.0
      %1660 = vmatprep.mubr.f32.mxu0 0.0
      %1661 = vmatmul.mubr.f32.gmra.mrb[0].mxu0 %v1594
      %v1662 = vpop.f32.mrb[0].mxu0
      %v1663 = vadd.f32 0.0, %v1662
      %v1664 = vpop.f32.mrb[0].mxu0
      %1665 = vdwg.mxu0
      %1666 = vrot.lane.b32.xlu0 %v802, 120
      %v1667 = vpop.permute.xlu0 %1666
      %1668 = vrot.lane.b32.xlu0 %v802, 88
      %v1669 = vpop.permute.xlu0 %1668
      %v1670 = vsel %vm809, %v1667, 0
      %v1672 = vsel %vm809, %v1669, 0
      %1674 = vmatprep.subr.mxu0 0.0
      %1675 = vmatpush1.xpose.msra.mxu0 %v1672
      %1676 = vmatprep.subr.mxu0 0.0
      %1677 = vmatpush1.xpose.msra.mxu0 0.0
      %1678 = vmatprep.subr.mxu0 0.0
      %1679 = vmatpush1.xpose.msra.mxu0 0.0
      %1680 = vmatprep.subr.mxu0 0.0
      %1681 = vmatpush1.xpose.msra.mxu0 0.0
      %1682 = vmatprep.subr.mxu0 0.0
      %1683 = vmatpush1.xpose.msra.mxu0 0.0
      %1684 = vmatprep.subr.mxu0 0.0
      %1685 = vmatpush1.xpose.msra.mxu0 0.0
      %1686 = vmatprep.subr.mxu0 0.0
      %1687 = vmatpush1.xpose.msra.mxu0 0.0
      %1688 = vmatprep.subr.mxu0 0.0
      %1689 = vmatpush1.xpose.msra.mxu0 0.0
      %1690 = vmatprep.subr.mxu0 0.0
      %1691 = vmatpush1.xpose.msra.mxu0 0.0
      %1692 = vmatprep.subr.mxu0 0.0
      %1693 = vmatpush1.xpose.msra.mxu0 0.0
      %1694 = vmatprep.subr.mxu0 0.0
      %1695 = vmatpush1.xpose.msra.mxu0 0.0
      %1696 = vmatprep.subr.mxu0 0.0
      %1697 = vmatpush1.xpose.msra.mxu0 0.0
      %1698 = vmatprep.subr.mxu0 0.0
      %1699 = vmatpush1.xpose.msra.mxu0 0.0
      %1700 = vmatprep.subr.mxu0 0.0
      %1701 = vmatpush1.xpose.msra.mxu0 0.0
      %1702 = vmatprep.subr.mxu0 0.0
      %1703 = vmatpush1.xpose.msra.mxu0 0.0
      %1704 = vmatprep.subr.mxu0 0.0
      %1705 = vmatpush1.xpose.msra.mxu0 0.0
      %1706 = vmatprep.subr.mxu0 0.0
      %1707 = vmatpush1.xpose.msra.mxu0 0.0
      %1708 = vmatprep.subr.mxu0 0.0
      %1709 = vmatpush1.xpose.msra.mxu0 0.0
      %1710 = vmatprep.subr.mxu0 0.0
      %1711 = vmatpush1.xpose.msra.mxu0 0.0
      %1712 = vmatprep.subr.mxu0 0.0
      %1713 = vmatpush1.xpose.msra.mxu0 0.0
      %1714 = vmatprep.subr.mxu0 0.0
      %1715 = vmatpush1.xpose.msra.mxu0 0.0
      %1716 = vmatprep.subr.mxu0 0.0
      %1717 = vmatpush1.xpose.msra.mxu0 0.0
      %1718 = vmatprep.subr.mxu0 0.0
      %1719 = vmatpush1.xpose.msra.mxu0 0.0
      %1720 = vmatprep.subr.mxu0 0.0
      %1721 = vmatpush1.xpose.msra.mxu0 0.0
      %1722 = vmatprep.subr.mxu0 0.0
      %1723 = vmatpush1.xpose.msra.mxu0 0.0
      %1724 = vmatprep.subr.mxu0 0.0
      %1725 = vmatpush1.xpose.msra.mxu0 0.0
      %1726 = vmatprep.subr.mxu0 0.0
      %1727 = vmatpush1.xpose.msra.mxu0 0.0
      %1728 = vmatprep.subr.mxu0 0.0
      %1729 = vmatpush1.xpose.msra.mxu0 0.0
      %1730 = vmatprep.subr.mxu0 0.0
      %1731 = vmatpush1.xpose.msra.mxu0 0.0
      %1732 = vmatprep.subr.mxu0 0.0
      %1733 = vmatpush1.xpose.msra.mxu0 0.0
      %1734 = vmatprep.subr.mxu0 0.0
      %1735 = vmatpush1.xpose.msra.mxu0 0.0
      %1736 = vmatprep.subr.mxu0 0.0
      %1737 = vmatpush1.xpose.msra.mxu0 0.0
      %1738 = vmatprep.mubr.f32.mxu0 0.0
      %1739 = vmatmul.mubr.f32.gmra.mrb[0].mxu0 %v1670
      %v1740 = vpop.f32.mrb[0].mxu0
      %v1741 = vadd.f32 0.0, %v1740
      %v1742 = vpop.f32.mrb[0].mxu0
      %1743 = vdwg.mxu0
      %v1744 = vmul.f32 %v1741, 0.35355338
      %v1745 = vadd.f32 %v1744, %v1577
      %v1746 = vsel %vm809, %v1745, -inf
      %1747 = vmax.xlane.f32.xlu0 %v1746
      %v1748 = vpop.xlane.xlu0 %1747
      %v1749 = vsub.f32 %v1745, %v1748
      %v1750 = vmul.f32 %v1749, 1.442695
      %v1751 = vpow.pop %v1750
      %v1752 = vsel %vm809, %v1751, 0.0
      %1753 = vadd.xlane.f32.xlu0 %v1752
      %v1754 = vpop.xlane.xlu0 %1753
      %v1755 = vrcp.pop %v1754
      %v1756 = vmul.f32 %v1751, %v1755
      %1757 = vrot.lane.b32.xlu0 %v802, 56
      %v1758 = vpop.permute.xlu0 %1757
      %v1761 = vsel %vm809, %v1756, 0
      %1763 = vmatprep.subr.mxu0 0.0
      %1764 = vmatpush1.msra.mxu0 %v1758
      %1765 = vmatprep.subr.mxu0 0.0
      %1766 = vmatpush1.msra.mxu0 0.0
      %1767 = vmatprep.subr.mxu0 0.0
      %1768 = vmatpush1.msra.mxu0 0.0
      %1769 = vmatprep.subr.mxu0 0.0
      %1770 = vmatpush1.msra.mxu0 0.0
      %1771 = vmatprep.subr.mxu0 0.0
      %1772 = vmatpush1.msra.mxu0 0.0
      %1773 = vmatprep.subr.mxu0 0.0
      %1774 = vmatpush1.msra.mxu0 0.0
      %1775 = vmatprep.subr.mxu0 0.0
      %1776 = vmatpush1.msra.mxu0 0.0
      %1777 = vmatprep.subr.mxu0 0.0
      %1778 = vmatpush1.msra.mxu0 0.0
      %1779 = vmatprep.subr.mxu0 0.0
      %1780 = vmatpush1.msra.mxu0 0.0
      %1781 = vmatprep.subr.mxu0 0.0
      %1782 = vmatpush1.msra.mxu0 0.0
      %1783 = vmatprep.subr.mxu0 0.0
      %1784 = vmatpush1.msra.mxu0 0.0
      %1785 = vmatprep.subr.mxu0 0.0
      %1786 = vmatpush1.msra.mxu0 0.0
      %1787 = vmatprep.subr.mxu0 0.0
      %1788 = vmatpush1.msra.mxu0 0.0
      %1789 = vmatprep.subr.mxu0 0.0
      %1790 = vmatpush1.msra.mxu0 0.0
      %1791 = vmatprep.subr.mxu0 0.0
      %1792 = vmatpush1.msra.mxu0 0.0
      %1793 = vmatprep.subr.mxu0 0.0
      %1794 = vmatpush1.msra.mxu0 0.0
      %1795 = vmatprep.subr.mxu0 0.0
      %1796 = vmatpush1.msra.mxu0 0.0
      %1797 = vmatprep.subr.mxu0 0.0
      %1798 = vmatpush1.msra.mxu0 0.0
      %1799 = vmatprep.subr.mxu0 0.0
      %1800 = vmatpush1.msra.mxu0 0.0
      %1801 = vmatprep.subr.mxu0 0.0
      %1802 = vmatpush1.msra.mxu0 0.0
      %1803 = vmatprep.subr.mxu0 0.0
      %1804 = vmatpush1.msra.mxu0 0.0
      %1805 = vmatprep.subr.mxu0 0.0
      %1806 = vmatpush1.msra.mxu0 0.0
      %1807 = vmatprep.subr.mxu0 0.0
      %1808 = vmatpush1.msra.mxu0 0.0
      %1809 = vmatprep.subr.mxu0 0.0
      %1810 = vmatpush1.msra.mxu0 0.0
      %1811 = vmatprep.subr.mxu0 0.0
      %1812 = vmatpush1.msra.mxu0 0.0
      %1813 = vmatprep.subr.mxu0 0.0
      %1814 = vmatpush1.msra.mxu0 0.0
      %1815 = vmatprep.subr.mxu0 0.0
      %1816 = vmatpush1.msra.mxu0 0.0
      %1817 = vmatprep.subr.mxu0 0.0
      %1818 = vmatpush1.msra.mxu0 0.0
      %1819 = vmatprep.subr.mxu0 0.0
      %1820 = vmatpush1.msra.mxu0 0.0
      %1821 = vmatprep.subr.mxu0 0.0
      %1822 = vmatpush1.msra.mxu0 0.0
      %1823 = vmatprep.subr.mxu0 0.0
      %1824 = vmatpush1.msra.mxu0 0.0
      %1825 = vmatprep.subr.mxu0 0.0
      %1826 = vmatpush1.msra.mxu0 0.0
      %1827 = vmatprep.mubr.f32.mxu0 0.0
      %1828 = vmatmul.mubr.f32.gmra.mrb[0].mxu0 %v1761
      %v1829 = vpop.f32.mrb[0].mxu0
      %v1830 = vadd.f32 0.0, %v1829
      %v1831 = vpop.f32.mrb[0].mxu0
      %1832 = vdwg.mxu0
      %1833 = vrot.lane.b32.xlu0 %v802, 112
      %v1834 = vpop.permute.xlu0 %1833
      %1835 = vrot.lane.b32.xlu0 %v802, 80
      %v1836 = vpop.permute.xlu0 %1835
      %v1837 = vsel %vm809, %v1834, 0
      %v1839 = vsel %vm809, %v1836, 0
      %1841 = vmatprep.subr.mxu0 0.0
      %1842 = vmatpush1.xpose.msra.mxu0 %v1839
      %1843 = vmatprep.subr.mxu0 0.0
      %1844 = vmatpush1.xpose.msra.mxu0 0.0
      %1845 = vmatprep.subr.mxu0 0.0
      %1846 = vmatpush1.xpose.msra.mxu0 0.0
      %1847 = vmatprep.subr.mxu0 0.0
      %1848 = vmatpush1.xpose.msra.mxu0 0.0
      %1849 = vmatprep.subr.mxu0 0.0
      %1850 = vmatpush1.xpose.msra.mxu0 0.0
      %1851 = vmatprep.subr.mxu0 0.0
      %1852 = vmatpush1.xpose.msra.mxu0 0.0
      %1853 = vmatprep.subr.mxu0 0.0
      %1854 = vmatpush1.xpose.msra.mxu0 0.0
      %1855 = vmatprep.subr.mxu0 0.0
      %1856 = vmatpush1.xpose.msra.mxu0 0.0
      %1857 = vmatprep.subr.mxu0 0.0
      %1858 = vmatpush1.xpose.msra.mxu0 0.0
      %1859 = vmatprep.subr.mxu0 0.0
      %1860 = vmatpush1.xpose.msra.mxu0 0.0
      %1861 = vmatprep.subr.mxu0 0.0
      %1862 = vmatpush1.xpose.msra.mxu0 0.0
      %1863 = vmatprep.subr.mxu0 0.0
      %1864 = vmatpush1.xpose.msra.mxu0 0.0
      %1865 = vmatprep.subr.mxu0 0.0
      %1866 = vmatpush1.xpose.msra.mxu0 0.0
      %1867 = vmatprep.subr.mxu0 0.0
      %1868 = vmatpush1.xpose.msra.mxu0 0.0
      %1869 = vmatprep.subr.mxu0 0.0
      %1870 = vmatpush1.xpose.msra.mxu0 0.0
      %1871 = vmatprep.subr.mxu0 0.0
      %1872 = vmatpush1.xpose.msra.mxu0 0.0
      %1873 = vmatprep.subr.mxu0 0.0
      %1874 = vmatpush1.xpose.msra.mxu0 0.0
      %1875 = vmatprep.subr.mxu0 0.0
      %1876 = vmatpush1.xpose.msra.mxu0 0.0
      %1877 = vmatprep.subr.mxu0 0.0
      %1878 = vmatpush1.xpose.msra.mxu0 0.0
      %1879 = vmatprep.subr.mxu0 0.0
      %1880 = vmatpush1.xpose.msra.mxu0 0.0
      %1881 = vmatprep.subr.mxu0 0.0
      %1882 = vmatpush1.xpose.msra.mxu0 0.0
      %1883 = vmatprep.subr.mxu0 0.0
      %1884 = vmatpush1.xpose.msra.mxu0 0.0
      %1885 = vmatprep.subr.mxu0 0.0
      %1886 = vmatpush1.xpose.msra.mxu0 0.0
      %1887 = vmatprep.subr.mxu0 0.0
      %1888 = vmatpush1.xpose.msra.mxu0 0.0
      %1889 = vmatprep.subr.mxu0 0.0
      %1890 = vmatpush1.xpose.msra.mxu0 0.0
      %1891 = vmatprep.subr.mxu0 0.0
      %1892 = vmatpush1.xpose.msra.mxu0 0.0
      %1893 = vmatprep.subr.mxu0 0.0
      %1894 = vmatpush1.xpose.msra.mxu0 0.0
      %1895 = vmatprep.subr.mxu0 0.0
      %1896 = vmatpush1.xpose.msra.mxu0 0.0
      %1897 = vmatprep.subr.mxu0 0.0
      %1898 = vmatpush1.xpose.msra.mxu0 0.0
      %1899 = vmatprep.subr.mxu0 0.0
      %1900 = vmatpush1.xpose.msra.mxu0 0.0
      %1901 = vmatprep.subr.mxu0 0.0
      %1902 = vmatpush1.xpose.msra.mxu0 0.0
      %1903 = vmatprep.subr.mxu0 0.0
      %1904 = vmatpush1.xpose.msra.mxu0 0.0
      %1905 = vmatprep.mubr.f32.mxu0 0.0
      %1906 = vmatmul.mubr.f32.gmra.mrb[0].mxu0 %v1837
      %v1907 = vpop.f32.mrb[0].mxu0
      %v1908 = vadd.f32 0.0, %v1907
      %v1909 = vpop.f32.mrb[0].mxu0
      %1910 = vdwg.mxu0
      %v1911 = vmul.f32 %v1908, 0.35355338
      %v1912 = vadd.f32 %v1911, %v1577
      %v1913 = vsel %vm809, %v1912, -inf
      %1914 = vmax.xlane.f32.xlu0 %v1913
      %v1915 = vpop.xlane.xlu0 %1914
      %v1916 = vsub.f32 %v1912, %v1915
      %v1917 = vmul.f32 %v1916, 1.442695
      %v1918 = vpow.pop %v1917
      %v1919 = vsel %vm809, %v1918, 0.0
      %1920 = vadd.xlane.f32.xlu0 %v1919
      %v1921 = vpop.xlane.xlu0 %1920
      %v1922 = vrcp.pop %v1921
      %v1923 = vmul.f32 %v1918, %v1922
      %1924 = vrot.lane.b32.xlu0 %v802, 48
      %v1925 = vpop.permute.xlu0 %1924
      %v1928 = vsel %vm809, %v1923, 0
      %1930 = vmatprep.subr.mxu0 0.0
      %1931 = vmatpush1.msra.mxu0 %v1925
      %1932 = vmatprep.subr.mxu0 0.0
      %1933 = vmatpush1.msra.mxu0 0.0
      %1934 = vmatprep.subr.mxu0 0.0
      %1935 = vmatpush1.msra.mxu0 0.0
      %1936 = vmatprep.subr.mxu0 0.0
      %1937 = vmatpush1.msra.mxu0 0.0
      %1938 = vmatprep.subr.mxu0 0.0
      %1939 = vmatpush1.msra.mxu0 0.0
      %1940 = vmatprep.subr.mxu0 0.0
      %1941 = vmatpush1.msra.mxu0 0.0
      %1942 = vmatprep.subr.mxu0 0.0
      %1943 = vmatpush1.msra.mxu0 0.0
      %1944 = vmatprep.subr.mxu0 0.0
      %1945 = vmatpush1.msra.mxu0 0.0
      %1946 = vmatprep.subr.mxu0 0.0
      %1947 = vmatpush1.msra.mxu0 0.0
      %1948 = vmatprep.subr.mxu0 0.0
      %1949 = vmatpush1.msra.mxu0 0.0
      %1950 = vmatprep.subr.mxu0 0.0
      %1951 = vmatpush1.msra.mxu0 0.0
      %1952 = vmatprep.subr.mxu0 0.0
      %1953 = vmatpush1.msra.mxu0 0.0
      %1954 = vmatprep.subr.mxu0 0.0
      %1955 = vmatpush1.msra.mxu0 0.0
      %1956 = vmatprep.subr.mxu0 0.0
      %1957 = vmatpush1.msra.mxu0 0.0
      %1958 = vmatprep.subr.mxu0 0.0
      %1959 = vmatpush1.msra.mxu0 0.0
      %1960 = vmatprep.subr.mxu0 0.0
      %1961 = vmatpush1.msra.mxu0 0.0
      %1962 = vmatprep.subr.mxu0 0.0
      %1963 = vmatpush1.msra.mxu0 0.0
      %1964 = vmatprep.subr.mxu0 0.0
      %1965 = vmatpush1.msra.mxu0 0.0
      %1966 = vmatprep.subr.mxu0 0.0
      %1967 = vmatpush1.msra.mxu0 0.0
      %1968 = vmatprep.subr.mxu0 0.0
      %1969 = vmatpush1.msra.mxu0 0.0
      %1970 = vmatprep.subr.mxu0 0.0
      %1971 = vmatpush1.msra.mxu0 0.0
      %1972 = vmatprep.subr.mxu0 0.0
      %1973 = vmatpush1.msra.mxu0 0.0
      %1974 = vmatprep.subr.mxu0 0.0
      %1975 = vmatpush1.msra.mxu0 0.0
      %1976 = vmatprep.subr.mxu0 0.0
      %1977 = vmatpush1.msra.mxu0 0.0
      %1978 = vmatprep.subr.mxu0 0.0
      %1979 = vmatpush1.msra.mxu0 0.0
      %1980 = vmatprep.subr.mxu0 0.0
      %1981 = vmatpush1.msra.mxu0 0.0
      %1982 = vmatprep.subr.mxu0 0.0
      %1983 = vmatpush1.msra.mxu0 0.0
      %1984 = vmatprep.subr.mxu0 0.0
      %1985 = vmatpush1.msra.mxu0 0.0
      %1986 = vmatprep.subr.mxu0 0.0
      %1987 = vmatpush1.msra.mxu0 0.0
      %1988 = vmatprep.subr.mxu0 0.0
      %1989 = vmatpush1.msra.mxu0 0.0
      %1990 = vmatprep.subr.mxu0 0.0
      %1991 = vmatpush1.msra.mxu0 0.0
      %1992 = vmatprep.subr.mxu0 0.0
      %1993 = vmatpush1.msra.mxu0 0.0
      %1994 = vmatprep.mubr.f32.mxu0 0.0
      %1995 = vmatmul.mubr.f32.gmra.mrb[0].mxu0 %v1928
      %v1996 = vpop.f32.mrb[0].mxu0
      %v1997 = vadd.f32 0.0, %v1996
      %v1998 = vpop.f32.mrb[0].mxu0
      %1999 = vdwg.mxu0
      %2000 = vrot.lane.b32.xlu0 %v802, 104
      %v2001 = vpop.permute.xlu0 %2000
      %2002 = vrot.lane.b32.xlu0 %v802, 72
      %v2003 = vpop.permute.xlu0 %2002
      %v2004 = vsel %vm809, %v2001, 0
      %v2006 = vsel %vm809, %v2003, 0
      %2008 = vmatprep.subr.mxu0 0.0
      %2009 = vmatpush1.xpose.msra.mxu0 %v2006
      %2010 = vmatprep.subr.mxu0 0.0
      %2011 = vmatpush1.xpose.msra.mxu0 0.0
      %2012 = vmatprep.subr.mxu0 0.0
      %2013 = vmatpush1.xpose.msra.mxu0 0.0
      %2014 = vmatprep.subr.mxu0 0.0
      %2015 = vmatpush1.xpose.msra.mxu0 0.0
      %2016 = vmatprep.subr.mxu0 0.0
      %2017 = vmatpush1.xpose.msra.mxu0 0.0
      %2018 = vmatprep.subr.mxu0 0.0
      %2019 = vmatpush1.xpose.msra.mxu0 0.0
      %2020 = vmatprep.subr.mxu0 0.0
      %2021 = vmatpush1.xpose.msra.mxu0 0.0
      %2022 = vmatprep.subr.mxu0 0.0
      %2023 = vmatpush1.xpose.msra.mxu0 0.0
      %2024 = vmatprep.subr.mxu0 0.0
      %2025 = vmatpush1.xpose.msra.mxu0 0.0
      %2026 = vmatprep.subr.mxu0 0.0
      %2027 = vmatpush1.xpose.msra.mxu0 0.0
      %2028 = vmatprep.subr.mxu0 0.0
      %2029 = vmatpush1.xpose.msra.mxu0 0.0
      %2030 = vmatprep.subr.mxu0 0.0
      %2031 = vmatpush1.xpose.msra.mxu0 0.0
      %2032 = vmatprep.subr.mxu0 0.0
      %2033 = vmatpush1.xpose.msra.mxu0 0.0
      %2034 = vmatprep.subr.mxu0 0.0
      %2035 = vmatpush1.xpose.msra.mxu0 0.0
      %2036 = vmatprep.subr.mxu0 0.0
      %2037 = vmatpush1.xpose.msra.mxu0 0.0
      %2038 = vmatprep.subr.mxu0 0.0
      %2039 = vmatpush1.xpose.msra.mxu0 0.0
      %2040 = vmatprep.subr.mxu0 0.0
      %2041 = vmatpush1.xpose.msra.mxu0 0.0
      %2042 = vmatprep.subr.mxu0 0.0
      %2043 = vmatpush1.xpose.msra.mxu0 0.0
      %2044 = vmatprep.subr.mxu0 0.0
      %2045 = vmatpush1.xpose.msra.mxu0 0.0
      %2046 = vmatprep.subr.mxu0 0.0
      %2047 = vmatpush1.xpose.msra.mxu0 0.0
      %2048 = vmatprep.subr.mxu0 0.0
      %2049 = vmatpush1.xpose.msra.mxu0 0.0
      %2050 = vmatprep.subr.mxu0 0.0
      %2051 = vmatpush1.xpose.msra.mxu0 0.0
      %2052 = vmatprep.subr.mxu0 0.0
      %2053 = vmatpush1.xpose.msra.mxu0 0.0
      %2054 = vmatprep.subr.mxu0 0.0
      %2055 = vmatpush1.xpose.msra.mxu0 0.0
      %2056 = vmatprep.subr.mxu0 0.0
      %2057 = vmatpush1.xpose.msra.mxu0 0.0
      %2058 = vmatprep.subr.mxu0 0.0
      %2059 = vmatpush1.xpose.msra.mxu0 0.0
      %2060 = vmatprep.subr.mxu0 0.0
      %2061 = vmatpush1.xpose.msra.mxu0 0.0
      %2062 = vmatprep.subr.mxu0 0.0
      %2063 = vmatpush1.xpose.msra.mxu0 0.0
      %2064 = vmatprep.subr.mxu0 0.0
      %2065 = vmatpush1.xpose.msra.mxu0 0.0
      %2066 = vmatprep.subr.mxu0 0.0
      %2067 = vmatpush1.xpose.msra.mxu0 0.0
      %2068 = vmatprep.subr.mxu0 0.0
      %2069 = vmatpush1.xpose.msra.mxu0 0.0
      %2070 = vmatprep.subr.mxu0 0.0
      %2071 = vmatpush1.xpose.msra.mxu0 0.0
      %2072 = vmatprep.mubr.f32.mxu0 0.0
      %2073 = vmatmul.mubr.f32.gmra.mrb[0].mxu0 %v2004
      %v2074 = vpop.f32.mrb[0].mxu0
      %v2075 = vadd.f32 0.0, %v2074
      %v2076 = vpop.f32.mrb[0].mxu0
      %2077 = vdwg.mxu0
      %v2078 = vmul.f32 %v2075, 0.35355338
      %v2079 = vadd.f32 %v2078, %v1577
      %v2080 = vsel %vm809, %v2079, -inf
      %2081 = vmax.xlane.f32.xlu0 %v2080
      %v2082 = vpop.xlane.xlu0 %2081
      %v2083 = vsub.f32 %v2079, %v2082
      %v2084 = vmul.f32 %v2083, 1.442695
      %v2085 = vpow.pop %v2084
      %v2086 = vsel %vm809, %v2085, 0.0
      %2087 = vadd.xlane.f32.xlu0 %v2086
      %v2088 = vpop.xlane.xlu0 %2087
      %v2089 = vrcp.pop %v2088
      %v2090 = vmul.f32 %v2085, %v2089
      %2091 = vrot.lane.b32.xlu0 %v802, 40
      %v2092 = vpop.permute.xlu0 %2091
      %v2095 = vsel %vm809, %v2090, 0
      %2097 = vmatprep.subr.mxu0 0.0
      %2098 = vmatpush1.msra.mxu0 %v2092
      %2099 = vmatprep.subr.mxu0 0.0
      %2100 = vmatpush1.msra.mxu0 0.0
      %2101 = vmatprep.subr.mxu0 0.0
      %2102 = vmatpush1.msra.mxu0 0.0
      %2103 = vmatprep.subr.mxu0 0.0
      %2104 = vmatpush1.msra.mxu0 0.0
      %2105 = vmatprep.subr.mxu0 0.0
      %2106 = vmatpush1.msra.mxu0 0.0
      %2107 = vmatprep.subr.mxu0 0.0
      %2108 = vmatpush1.msra.mxu0 0.0
      %2109 = vmatprep.subr.mxu0 0.0
      %2110 = vmatpush1.msra.mxu0 0.0
      %2111 = vmatprep.subr.mxu0 0.0
      %2112 = vmatpush1.msra.mxu0 0.0
      %2113 = vmatprep.subr.mxu0 0.0
      %2114 = vmatpush1.msra.mxu0 0.0
      %2115 = vmatprep.subr.mxu0 0.0
      %2116 = vmatpush1.msra.mxu0 0.0
      %2117 = vmatprep.subr.mxu0 0.0
      %2118 = vmatpush1.msra.mxu0 0.0
      %2119 = vmatprep.subr.mxu0 0.0
      %2120 = vmatpush1.msra.mxu0 0.0
      %2121 = vmatprep.subr.mxu0 0.0
      %2122 = vmatpush1.msra.mxu0 0.0
      %2123 = vmatprep.subr.mxu0 0.0
      %2124 = vmatpush1.msra.mxu0 0.0
      %2125 = vmatprep.subr.mxu0 0.0
      %2126 = vmatpush1.msra.mxu0 0.0
      %2127 = vmatprep.subr.mxu0 0.0
      %2128 = vmatpush1.msra.mxu0 0.0
      %2129 = vmatprep.subr.mxu0 0.0
      %2130 = vmatpush1.msra.mxu0 0.0
      %2131 = vmatprep.subr.mxu0 0.0
      %2132 = vmatpush1.msra.mxu0 0.0
      %2133 = vmatprep.subr.mxu0 0.0
      %2134 = vmatpush1.msra.mxu0 0.0
      %2135 = vmatprep.subr.mxu0 0.0
      %2136 = vmatpush1.msra.mxu0 0.0
      %2137 = vmatprep.subr.mxu0 0.0
      %2138 = vmatpush1.msra.mxu0 0.0
      %2139 = vmatprep.subr.mxu0 0.0
      %2140 = vmatpush1.msra.mxu0 0.0
      %2141 = vmatprep.subr.mxu0 0.0
      %2142 = vmatpush1.msra.mxu0 0.0
      %2143 = vmatprep.subr.mxu0 0.0
      %2144 = vmatpush1.msra.mxu0 0.0
      %2145 = vmatprep.subr.mxu0 0.0
      %2146 = vmatpush1.msra.mxu0 0.0
      %2147 = vmatprep.subr.mxu0 0.0
      %2148 = vmatpush1.msra.mxu0 0.0
      %2149 = vmatprep.subr.mxu0 0.0
      %2150 = vmatpush1.msra.mxu0 0.0
      %2151 = vmatprep.subr.mxu0 0.0
      %2152 = vmatpush1.msra.mxu0 0.0
      %2153 = vmatprep.subr.mxu0 0.0
      %2154 = vmatpush1.msra.mxu0 0.0
      %2155 = vmatprep.subr.mxu0 0.0
      %2156 = vmatpush1.msra.mxu0 0.0
      %2157 = vmatprep.subr.mxu0 0.0
      %2158 = vmatpush1.msra.mxu0 0.0
      %2159 = vmatprep.subr.mxu0 0.0
      %2160 = vmatpush1.msra.mxu0 0.0
      %2161 = vmatprep.mubr.f32.mxu0 0.0
      %2162 = vmatmul.mubr.f32.gmra.mrb[0].mxu0 %v2095
      %v2163 = vpop.f32.mrb[0].mxu0
      %v2164 = vadd.f32 0.0, %v2163
      %v2165 = vpop.f32.mrb[0].mxu0
      %2166 = vdwg.mxu0
      %2168 = vrot.lane.b32.xlu0 %v1830, 8
      %v2169 = vpop.permute.xlu0 %2168
      %2172 = vrot.lane.b32.xlu0 %v1997, 16
      %v2173 = vpop.permute.xlu0 %2172
      %2176 = vrot.lane.b32.xlu0 %v2164, 24
      %v2177 = vpop.permute.xlu0 %2176
      %v2179 = vsel %vm809, %v1663, %v2169
      %v2180 = vsel %vm1491, %v2179, %v2173
      %v2181 = vsel %vm1493, %v2180, %v2177
      %v2182 = vpack.c.bf16 %v2181, %v1494
      %v2183 = vld [vmem:[%s647] sm:$0xf]
      %v2184 = vld [vmem:[%s647 + $0x4] sm:$0xf]
      %v2185 = vld [vmem:[%s647 + $0x8] sm:$0xf]
      %v2186 = vld [vmem:[%s647 + $0xc] sm:$0xf]
      %v2187 = vld [vmem:[%s650] sm:$0x1]
      %v2189 = vlaneseq
      %v2190 = vshrl.u32 %v2189, 7
      %v2191 = vsub.s32 0, %v2190
      %v2192 = vrot.slane %v2187, %v2191
      %v2198 = vunpack.c.l.b16 %v2183
      %v2199 = vunpack.c.l.b16 %v2184
      %v2200 = vunpack.c.l.b16 %v2185
      %v2201 = vunpack.c.l.b16 %v2186
      %v2202 = vpack.c.b16 %v2199, %v2198
      %v2203 = vpack.c.b16 %v2201, %v2200
      %v2207 = vsel %vm760, %v2182, 0
      %2209 = vmatprep.subr.bf16.mxu0 0
      %2210 = vmatpush1.bf16.msra.mxu0 %v2202
      %2211 = vmatprep.subr.bf16.mxu0 0
      %2212 = vmatpush1.bf16.msra.mxu0 %v2203
      %2213 = vmatprep.subr.bf16.mxu0 0
      %2214 = vmatpush1.bf16.msra.mxu0 0
      %2215 = vmatprep.subr.bf16.mxu0 0
      %2216 = vmatpush1.bf16.msra.mxu0 0
      %2217 = vmatprep.subr.bf16.mxu0 0
      %2218 = vmatpush1.bf16.msra.mxu0 0
      %2219 = vmatprep.subr.bf16.mxu0 0
      %2220 = vmatpush1.bf16.msra.mxu0 0
      %2221 = vmatprep.subr.bf16.mxu0 0
      %2222 = vmatpush1.bf16.msra.mxu0 0
      %2223 = vmatprep.subr.bf16.mxu0 0
      %2224 = vmatpush1.bf16.msra.mxu0 0
      %2225 = vmatprep.subr.bf16.mxu0 0
      %2226 = vmatpush1.bf16.msra.mxu0 0
      %2227 = vmatprep.subr.bf16.mxu0 0
      %2228 = vmatpush1.bf16.msra.mxu0 0
      %2229 = vmatprep.subr.bf16.mxu0 0
      %2230 = vmatpush1.bf16.msra.mxu0 0
      %2231 = vmatprep.subr.bf16.mxu0 0
      %2232 = vmatpush1.bf16.msra.mxu0 0
      %2233 = vmatprep.subr.bf16.mxu0 0
      %2234 = vmatpush1.bf16.msra.mxu0 0
      %2235 = vmatprep.subr.bf16.mxu0 0
      %2236 = vmatpush1.bf16.msra.mxu0 0
      %2237 = vmatprep.subr.bf16.mxu0 0
      %2238 = vmatpush1.bf16.msra.mxu0 0
      %2239 = vmatprep.subr.bf16.mxu0 0
      %2240 = vmatpush1.bf16.msra.mxu0 0
      %2241 = vmatprep.mubr.bf16.mxu0 0
      %2242 = vmatmul.mubr.bf16.gmra.mrb[0].mxu0 %v2207
      %v2243 = vpop.f32.mrb[0].mxu0
      %v2244 = vadd.f32 %v2192, %v2243
      %v2245 = vpop.f32.mrb[0].mxu0
      %v2246 = vpop.f32.mrb[0].mxu0
      %v2247 = vadd.f32 %v2192, %v2246
      %v2248 = vpop.f32.mrb[0].mxu0
      %2249 = vdwg.mxu0
      %v2250 = vadd.f32 %v734, %v2244
      %v2251 = vadd.f32 %v735, %v2247
      %v2252 = vld [vmem:[%s653] sm:$0x1]
      %v2253 = vld [vmem:[%s656] sm:$0x1]
      %v2254 = vsel %vm760, %v2250, 0.0
      %2255 = vadd.xlane.f32.xlu0 %v2254
      %v2256 = vpop.xlane.xlu0 %2255
      %v2257 = vsel %vm760, %v2251, 0.0
      %2258 = vadd.xlane.f32.xlu0 %v2257
      %v2259 = vpop.xlane.xlu0 %2258
      %v2260 = vrcp.pop 32.0
      %v2261 = vmul.f32 %v2256, %v2260
      %v2262 = vmul.f32 %v2259, %v2260
      %v2263 = vsub.f32 %v2250, %v2261
      %v2264 = vsub.f32 %v2251, %v2262
      %v2265 = vmul.f32 %v2263, %v2263
      %v2266 = vmul.f32 %v2264, %v2264
      %v2267 = vsel %vm760, %v2265, 0.0
      %2268 = vadd.xlane.f32.xlu0 %v2267
      %v2269 = vpop.xlane.xlu0 %2268
      %v2270 = vsel %vm760, %v2266, 0.0
      %2271 = vadd.xlane.f32.xlu0 %v2270
      %v2272 = vpop.xlane.xlu0 %2271
      %v2273 = vmul.f32 %v2269, %v2260
      %v2274 = vmul.f32 %v2272, %v2260
      %v2275 = vadd.f32 %v2273, 1e-05
      %v2276 = vadd.f32 %v2274, 1e-05
      %v2277 = vrsqrt.pop %v2275
      %v2278 = vrsqrt.pop %v2276
      %v2279 = vmul.f32 %v2263, %v2277
      %v2280 = vmul.f32 %v2264, %v2278
      %v2282 = vlaneseq
      %v2283 = vshrl.u32 %v2282, 7
      %v2284 = vsub.s32 0, %v2283
      %v2285 = vrot.slane %v2252, %v2284
      %v2287 = vmul.f32 %v2279, %v2285
      %v2288 = vmul.f32 %v2280, %v2285
      %v2290 = vlaneseq
      %v2291 = vshrl.u32 %v2290, 7
      %v2292 = vsub.s32 0, %v2291
      %v2293 = vrot.slane %v2253, %v2292
      %v2295 = vadd.f32 %v2287, %v2293
      %v2296 = vadd.f32 %v2288, %v2293
      %v2297 = vpack.c.bf16 %v2296, %v2295
      %v2298 = vld [vmem:[%s661] sm:$0xf]
      %v2299 = vld [vmem:[%s661 + $0x4] sm:$0xf]
      %v2300 = vld [vmem:[%s661 + $0x8] sm:$0xf]
      %v2301 = vld [vmem:[%s661 + $0xc] sm:$0xf]
      %v2302 = vld [vmem:[%s664] sm:$0x1]
      %v2304 = vlaneseq
      %v2305 = vshrl.u32 %v2304, 7
      %v2306 = vsub.s32 0, %v2305
      %v2307 = vrot.slane %v2302, %v2306
      %v2313 = vunpack.c.l.b16 %v2298
      %v2314 = vunpack.c.l.b16 %v2299
      %v2315 = vunpack.c.l.b16 %v2300
      %v2316 = vunpack.c.l.b16 %v2301
      %v2317 = vpack.c.b16 %v2314, %v2313
      %v2318 = vpack.c.b16 %v2316, %v2315
      %v2322 = vsel %vm760, %v2297, 0
      %2324 = vmatprep.subr.bf16.mxu0 0
      %2325 = vmatpush1.bf16.msra.mxu0 %v2317
      %2326 = vmatprep.subr.bf16.mxu0 0
      %2327 = vmatpush1.bf16.msra.mxu0 %v2318
      %2328 = vmatprep.subr.bf16.mxu0 0
      %2329 = vmatpush1.bf16.msra.mxu0 0
      %2330 = vmatprep.subr.bf16.mxu0 0
      %2331 = vmatpush1.bf16.msra.mxu0 0
      %2332 = vmatprep.subr.bf16.mxu0 0
      %2333 = vmatpush1.bf16.msra.mxu0 0
      %2334 = vmatprep.subr.bf16.mxu0 0
      %2335 = vmatpush1.bf16.msra.mxu0 0
      %2336 = vmatprep.subr.bf16.mxu0 0
      %2337 = vmatpush1.bf16.msra.mxu0 0
      %2338 = vmatprep.subr.bf16.mxu0 0
      %2339 = vmatpush1.bf16.msra.mxu0 0
      %2340 = vmatprep.subr.bf16.mxu0 0
      %2341 = vmatpush1.bf16.msra.mxu0 0
      %2342 = vmatprep.subr.bf16.mxu0 0
      %2343 = vmatpush1.bf16.msra.mxu0 0
      %2344 = vmatprep.subr.bf16.mxu0 0
      %2345 = vmatpush1.bf16.msra.mxu0 0
      %2346 = vmatprep.subr.bf16.mxu0 0
      %2347 = vmatpush1.bf16.msra.mxu0 0
      %2348 = vmatprep.subr.bf16.mxu0 0
      %2349 = vmatpush1.bf16.msra.mxu0 0
      %2350 = vmatprep.subr.bf16.mxu0 0
      %2351 = vmatpush1.bf16.msra.mxu0 0
      %2352 = vmatprep.subr.bf16.mxu0 0
      %2353 = vmatpush1.bf16.msra.mxu0 0
      %2354 = vmatprep.subr.bf16.mxu0 0
      %2355 = vmatpush1.bf16.msra.mxu0 0
      %2356 = vmatprep.mubr.bf16.mxu0 0
      %2357 = vmatmul.mubr.bf16.gmra.mrb[0].mxu0 %v2322
      %v2358 = vpop.f32.mrb[0].mxu0
      %v2359 = vadd.f32 %v2307, %v2358
      %v2360 = vpop.f32.mrb[0].mxu0
      %v2361 = vpop.f32.mrb[0].mxu0
      %v2362 = vadd.f32 %v2307, %v2361
      %v2363 = vpop.f32.mrb[0].mxu0
      %2364 = vdwg.mxu0
      %v2365 = vmul.f32 %v2359, %v2359
      %v2366 = vmul.f32 %v2362, %v2362
      %v2367 = vmul.f32 %v2359, %v2365
      %v2368 = vmul.f32 %v2362, %v2366
      %v2369 = vmul.f32 %v2367, 0.044715
      %v2370 = vmul.f32 %v2368, 0.044715
      %v2371 = vadd.f32 %v2359, %v2369
      %v2372 = vadd.f32 %v2362, %v2370
      %v2373 = vmul.f32 %v2371, 0.7978846
      %v2374 = vmul.f32 %v2372, 0.7978846
      %v2375 = vtanh.pop %v2373
      %v2376 = vtanh.pop %v2374
      %v2377 = vadd.f32 %v2375, 1.0
      %v2378 = vadd.f32 %v2376, 1.0
      %v2379 = vmul.f32 %v2377, 0.5
      %v2380 = vmul.f32 %v2378, 0.5
      %v2381 = vmul.f32 %v2359, %v2379
      %v2382 = vmul.f32 %v2362, %v2380
      %v2383 = vpack.c.bf16 %v2382, %v2381
      %v2384 = vld [vmem:[%s669] sm:$0xf]
      %v2385 = vld [vmem:[%s669 + $0x4] sm:$0xf]
      %v2386 = vld [vmem:[%s669 + $0x8] sm:$0xf]
      %v2387 = vld [vmem:[%s669 + $0xc] sm:$0xf]
      %v2388 = vld [vmem:[%s669 + $0x10] sm:$0xf]
      %v2389 = vld [vmem:[%s669 + $0x14] sm:$0xf]
      %v2390 = vld [vmem:[%s669 + $0x18] sm:$0xf]
      %v2391 = vld [vmem:[%s669 + $0x1c] sm:$0xf]
      %v2392 = vld [vmem:[%s672] sm:$0x1]
      %v2394 = vlaneseq
      %v2395 = vshrl.u32 %v2394, 7
      %v2396 = vsub.s32 0, %v2395
      %v2397 = vrot.slane %v2392, %v2396
      %v2407 = vunpack.c.l.b16 %v2384
      %v2408 = vunpack.c.l.b16 %v2385
      %v2409 = vunpack.c.l.b16 %v2386
      %v2410 = vunpack.c.l.b16 %v2387
      %v2411 = vunpack.c.l.b16 %v2388
      %v2412 = vunpack.c.l.b16 %v2389
      %v2413 = vunpack.c.l.b16 %v2390
      %v2414 = vunpack.c.l.b16 %v2391
      %v2415 = vpack.c.b16 %v2408, %v2407
      %v2416 = vpack.c.b16 %v2410, %v2409
      %v2417 = vpack.c.b16 %v2412, %v2411
      %v2418 = vpack.c.b16 %v2414, %v2413
      %vm2423 = vcmask 523264
      %v2425 = vsel %vm2423, %v2383, 0
      %2427 = vmatprep.subr.bf16.mxu0 0
      %2428 = vmatpush1.bf16.msra.mxu0 %v2415
      %2429 = vmatprep.subr.bf16.mxu0 0
      %2430 = vmatpush1.bf16.msra.mxu0 %v2416
      %2431 = vmatprep.subr.bf16.mxu0 0
      %2432 = vmatpush1.bf16.msra.mxu0 %v2417
      %2433 = vmatprep.subr.bf16.mxu0 0
      %2434 = vmatpush1.bf16.msra.mxu0 %v2418
      %2435 = vmatprep.subr.bf16.mxu0 0
      %2436 = vmatpush1.bf16.msra.mxu0 0
      %2437 = vmatprep.subr.bf16.mxu0 0
      %2438 = vmatpush1.bf16.msra.mxu0 0
      %2439 = vmatprep.subr.bf16.mxu0 0
      %2440 = vmatpush1.bf16.msra.mxu0 0
      %2441 = vmatprep.subr.bf16.mxu0 0
      %2442 = vmatpush1.bf16.msra.mxu0 0
      %2443 = vmatprep.subr.bf16.mxu0 0
      %2444 = vmatpush1.bf16.msra.mxu0 0
      %2445 = vmatprep.subr.bf16.mxu0 0
      %2446 = vmatpush1.bf16.msra.mxu0 0
      %2447 = vmatprep.subr.bf16.mxu0 0
      %2448 = vmatpush1.bf16.msra.mxu0 0
      %2449 = vmatprep.subr.bf16.mxu0 0
      %2450 = vmatpush1.bf16.msra.mxu0 0
      %2451 = vmatprep.subr.bf16.mxu0 0
      %2452 = vmatpush1.bf16.msra.mxu0 0
      %2453 = vmatprep.subr.bf16.mxu0 0
      %2454 = vmatpush1.bf16.msra.mxu0 0
      %2455 = vmatprep.subr.bf16.mxu0 0
      %2456 = vmatpush1.bf16.msra.mxu0 0
      %2457 = vmatprep.subr.bf16.mxu0 0
      %2458 = vmatpush1.bf16.msra.mxu0 0
      %2459 = vmatprep.mubr.bf16.mxu0 0
      %2460 = vmatmul.mubr.bf16.gmra.mrb[0].mxu0 %v2425
      %v2461 = vpop.f32.mrb[0].mxu0
      %v2462 = vadd.f32 %v2397, %v2461
      %v2463 = vpop.f32.mrb[0].mxu0
      %v2464 = vpop.f32.mrb[0].mxu0
      %v2465 = vadd.f32 %v2397, %v2464
      %v2466 = vpop.f32.mrb[0].mxu0
      %2467 = vdwg.mxu0
      %v2468 = vadd.f32 %v2295, %v2462
      %v2469 = vadd.f32 %v2296, %v2465
      %v2470 = vld [vmem:[%s675] sm:$0x1]
      %v2471 = vld [vmem:[%s678] sm:$0x1]
      %v2472 = vsel %vm760, %v2468, 0.0
      %2473 = vadd.xlane.f32.xlu0 %v2472
      %v2474 = vpop.xlane.xlu0 %2473
      %v2475 = vsel %vm760, %v2469, 0.0
      %2476 = vadd.xlane.f32.xlu0 %v2475
      %v2477 = vpop.xlane.xlu0 %2476
      %v2478 = vmul.f32 %v2474, %v2260
      %v2479 = vmul.f32 %v2477, %v2260
      %v2480 = vsub.f32 %v2468, %v2478
      %v2481 = vsub.f32 %v2469, %v2479
      %v2482 = vmul.f32 %v2480, %v2480
      %v2483 = vmul.f32 %v2481, %v2481
      %v2484 = vsel %vm760, %v2482, 0.0
      %2485 = vadd.xlane.f32.xlu0 %v2484
      %v2486 = vpop.xlane.xlu0 %2485
      %v2487 = vsel %vm760, %v2483, 0.0
      %2488 = vadd.xlane.f32.xlu0 %v2487
      %v2489 = vpop.xlane.xlu0 %2488
      %v2490 = vmul.f32 %v2486, %v2260
      %v2491 = vmul.f32 %v2489, %v2260
      %v2492 = vadd.f32 %v2490, 1e-05
      %v2493 = vadd.f32 %v2491, 1e-05
      %v2494 = vrsqrt.pop %v2492
      %v2495 = vrsqrt.pop %v2493
      %v2496 = vmul.f32 %v2480, %v2494
      %v2497 = vmul.f32 %v2481, %v2495
      %v2499 = vlaneseq
      %v2500 = vshrl.u32 %v2499, 7
      %v2501 = vsub.s32 0, %v2500
      %v2502 = vrot.slane %v2470, %v2501
      %v2504 = vmul.f32 %v2496, %v2502
      %v2505 = vmul.f32 %v2497, %v2502
      %v2507 = vlaneseq
      %v2508 = vshrl.u32 %v2507, 7
      %v2509 = vsub.s32 0, %v2508
      %v2510 = vrot.slane %v2471, %v2509
      %v2512 = vadd.f32 %v2504, %v2510
      %v2513 = vadd.f32 %v2505, %v2510
      %2514 = vst.msk [vmem:[#allocation2] sm:$0xff] %vm760, %v2512
      %2515 = vst.msk [vmem:[#allocation2 + $0x8] sm:$0xff] %vm760, %v2513
      %p2516 = scmp.eq.s32.totalorder %s27, 1
      // Predicated region
      $region89: #{bert_classifier_forward.2} parent=83 // pred_check
        %p2517 = pneg %p2516
      $region90: #{bert_classifier_forward.2} parent=83 // pred_check_branch
        %2519 = sbr.rel (%p2517) target = $region92
      $region91: #{bert_classifier_forward.2} parent=83 // pred_region
        %2520 = vst.msk [vmem:[%s16] sm:$0xff] %vm760, %v2512
        %2521 = vst.msk [vmem:[%s16 + $0x8] sm:$0xff] %vm760, %v2513
      $region92: #{bert_classifier_forward.2} parent=83 // pred_fallthru
        _
      // Predicated region
      $region93: #{bert_classifier_forward.2} parent=83 // pred_check
        %p2522 = pneg %p436
      $region94: #{bert_classifier_forward.2} parent=83 // pred_check_branch
        %2524 = sbr.rel (%p2522) target = $region96
      $region95: #{bert_classifier_forward.2} parent=83 // pred_region
        _
      $region96: #{bert_classifier_forward.2} parent=83 // pred_fallthru
        _
      // Predicated region
      $region97: #{bert_classifier_forward.2} parent=83 // pred_check
        %p2525 = pneg %p436
      $region98: #{bert_classifier_forward.2} parent=83 // pred_check_branch
        %2527 = sbr.rel (%p2525) target = $region100
      $region99: #{bert_classifier_forward.2} parent=83 // pred_region
        _
      $region100: #{bert_classifier_forward.2} parent=83 // pred_fallthru
        _
    $region84: #{bert_classifier_forward.2} parent=5 // pred_fallthru
      _
    %p2528 = scmp.le.s32.totalorder 2, %s22
    // Predicated region
    $region101: #{bert_classifier_forward.2} parent=5 // pred_check
      %p2529 = pneg %p2528
    $region102: #{bert_classifier_forward.2} parent=5 // pred_check_branch
      %2531 = sbr.rel (%p2529) target = $region104
    $region103: #{bert_classifier_forward.2} parent=5 // pred_region
      %s2532 = ssub.s32 %s22, 2
    $region104: #{bert_classifier_forward.2} parent=5 // pred_fallthru
      _
  $region6: #{bert_classifier_forward.2} parent=0 // loop_footer
    %s26 = sadd.s32 1, %s22
  $region7: #{bert_classifier_forward.2} parent=0 // loop_footer_branch
    %21 = sbr.rel target = $region3
  $region8: #{bert_classifier_forward.2} parent=0 // loop_exit
    _

</llo_original>
